<compile_context>
chip_gen: v6e
topology: v6e:2x2x1
jax: 0.10.0
libtpu: 0.0.40
codegen_flags: <defaults>
</compile_context>

<pallas_src>
import functools

import jax
import jax.numpy as jnp
import numpy as np
from jax.experimental import pallas as pl
from jax.experimental.pallas import tpu as pltpu

NUM_CLASSES = 3
NUM_ANCHORS = 2
CENTER_VARIANCE = 0.1
SIZE_VARIANCE = 0.2

_IMG = 16                                # input spatial size (16x16)
_HEAD_HW = ((8, 8), (4, 4), (2, 2))      # per-scale feature map sizes
_LANES = 128                             # physical lane width for small maps


# ----------------------------------------------------------------------------
# Fused SSD kernel: one grid step == one batch image.
# ----------------------------------------------------------------------------
def _ssd_kernel(x_ref,
                wb0_ref, wb1_ref, wb2_ref, we0_ref, we1_ref,
                wh0_ref, wh1_ref, wh2_ref,
                sel16_ref, sel8_ref, sel4_ref,
                m16_ref, m8_ref, m4_ref, m2_ref,
                pri_ref, out_ref, *, training):
    f32 = jnp.float32
    bf16 = jnp.bfloat16

    lane128 = jax.lax.broadcasted_iota(jnp.int32, (1, _LANES), 1)
    ones256 = jnp.ones((1, 2 * _LANES), f32)
    ones128 = jnp.ones((1, _LANES), f32)

    def conv3x3(x, w_ref, mask_ref, win, relu, ones_row):
        """3x3 / stride-1 / pad-1 conv as ONE MXU matmul (im2col K-stacking).

        x: (Cin, Mp) f32, channels on sublanes, flattened spatial on lanes.
        w_ref: (Cout, 9*Cin + 1) bf16 with bias folded in as the last column.
        mask_ref: (9, Mp) f32 0/1 per-tap validity masks (precomputed).
        """
        mp = x.shape[1]
        mask = mask_ref[...]
        blocks = []
        for t in range(9):                         # 9 taps, 8 lane rolls
            di, dj = t // 3 - 1, t % 3 - 1
            d = di * win + dj
            shifted = x if d == 0 else pltpu.roll(x, shift=(-d) % mp, axis=1)
            blocks.append(shifted * mask[t:t + 1, :])
        blocks.append(ones_row)                    # bias row
        col = jnp.concatenate(blocks, axis=0).astype(bf16)   # (9*Cin+1, Mp)
        y = jnp.dot(w_ref[...], col, preferred_element_type=f32)
        return jnp.maximum(y, 0.0) if relu else y

    def conv1x1(x, w_ref, relu):
        col = jnp.concatenate([x, ones128], axis=0).astype(bf16)
        y = jnp.dot(w_ref[...], col, preferred_element_type=f32)
        return jnp.maximum(y, 0.0) if relu else y

    def down(y, sel_ref):
        """Keep every 2nd row/col (== stride-2 conv) via a bf16 0/1 matmul."""
        return jnp.dot(y.astype(bf16), sel_ref[...], preferred_element_type=f32)

    x0 = x_ref[0]                                              # (8, 256) f32
    pri = pri_ref[...]                                         # (3, 8, 128)

    # base_net -> two source feature maps (everything stays in VMEM/vregs)
    h1 = conv3x3(x0, wb0_ref, m16_ref, _IMG, True, ones256)    # (8, 256)
    f0 = down(conv3x3(h1, wb1_ref, m16_ref, _IMG, True, ones256),
              sel16_ref)                                       # 8x8  x 16ch
    f1 = down(conv3x3(f0, wb2_ref, m8_ref, 8, True, ones128),
              sel8_ref)                                        # 4x4  x 32ch
    # extras
    e0 = conv1x1(f1, we0_ref, True)                            # 4x4  x 16ch
    f2 = down(conv3x3(e0, we1_ref, m4_ref, 4, True, ones128),
              sel4_ref)                                        # 2x2  x 32ch

    def head(feat, w_ref, mask_ref, win, pri_s, s, hw):
        """Fused cls+reg 3x3 conv (14 ch) + eval epilogue for one scale."""
        hdr = conv3x3(feat, w_ref, mask_ref, win, False, ones128)  # (14, 128)
        valid = lane128 < hw
        zpad = jnp.zeros((2, _LANES), f32)
        if training:
            probs = jnp.concatenate([hdr[0:6], zpad], axis=0)  # raw logits
            boxes = hdr[6:14]                                  # raw locations
        else:
            prow = []
            for a in range(NUM_ANCHORS):                       # softmax / anchor
                la = hdr[a * 3:(a + 1) * 3]                    # (3, 128)
                m = jnp.max(la, axis=0, keepdims=True)
                e = jnp.exp(la - m)
                tot = jnp.sum(e, axis=0, keepdims=True)
                prow.append(e * pl.reciprocal(tot, approx=True))
            probs = jnp.concatenate(prow + [zpad], axis=0)     # (8, 128)
            brow = []
            for a in range(NUM_ANCHORS):                       # loc -> corner box
                o = 6 + a * 4
                loc = hdr[o:o + 4]                             # (4, 128)
                pa = pri_s[a * 4:(a + 1) * 4]                  # (4, 128)
                cen = loc[0:2] * CENTER_VARIANCE * pa[2:4] + pa[0:2]
                siz = jnp.exp(loc[2:4] * SIZE_VARIANCE) * pa[2:4]
                brow.append(jnp.concatenate(
                    [cen - 0.5 * siz, cen + 0.5 * siz], axis=0))
            boxes = jnp.concatenate(brow, axis=0)              # (8, 128)
        slab = jnp.concatenate([probs, boxes], axis=0)         # (16, 128)
        out_ref[0, s] = jnp.where(valid, slab, 0.0)

    # fused cls+reg headers + epilogue
    head(f0, wh0_ref, m8_ref, 8, pri[0], 0, 64)
    head(f1, wh1_ref, m4_ref, 4, pri[1], 1, 16)
    head(f2, wh2_ref, m2_ref, 2, pri[2], 2, 4)


# ----------------------------------------------------------------------------
# Wrapper: layout packing (weights / masks once), one pallas_call, unpacking.
# ----------------------------------------------------------------------------
def _pack_w(w, b):
    """(Cout,Cin,kh,kw) + (Cout,) -> (Cout, kh*kw*Cin + 1) bf16, bias folded."""
    cout, cin, kh, kw = w.shape
    wk = jnp.transpose(w, (0, 2, 3, 1)).reshape(cout, kh * kw * cin)
    return jnp.concatenate([wk, b[:, None]], axis=1).astype(jnp.bfloat16)


def _tap_masks(hin, win, mp):
    """(9, mp) f32 0/1 per-tap validity masks for a 3x3 pad-1 conv."""
    hw = hin * win
    lane = np.arange(mp)
    h, w = lane // win, lane % win
    m = np.zeros((9, mp), np.float32)
    for t in range(9):
        di, dj = t // 3 - 1, t % 3 - 1
        m[t] = ((lane < hw) & (h + di >= 0) & (h + di < hin) &
                (w + dj >= 0) & (w + dj < win)).astype(np.float32)
    return jnp.asarray(m, jnp.float32)


def _downsample_sel(hin, win, mp_in, mp_out):
    """(mp_in, mp_out) bf16 0/1 matrix selecting even rows/cols."""
    hout, wout = hin // 2, win // 2
    sel = np.zeros((mp_in, mp_out), np.float32)
    for c in range(hout * wout):
        r = (2 * (c // wout)) * win + 2 * (c % wout)
        sel[r, c] = 1.0
    return jnp.asarray(sel, jnp.bfloat16)


def _pack_priors(priors):
    packed, off = [], 0
    for (fh, fw) in _HEAD_HW:
        hw = fh * fw
        p = priors[off:off + hw * NUM_ANCHORS].reshape(hw, NUM_ANCHORS, 4)
        p = jnp.transpose(p, (1, 2, 0)).reshape(NUM_ANCHORS * 4, hw)
        packed.append(jnp.pad(p, ((0, 0), (0, _LANES - hw))))
        off += hw * NUM_ANCHORS
    return jnp.stack(packed, axis=0)                            # (3, 8, 128)


def _unpack(packed, rows, last):
    """(B,3,rows,128) channel-major slabs -> (B, P, last) in PyTorch order."""
    B = packed.shape[0]
    outs = []
    for s, (fh, fw) in enumerate(_HEAD_HW):
        hw = fh * fw
        blk = packed[:, s, :rows, :hw].reshape(B, NUM_ANCHORS, last, hw)
        outs.append(jnp.transpose(blk, (0, 3, 1, 2)).reshape(
            B, hw * NUM_ANCHORS, last))
    return jnp.concatenate(outs, axis=1)


def ssd_forward(x_nchw, policy, params, priors, training=False):
    del policy  # TODO(synk): dynamic layer-gating policy of the external
    # base_net is not reproducible; base features are computed densely.
    B = x_nchw.shape[0]
    t_flops = jnp.zeros((B,), jnp.float32)  # TODO(synk): base_net flop accounting

    # input: NCHW -> (B, C, H*W), pad C 4->8 so the im2col K blocks are aligned
    x_pk = jnp.pad(x_nchw.reshape(B, 4, _IMG * _IMG).astype(jnp.float32),
                   ((0, 0), (0, 4), (0, 0)))

    wb0 = _pack_w(jnp.pad(params['b0_w'], ((0, 0), (0, 4), (0, 0), (0, 0))),
                  params['b0_b'])
    wb1 = _pack_w(params['b1_w'], params['b1_b'])
    wb2 = _pack_w(params['b2_w'], params['b2_b'])
    we0 = _pack_w(params['e0_w'], params['e0_b'])
    we1 = _pack_w(params['e1_w'], params['e1_b'])
    head_w = []
    for i in range(3):
        head_w.append(_pack_w(
            jnp.concatenate([params[f'cls{i}_w'], params[f'reg{i}_w']], axis=0),
            jnp.concatenate([params[f'cls{i}_b'], params[f'reg{i}_b']], axis=0)))

    inputs = [
        x_pk,
        wb0, wb1, wb2, we0, we1,
        head_w[0], head_w[1], head_w[2],
        _downsample_sel(16, 16, 256, 128),
        _downsample_sel(8, 8, 128, 128),
        _downsample_sel(4, 4, 128, 128),
        _tap_masks(16, 16, 256),
        _tap_masks(8, 8, 128),
        _tap_masks(4, 4, 128),
        _tap_masks(2, 2, 128),
        _pack_priors(priors),
    ]

    def _const_spec(a):
        n = a.ndim
        return pl.BlockSpec(tuple(a.shape), lambda b, _n=n: (0,) * _n)

    in_specs = [pl.BlockSpec((1, 8, _IMG * _IMG), lambda b: (b, 0, 0))]
    in_specs += [_const_spec(a) for a in inputs[1:]]

    out_shape = jax.ShapeDtypeStruct((B, 3, 16, _LANES), jnp.float32)
    out_specs = pl.BlockSpec((1, 3, 16, _LANES), lambda b: (b, 0, 0, 0))

    out_pk = pl.pallas_call(
        functools.partial(_ssd_kernel, training=training),
        grid=(B,),
        in_specs=in_specs,
        out_specs=out_specs,
        out_shape=out_shape,
        compiler_params=pltpu.CompilerParams(
            dimension_semantics=("parallel",)),
        cost_estimate=pl.CostEstimate(
            flops=int(9e6) * B, transcendentals=2048 * B,
            bytes_accessed=int(2e5)),
    )(*inputs)

    conf = _unpack(out_pk[:, :, :8, :], NUM_ANCHORS * NUM_CLASSES, NUM_CLASSES)
    loc_or_boxes = _unpack(out_pk[:, :, 8:, :], NUM_ANCHORS * 4, 4)
    return conf, loc_or_boxes, t_flops


# ----------------------------------------------------------------------------
# Parameters / priors / pure-JAX reference (for numerical verification)
# ----------------------------------------------------------------------------
def _conv_init(key, cout, cin, kh, kw):
    k1, k2 = jax.random.split(key)
    fan = cin * kh * kw
    w = jax.random.normal(k1, (cout, cin, kh, kw), jnp.float32) * (2.0 / fan) ** 0.5
    b = 0.1 * jax.random.normal(k2, (cout,), jnp.float32)
    return w, b


def init_params(key):
    ks = jax.random.split(key, 11)
    p = {}
    p['b0_w'], p['b0_b'] = _conv_init(ks[0], 8, 4, 3, 3)
    p['b1_w'], p['b1_b'] = _conv_init(ks[1], 16, 8, 3, 3)
    p['b2_w'], p['b2_b'] = _conv_init(ks[2], 32, 16, 3, 3)
    p['e0_w'], p['e0_b'] = _conv_init(ks[3], 16, 32, 1, 1)
    p['e1_w'], p['e1_b'] = _conv_init(ks[4], 32, 16, 3, 3)
    head_cin = [16, 32, 32]
    for i, cin in enumerate(head_cin):
        p[f'cls{i}_w'], p[f'cls{i}_b'] = _conv_init(
            ks[5 + i], NUM_ANCHORS * NUM_CLASSES, cin, 3, 3)
        p[f'reg{i}_w'], p[f'reg{i}_b'] = _conv_init(
            ks[8 + i], NUM_ANCHORS * 4, cin, 3, 3)
    return p


def gen_priors():
    scales = [(0.2, 0.3), (0.45, 0.55), (0.7, 0.8)]
    pri = []
    for (fh, fw), sc in zip(_HEAD_HW, scales):
        for i in range(fh):
            for j in range(fw):
                cx = (j + 0.5) / fw
                cy = (i + 0.5) / fh
                for s in sc:
                    pri.append([cx, cy, s, s])
    return jnp.asarray(pri, jnp.float32)


def ref_forward(x, params, priors, training=False):
    def conv(h, w, b, s, p, relu):
        y = jax.lax.conv_general_dilated(
            h, w, (s, s), [(p, p), (p, p)],
            dimension_numbers=('NCHW', 'OIHW', 'NCHW'))
        y = y + b[None, :, None, None]
        return jnp.maximum(y, 0.0) if relu else y

    h = conv(x, params['b0_w'], params['b0_b'], 1, 1, True)
    f0 = conv(h, params['b1_w'], params['b1_b'], 2, 1, True)
    f1 = conv(f0, params['b2_w'], params['b2_b'], 2, 1, True)
    e = conv(f1, params['e0_w'], params['e0_b'], 1, 0, True)
    f2 = conv(e, params['e1_w'], params['e1_b'], 2, 1, True)
    B = x.shape[0]
    confs, locs = [], []
    for i, f in enumerate((f0, f1, f2)):
        c = conv(f, params[f'cls{i}_w'], params[f'cls{i}_b'], 1, 1, False)
        l = conv(f, params[f'reg{i}_w'], params[f'reg{i}_b'], 1, 1, False)
        confs.append(jnp.transpose(c, (0, 2, 3, 1)).reshape(B, -1, NUM_CLASSES))
        locs.append(jnp.transpose(l, (0, 2, 3, 1)).reshape(B, -1, 4))
    conf = jnp.concatenate(confs, axis=1)
    loc = jnp.concatenate(locs, axis=1)
    if training:
        return conf, loc
    conf = jax.nn.softmax(conf, axis=2)
    pri = priors[None]
    cx = loc[..., 0] * CENTER_VARIANCE * pri[..., 2] + pri[..., 0]
    cy = loc[..., 1] * CENTER_VARIANCE * pri[..., 3] + pri[..., 1]
    bw = jnp.exp(loc[..., 2] * SIZE_VARIANCE) * pri[..., 2]
    bh = jnp.exp(loc[..., 3] * SIZE_VARIANCE) * pri[..., 3]
    boxes = jnp.stack([cx - bw / 2, cy - bh / 2, cx + bw / 2, cy + bh / 2], -1)
    return conf, boxes


# ----------------------------------------------------------------------------
if __name__ == "__main__":
    key = jax.random.PRNGKey(0)
    kx, kp = jax.random.split(key)
    x = jax.random.normal(kx, (2, 4, _IMG, _IMG), jnp.float32)   # NCHW like PyTorch
    policy = jnp.ones((2, 3), jnp.float32)
    params = init_params(kp)
    priors = gen_priors()                                        # (168, 4)

    fwd = jax.jit(functools.partial(ssd_forward, training=False))
    conf, boxes, t_flops = fwd(x, policy, params, priors)
    jax.block_until_ready((conf, boxes, t_flops))

    assert conf.shape == (2, 168, NUM_CLASSES), conf.shape
    assert boxes.shape == (2, 168, 4), boxes.shape
    assert t_flops.shape == (2,), t_flops.shape
    assert bool(jnp.all(jnp.isfinite(conf))) and bool(jnp.all(jnp.isfinite(boxes)))

    # numerical check against a plain-JAX reference
    # (bf16 MXU inputs + bf16-folded bias across a 7-conv chain -> loose tol)
    conf_r, boxes_r = ref_forward(x, params, priors, training=False)
    np.testing.assert_allclose(np.asarray(conf), np.asarray(conf_r),
                               atol=1e-1, rtol=1e-1)
    np.testing.assert_allclose(np.asarray(boxes), np.asarray(boxes_r),
                               atol=1e-1, rtol=1e-1)
    print("KERNEL_OK")
</pallas_src>

<mosaic_0001>
module attributes {stable_mosaic.version = 11 : i64} {
  func.func @_ssd_kernel(%arg0: i32, %arg1: memref<1x8x256xf32, #tpu.memory_space<vmem>>, %arg2: memref<8x73xbf16, #tpu.memory_space<vmem>>, %arg3: memref<16x73xbf16, #tpu.memory_space<vmem>>, %arg4: memref<32x145xbf16, #tpu.memory_space<vmem>>, %arg5: memref<16x33xbf16, #tpu.memory_space<vmem>>, %arg6: memref<32x145xbf16, #tpu.memory_space<vmem>>, %arg7: memref<14x145xbf16, #tpu.memory_space<vmem>>, %arg8: memref<14x289xbf16, #tpu.memory_space<vmem>>, %arg9: memref<14x289xbf16, #tpu.memory_space<vmem>>, %arg10: memref<256x128xbf16, #tpu.memory_space<vmem>>, %arg11: memref<128x128xbf16, #tpu.memory_space<vmem>>, %arg12: memref<128x128xbf16, #tpu.memory_space<vmem>>, %arg13: memref<9x256xf32, #tpu.memory_space<vmem>>, %arg14: memref<9x128xf32, #tpu.memory_space<vmem>>, %arg15: memref<9x128xf32, #tpu.memory_space<vmem>>, %arg16: memref<9x128xf32, #tpu.memory_space<vmem>>, %arg17: memref<3x8x128xf32, #tpu.memory_space<vmem>>, %arg18: memref<1x3x16x128xf32, #tpu.memory_space<vmem>>) attributes {dimension_semantics = [#tpu.dimension_semantics<parallel>], iteration_bounds = array<i64: 2>, scalar_prefetch = 0 : i64, scratch_operands = 0 : i64, tpu.core_type = #tpu.core_type<tc>, window_params = [{transform_indices = @transform_0, window_bounds = array<i64: 1, 8, 256>}, {pipeline_mode = #tpu.pipeline_mode<synchronous>, transform_indices = @transform_1, window_bounds = array<i64: 8, 73>}, {pipeline_mode = #tpu.pipeline_mode<synchronous>, transform_indices = @transform_2, window_bounds = array<i64: 16, 73>}, {pipeline_mode = #tpu.pipeline_mode<synchronous>, transform_indices = @transform_3, window_bounds = array<i64: 32, 145>}, {pipeline_mode = #tpu.pipeline_mode<synchronous>, transform_indices = @transform_4, window_bounds = array<i64: 16, 33>}, {pipeline_mode = #tpu.pipeline_mode<synchronous>, transform_indices = @transform_5, window_bounds = array<i64: 32, 145>}, {pipeline_mode = #tpu.pipeline_mode<synchronous>, transform_indices = @transform_6, window_bounds = array<i64: 14, 145>}, {pipeline_mode = #tpu.pipeline_mode<synchronous>, transform_indices = @transform_7, window_bounds = array<i64: 14, 289>}, {pipeline_mode = #tpu.pipeline_mode<synchronous>, transform_indices = @transform_8, window_bounds = array<i64: 14, 289>}, {pipeline_mode = #tpu.pipeline_mode<synchronous>, transform_indices = @transform_9, window_bounds = array<i64: 256, 128>}, {pipeline_mode = #tpu.pipeline_mode<synchronous>, transform_indices = @transform_10, window_bounds = array<i64: 128, 128>}, {pipeline_mode = #tpu.pipeline_mode<synchronous>, transform_indices = @transform_11, window_bounds = array<i64: 128, 128>}, {pipeline_mode = #tpu.pipeline_mode<synchronous>, transform_indices = @transform_12, window_bounds = array<i64: 9, 256>}, {pipeline_mode = #tpu.pipeline_mode<synchronous>, transform_indices = @transform_13, window_bounds = array<i64: 9, 128>}, {pipeline_mode = #tpu.pipeline_mode<synchronous>, transform_indices = @transform_14, window_bounds = array<i64: 9, 128>}, {pipeline_mode = #tpu.pipeline_mode<synchronous>, transform_indices = @transform_15, window_bounds = array<i64: 9, 128>}, {pipeline_mode = #tpu.pipeline_mode<synchronous>, transform_indices = @transform_16, window_bounds = array<i64: 3, 8, 128>}, {transform_indices = @transform_17, window_bounds = array<i64: 1, 3, 16, 128>}]} {
    %0 = tpu.iota {dimensions = array<i32: 1>} : vector<1x128xi32>
    %cst = arith.constant 1.000000e+00 : f32
    %1 = vector.broadcast %cst : f32 to vector<1x256xf32>
    %cst_0 = arith.constant 1.000000e+00 : f32
    %2 = vector.broadcast %cst_0 : f32 to vector<1x128xf32>
    %c0 = arith.constant 0 : index
    %c0_1 = arith.constant 0 : index
    %c0_2 = arith.constant 0 : index
    %3 = vector.load %arg1[%c0, %c0_1, %c0_2] : memref<1x8x256xf32, #tpu.memory_space<vmem>>, vector<1x8x256xf32>
    %4 = vector.shape_cast %3 : vector<1x8x256xf32> to vector<8x256xf32>
    %c0_3 = arith.constant 0 : index
    %c0_4 = arith.constant 0 : index
    %c0_5 = arith.constant 0 : index
    %5 = vector.load %arg17[%c0_3, %c0_4, %c0_5] : memref<3x8x128xf32, #tpu.memory_space<vmem>>, vector<3x8x128xf32>
    %c0_6 = arith.constant 0 : index
    %c0_7 = arith.constant 0 : index
    %6 = vector.load %arg13[%c0_6, %c0_7] : memref<9x256xf32, #tpu.memory_space<vmem>>, vector<9x256xf32>
    %c17_i32 = arith.constant 17 : i32
    %7 = tpu.dynamic_rotate %4 by %c17_i32 dim 1 : vector<8x256xf32>, i32 -> vector<8x256xf32>
    %8 = vector.extract_strided_slice %6 {offsets = [0, 0], sizes = [1, 256], strides = [1, 1]} : vector<9x256xf32> to vector<1x256xf32>
    %9 = vector.broadcast %8 : vector<1x256xf32> to vector<8x256xf32>
    %10 = arith.mulf %7, %9 : vector<8x256xf32>
    %c16_i32 = arith.constant 16 : i32
    %11 = tpu.dynamic_rotate %4 by %c16_i32 dim 1 : vector<8x256xf32>, i32 -> vector<8x256xf32>
    %12 = vector.extract_strided_slice %6 {offsets = [1, 0], sizes = [1, 256], strides = [1, 1]} : vector<9x256xf32> to vector<1x256xf32>
    %13 = vector.broadcast %12 : vector<1x256xf32> to vector<8x256xf32>
    %14 = arith.mulf %11, %13 : vector<8x256xf32>
    %c15_i32 = arith.constant 15 : i32
    %15 = tpu.dynamic_rotate %4 by %c15_i32 dim 1 : vector<8x256xf32>, i32 -> vector<8x256xf32>
    %16 = vector.extract_strided_slice %6 {offsets = [2, 0], sizes = [1, 256], strides = [1, 1]} : vector<9x256xf32> to vector<1x256xf32>
    %17 = vector.broadcast %16 : vector<1x256xf32> to vector<8x256xf32>
    %18 = arith.mulf %15, %17 : vector<8x256xf32>
    %c1_i32 = arith.constant 1 : i32
    %19 = tpu.dynamic_rotate %4 by %c1_i32 dim 1 : vector<8x256xf32>, i32 -> vector<8x256xf32>
    %20 = vector.extract_strided_slice %6 {offsets = [3, 0], sizes = [1, 256], strides = [1, 1]} : vector<9x256xf32> to vector<1x256xf32>
    %21 = vector.broadcast %20 : vector<1x256xf32> to vector<8x256xf32>
    %22 = arith.mulf %19, %21 : vector<8x256xf32>
    %23 = vector.extract_strided_slice %6 {offsets = [4, 0], sizes = [1, 256], strides = [1, 1]} : vector<9x256xf32> to vector<1x256xf32>
    %24 = vector.broadcast %23 : vector<1x256xf32> to vector<8x256xf32>
    %25 = arith.mulf %4, %24 : vector<8x256xf32>
    %c255_i32 = arith.constant 255 : i32
    %26 = tpu.dynamic_rotate %4 by %c255_i32 dim 1 : vector<8x256xf32>, i32 -> vector<8x256xf32>
    %27 = vector.extract_strided_slice %6 {offsets = [5, 0], sizes = [1, 256], strides = [1, 1]} : vector<9x256xf32> to vector<1x256xf32>
    %28 = vector.broadcast %27 : vector<1x256xf32> to vector<8x256xf32>
    %29 = arith.mulf %26, %28 : vector<8x256xf32>
    %c241_i32 = arith.constant 241 : i32
    %30 = tpu.dynamic_rotate %4 by %c241_i32 dim 1 : vector<8x256xf32>, i32 -> vector<8x256xf32>
    %31 = vector.extract_strided_slice %6 {offsets = [6, 0], sizes = [1, 256], strides = [1, 1]} : vector<9x256xf32> to vector<1x256xf32>
    %32 = vector.broadcast %31 : vector<1x256xf32> to vector<8x256xf32>
    %33 = arith.mulf %30, %32 : vector<8x256xf32>
    %c240_i32 = arith.constant 240 : i32
    %34 = tpu.dynamic_rotate %4 by %c240_i32 dim 1 : vector<8x256xf32>, i32 -> vector<8x256xf32>
    %35 = vector.extract_strided_slice %6 {offsets = [7, 0], sizes = [1, 256], strides = [1, 1]} : vector<9x256xf32> to vector<1x256xf32>
    %36 = vector.broadcast %35 : vector<1x256xf32> to vector<8x256xf32>
    %37 = arith.mulf %34, %36 : vector<8x256xf32>
    %c239_i32 = arith.constant 239 : i32
    %38 = tpu.dynamic_rotate %4 by %c239_i32 dim 1 : vector<8x256xf32>, i32 -> vector<8x256xf32>
    %39 = vector.extract_strided_slice %6 {offsets = [8, 0], sizes = [1, 256], strides = [1, 1]} : vector<9x256xf32> to vector<1x256xf32>
    %40 = vector.broadcast %39 : vector<1x256xf32> to vector<8x256xf32>
    %41 = arith.mulf %38, %40 : vector<8x256xf32>
    %42 = tpu.concatenate %10, %14, %18, %22, %25, %29, %33, %37, %41, %1 in 0 : vector<8x256xf32>, vector<8x256xf32>, vector<8x256xf32>, vector<8x256xf32>, vector<8x256xf32>, vector<8x256xf32>, vector<8x256xf32>, vector<8x256xf32>, vector<8x256xf32>, vector<1x256xf32> -> vector<73x256xf32>
    %43 = arith.truncf %42 : vector<73x256xf32> to vector<73x256xbf16>
    %c0_8 = arith.constant 0 : index
    %c0_9 = arith.constant 0 : index
    %44 = vector.load %arg2[%c0_8, %c0_9] : memref<8x73xbf16, #tpu.memory_space<vmem>>, vector<8x73xbf16>
    %cst_10 = arith.constant dense<0.000000e+00> : vector<8x256xf32>
    %45 = tpu.matmul %44, %43, %cst_10 {dimension_numbers = #tpu.dot_dimension_numbers<[1], [0], [0], [1], [0, 0, 1, 1], [], []>} : vector<8x73xbf16>, vector<73x256xbf16>, vector<8x256xf32> -> vector<8x256xf32>
    %cst_11 = arith.constant 0.000000e+00 : f32
    %46 = vector.broadcast %cst_11 : f32 to vector<8x256xf32>
    %47 = arith.maximumf %45, %46 : vector<8x256xf32>
    %c0_12 = arith.constant 0 : index
    %c0_13 = arith.constant 0 : index
    %48 = vector.load %arg13[%c0_12, %c0_13] : memref<9x256xf32, #tpu.memory_space<vmem>>, vector<9x256xf32>
    %c17_i32_14 = arith.constant 17 : i32
    %49 = tpu.dynamic_rotate %47 by %c17_i32_14 dim 1 : vector<8x256xf32>, i32 -> vector<8x256xf32>
    %50 = vector.extract_strided_slice %48 {offsets = [0, 0], sizes = [1, 256], strides = [1, 1]} : vector<9x256xf32> to vector<1x256xf32>
    %51 = vector.broadcast %50 : vector<1x256xf32> to vector<8x256xf32>
    %52 = arith.mulf %49, %51 : vector<8x256xf32>
    %c16_i32_15 = arith.constant 16 : i32
    %53 = tpu.dynamic_rotate %47 by %c16_i32_15 dim 1 : vector<8x256xf32>, i32 -> vector<8x256xf32>
    %54 = vector.extract_strided_slice %48 {offsets = [1, 0], sizes = [1, 256], strides = [1, 1]} : vector<9x256xf32> to vector<1x256xf32>
    %55 = vector.broadcast %54 : vector<1x256xf32> to vector<8x256xf32>
    %56 = arith.mulf %53, %55 : vector<8x256xf32>
    %c15_i32_16 = arith.constant 15 : i32
    %57 = tpu.dynamic_rotate %47 by %c15_i32_16 dim 1 : vector<8x256xf32>, i32 -> vector<8x256xf32>
    %58 = vector.extract_strided_slice %48 {offsets = [2, 0], sizes = [1, 256], strides = [1, 1]} : vector<9x256xf32> to vector<1x256xf32>
    %59 = vector.broadcast %58 : vector<1x256xf32> to vector<8x256xf32>
    %60 = arith.mulf %57, %59 : vector<8x256xf32>
    %c1_i32_17 = arith.constant 1 : i32
    %61 = tpu.dynamic_rotate %47 by %c1_i32_17 dim 1 : vector<8x256xf32>, i32 -> vector<8x256xf32>
    %62 = vector.extract_strided_slice %48 {offsets = [3, 0], sizes = [1, 256], strides = [1, 1]} : vector<9x256xf32> to vector<1x256xf32>
    %63 = vector.broadcast %62 : vector<1x256xf32> to vector<8x256xf32>
    %64 = arith.mulf %61, %63 : vector<8x256xf32>
    %65 = vector.extract_strided_slice %48 {offsets = [4, 0], sizes = [1, 256], strides = [1, 1]} : vector<9x256xf32> to vector<1x256xf32>
    %66 = vector.broadcast %65 : vector<1x256xf32> to vector<8x256xf32>
    %67 = arith.mulf %47, %66 : vector<8x256xf32>
    %c255_i32_18 = arith.constant 255 : i32
    %68 = tpu.dynamic_rotate %47 by %c255_i32_18 dim 1 : vector<8x256xf32>, i32 -> vector<8x256xf32>
    %69 = vector.extract_strided_slice %48 {offsets = [5, 0], sizes = [1, 256], strides = [1, 1]} : vector<9x256xf32> to vector<1x256xf32>
    %70 = vector.broadcast %69 : vector<1x256xf32> to vector<8x256xf32>
    %71 = arith.mulf %68, %70 : vector<8x256xf32>
    %c241_i32_19 = arith.constant 241 : i32
    %72 = tpu.dynamic_rotate %47 by %c241_i32_19 dim 1 : vector<8x256xf32>, i32 -> vector<8x256xf32>
    %73 = vector.extract_strided_slice %48 {offsets = [6, 0], sizes = [1, 256], strides = [1, 1]} : vector<9x256xf32> to vector<1x256xf32>
    %74 = vector.broadcast %73 : vector<1x256xf32> to vector<8x256xf32>
    %75 = arith.mulf %72, %74 : vector<8x256xf32>
    %c240_i32_20 = arith.constant 240 : i32
    %76 = tpu.dynamic_rotate %47 by %c240_i32_20 dim 1 : vector<8x256xf32>, i32 -> vector<8x256xf32>
    %77 = vector.extract_strided_slice %48 {offsets = [7, 0], sizes = [1, 256], strides = [1, 1]} : vector<9x256xf32> to vector<1x256xf32>
    %78 = vector.broadcast %77 : vector<1x256xf32> to vector<8x256xf32>
    %79 = arith.mulf %76, %78 : vector<8x256xf32>
    %c239_i32_21 = arith.constant 239 : i32
    %80 = tpu.dynamic_rotate %47 by %c239_i32_21 dim 1 : vector<8x256xf32>, i32 -> vector<8x256xf32>
    %81 = vector.extract_strided_slice %48 {offsets = [8, 0], sizes = [1, 256], strides = [1, 1]} : vector<9x256xf32> to vector<1x256xf32>
    %82 = vector.broadcast %81 : vector<1x256xf32> to vector<8x256xf32>
    %83 = arith.mulf %80, %82 : vector<8x256xf32>
    %84 = tpu.concatenate %52, %56, %60, %64, %67, %71, %75, %79, %83, %1 in 0 : vector<8x256xf32>, vector<8x256xf32>, vector<8x256xf32>, vector<8x256xf32>, vector<8x256xf32>, vector<8x256xf32>, vector<8x256xf32>, vector<8x256xf32>, vector<8x256xf32>, vector<1x256xf32> -> vector<73x256xf32>
    %85 = arith.truncf %84 : vector<73x256xf32> to vector<73x256xbf16>
    %c0_22 = arith.constant 0 : index
    %c0_23 = arith.constant 0 : index
    %86 = vector.load %arg3[%c0_22, %c0_23] : memref<16x73xbf16, #tpu.memory_space<vmem>>, vector<16x73xbf16>
    %cst_24 = arith.constant dense<0.000000e+00> : vector<16x256xf32>
    %87 = tpu.matmul %86, %85, %cst_24 {dimension_numbers = #tpu.dot_dimension_numbers<[1], [0], [0], [1], [0, 0, 1, 1], [], []>} : vector<16x73xbf16>, vector<73x256xbf16>, vector<16x256xf32> -> vector<16x256xf32>
    %cst_25 = arith.constant 0.000000e+00 : f32
    %88 = vector.broadcast %cst_25 : f32 to vector<16x256xf32>
    %89 = arith.maximumf %87, %88 : vector<16x256xf32>
    %90 = arith.truncf %89 : vector<16x256xf32> to vector<16x256xbf16>
    %c0_26 = arith.constant 0 : index
    %c0_27 = arith.constant 0 : index
    %91 = vector.load %arg10[%c0_26, %c0_27] : memref<256x128xbf16, #tpu.memory_space<vmem>>, vector<256x128xbf16>
    %cst_28 = arith.constant dense<0.000000e+00> : vector<16x128xf32>
    %92 = tpu.matmul %90, %91, %cst_28 {dimension_numbers = #tpu.dot_dimension_numbers<[1], [0], [0], [1], [0, 0, 1, 1], [], []>} : vector<16x256xbf16>, vector<256x128xbf16>, vector<16x128xf32> -> vector<16x128xf32>
    %c0_29 = arith.constant 0 : index
    %c0_30 = arith.constant 0 : index
    %93 = vector.load %arg14[%c0_29, %c0_30] : memref<9x128xf32, #tpu.memory_space<vmem>>, vector<9x128xf32>
    %c9_i32 = arith.constant 9 : i32
    %94 = tpu.dynamic_rotate %92 by %c9_i32 dim 1 : vector<16x128xf32>, i32 -> vector<16x128xf32>
    %95 = vector.extract_strided_slice %93 {offsets = [0, 0], sizes = [1, 128], strides = [1, 1]} : vector<9x128xf32> to vector<1x128xf32>
    %96 = vector.broadcast %95 : vector<1x128xf32> to vector<16x128xf32>
    %97 = arith.mulf %94, %96 : vector<16x128xf32>
    %c8_i32 = arith.constant 8 : i32
    %98 = tpu.dynamic_rotate %92 by %c8_i32 dim 1 : vector<16x128xf32>, i32 -> vector<16x128xf32>
    %99 = vector.extract_strided_slice %93 {offsets = [1, 0], sizes = [1, 128], strides = [1, 1]} : vector<9x128xf32> to vector<1x128xf32>
    %100 = vector.broadcast %99 : vector<1x128xf32> to vector<16x128xf32>
    %101 = arith.mulf %98, %100 : vector<16x128xf32>
    %c7_i32 = arith.constant 7 : i32
    %102 = tpu.dynamic_rotate %92 by %c7_i32 dim 1 : vector<16x128xf32>, i32 -> vector<16x128xf32>
    %103 = vector.extract_strided_slice %93 {offsets = [2, 0], sizes = [1, 128], strides = [1, 1]} : vector<9x128xf32> to vector<1x128xf32>
    %104 = vector.broadcast %103 : vector<1x128xf32> to vector<16x128xf32>
    %105 = arith.mulf %102, %104 : vector<16x128xf32>
    %c1_i32_31 = arith.constant 1 : i32
    %106 = tpu.dynamic_rotate %92 by %c1_i32_31 dim 1 : vector<16x128xf32>, i32 -> vector<16x128xf32>
    %107 = vector.extract_strided_slice %93 {offsets = [3, 0], sizes = [1, 128], strides = [1, 1]} : vector<9x128xf32> to vector<1x128xf32>
    %108 = vector.broadcast %107 : vector<1x128xf32> to vector<16x128xf32>
    %109 = arith.mulf %106, %108 : vector<16x128xf32>
    %110 = vector.extract_strided_slice %93 {offsets = [4, 0], sizes = [1, 128], strides = [1, 1]} : vector<9x128xf32> to vector<1x128xf32>
    %111 = vector.broadcast %110 : vector<1x128xf32> to vector<16x128xf32>
    %112 = arith.mulf %92, %111 : vector<16x128xf32>
    %c127_i32 = arith.constant 127 : i32
    %113 = tpu.dynamic_rotate %92 by %c127_i32 dim 1 : vector<16x128xf32>, i32 -> vector<16x128xf32>
    %114 = vector.extract_strided_slice %93 {offsets = [5, 0], sizes = [1, 128], strides = [1, 1]} : vector<9x128xf32> to vector<1x128xf32>
    %115 = vector.broadcast %114 : vector<1x128xf32> to vector<16x128xf32>
    %116 = arith.mulf %113, %115 : vector<16x128xf32>
    %c121_i32 = arith.constant 121 : i32
    %117 = tpu.dynamic_rotate %92 by %c121_i32 dim 1 : vector<16x128xf32>, i32 -> vector<16x128xf32>
    %118 = vector.extract_strided_slice %93 {offsets = [6, 0], sizes = [1, 128], strides = [1, 1]} : vector<9x128xf32> to vector<1x128xf32>
    %119 = vector.broadcast %118 : vector<1x128xf32> to vector<16x128xf32>
    %120 = arith.mulf %117, %119 : vector<16x128xf32>
    %c120_i32 = arith.constant 120 : i32
    %121 = tpu.dynamic_rotate %92 by %c120_i32 dim 1 : vector<16x128xf32>, i32 -> vector<16x128xf32>
    %122 = vector.extract_strided_slice %93 {offsets = [7, 0], sizes = [1, 128], strides = [1, 1]} : vector<9x128xf32> to vector<1x128xf32>
    %123 = vector.broadcast %122 : vector<1x128xf32> to vector<16x128xf32>
    %124 = arith.mulf %121, %123 : vector<16x128xf32>
    %c119_i32 = arith.constant 119 : i32
    %125 = tpu.dynamic_rotate %92 by %c119_i32 dim 1 : vector<16x128xf32>, i32 -> vector<16x128xf32>
    %126 = vector.extract_strided_slice %93 {offsets = [8, 0], sizes = [1, 128], strides = [1, 1]} : vector<9x128xf32> to vector<1x128xf32>
    %127 = vector.broadcast %126 : vector<1x128xf32> to vector<16x128xf32>
    %128 = arith.mulf %125, %127 : vector<16x128xf32>
    %129 = tpu.concatenate %97, %101, %105, %109, %112, %116, %120, %124, %128, %2 in 0 : vector<16x128xf32>, vector<16x128xf32>, vector<16x128xf32>, vector<16x128xf32>, vector<16x128xf32>, vector<16x128xf32>, vector<16x128xf32>, vector<16x128xf32>, vector<16x128xf32>, vector<1x128xf32> -> vector<145x128xf32>
    %130 = arith.truncf %129 : vector<145x128xf32> to vector<145x128xbf16>
    %c0_32 = arith.constant 0 : index
    %c0_33 = arith.constant 0 : index
    %131 = vector.load %arg4[%c0_32, %c0_33] : memref<32x145xbf16, #tpu.memory_space<vmem>>, vector<32x145xbf16>
    %cst_34 = arith.constant dense<0.000000e+00> : vector<32x128xf32>
    %132 = tpu.matmul %131, %130, %cst_34 {dimension_numbers = #tpu.dot_dimension_numbers<[1], [0], [0], [1], [0, 0, 1, 1], [], []>} : vector<32x145xbf16>, vector<145x128xbf16>, vector<32x128xf32> -> vector<32x128xf32>
    %cst_35 = arith.constant 0.000000e+00 : f32
    %133 = vector.broadcast %cst_35 : f32 to vector<32x128xf32>
    %134 = arith.maximumf %132, %133 : vector<32x128xf32>
    %135 = arith.truncf %134 : vector<32x128xf32> to vector<32x128xbf16>
    %c0_36 = arith.constant 0 : index
    %c0_37 = arith.constant 0 : index
    %136 = vector.load %arg11[%c0_36, %c0_37] : memref<128x128xbf16, #tpu.memory_space<vmem>>, vector<128x128xbf16>
    %cst_38 = arith.constant dense<0.000000e+00> : vector<32x128xf32>
    %137 = tpu.matmul %135, %136, %cst_38 {dimension_numbers = #tpu.dot_dimension_numbers<[1], [0], [0], [1], [0, 0, 1, 1], [], []>} : vector<32x128xbf16>, vector<128x128xbf16>, vector<32x128xf32> -> vector<32x128xf32>
    %138 = tpu.concatenate %137, %2 in 0 : vector<32x128xf32>, vector<1x128xf32> -> vector<33x128xf32>
    %139 = arith.truncf %138 : vector<33x128xf32> to vector<33x128xbf16>
    %c0_39 = arith.constant 0 : index
    %c0_40 = arith.constant 0 : index
    %140 = vector.load %arg5[%c0_39, %c0_40] : memref<16x33xbf16, #tpu.memory_space<vmem>>, vector<16x33xbf16>
    %cst_41 = arith.constant dense<0.000000e+00> : vector<16x128xf32>
    %141 = tpu.matmul %140, %139, %cst_41 {dimension_numbers = #tpu.dot_dimension_numbers<[1], [0], [0], [1], [0, 0, 1, 1], [], []>} : vector<16x33xbf16>, vector<33x128xbf16>, vector<16x128xf32> -> vector<16x128xf32>
    %cst_42 = arith.constant 0.000000e+00 : f32
    %142 = vector.broadcast %cst_42 : f32 to vector<16x128xf32>
    %143 = arith.maximumf %141, %142 : vector<16x128xf32>
    %c0_43 = arith.constant 0 : index
    %c0_44 = arith.constant 0 : index
    %144 = vector.load %arg15[%c0_43, %c0_44] : memref<9x128xf32, #tpu.memory_space<vmem>>, vector<9x128xf32>
    %c5_i32 = arith.constant 5 : i32
    %145 = tpu.dynamic_rotate %143 by %c5_i32 dim 1 : vector<16x128xf32>, i32 -> vector<16x128xf32>
    %146 = vector.extract_strided_slice %144 {offsets = [0, 0], sizes = [1, 128], strides = [1, 1]} : vector<9x128xf32> to vector<1x128xf32>
    %147 = vector.broadcast %146 : vector<1x128xf32> to vector<16x128xf32>
    %148 = arith.mulf %145, %147 : vector<16x128xf32>
    %c4_i32 = arith.constant 4 : i32
    %149 = tpu.dynamic_rotate %143 by %c4_i32 dim 1 : vector<16x128xf32>, i32 -> vector<16x128xf32>
    %150 = vector.extract_strided_slice %144 {offsets = [1, 0], sizes = [1, 128], strides = [1, 1]} : vector<9x128xf32> to vector<1x128xf32>
    %151 = vector.broadcast %150 : vector<1x128xf32> to vector<16x128xf32>
    %152 = arith.mulf %149, %151 : vector<16x128xf32>
    %c3_i32 = arith.constant 3 : i32
    %153 = tpu.dynamic_rotate %143 by %c3_i32 dim 1 : vector<16x128xf32>, i32 -> vector<16x128xf32>
    %154 = vector.extract_strided_slice %144 {offsets = [2, 0], sizes = [1, 128], strides = [1, 1]} : vector<9x128xf32> to vector<1x128xf32>
    %155 = vector.broadcast %154 : vector<1x128xf32> to vector<16x128xf32>
    %156 = arith.mulf %153, %155 : vector<16x128xf32>
    %c1_i32_45 = arith.constant 1 : i32
    %157 = tpu.dynamic_rotate %143 by %c1_i32_45 dim 1 : vector<16x128xf32>, i32 -> vector<16x128xf32>
    %158 = vector.extract_strided_slice %144 {offsets = [3, 0], sizes = [1, 128], strides = [1, 1]} : vector<9x128xf32> to vector<1x128xf32>
    %159 = vector.broadcast %158 : vector<1x128xf32> to vector<16x128xf32>
    %160 = arith.mulf %157, %159 : vector<16x128xf32>
    %161 = vector.extract_strided_slice %144 {offsets = [4, 0], sizes = [1, 128], strides = [1, 1]} : vector<9x128xf32> to vector<1x128xf32>
    %162 = vector.broadcast %161 : vector<1x128xf32> to vector<16x128xf32>
    %163 = arith.mulf %143, %162 : vector<16x128xf32>
    %c127_i32_46 = arith.constant 127 : i32
    %164 = tpu.dynamic_rotate %143 by %c127_i32_46 dim 1 : vector<16x128xf32>, i32 -> vector<16x128xf32>
    %165 = vector.extract_strided_slice %144 {offsets = [5, 0], sizes = [1, 128], strides = [1, 1]} : vector<9x128xf32> to vector<1x128xf32>
    %166 = vector.broadcast %165 : vector<1x128xf32> to vector<16x128xf32>
    %167 = arith.mulf %164, %166 : vector<16x128xf32>
    %c125_i32 = arith.constant 125 : i32
    %168 = tpu.dynamic_rotate %143 by %c125_i32 dim 1 : vector<16x128xf32>, i32 -> vector<16x128xf32>
    %169 = vector.extract_strided_slice %144 {offsets = [6, 0], sizes = [1, 128], strides = [1, 1]} : vector<9x128xf32> to vector<1x128xf32>
    %170 = vector.broadcast %169 : vector<1x128xf32> to vector<16x128xf32>
    %171 = arith.mulf %168, %170 : vector<16x128xf32>
    %c124_i32 = arith.constant 124 : i32
    %172 = tpu.dynamic_rotate %143 by %c124_i32 dim 1 : vector<16x128xf32>, i32 -> vector<16x128xf32>
    %173 = vector.extract_strided_slice %144 {offsets = [7, 0], sizes = [1, 128], strides = [1, 1]} : vector<9x128xf32> to vector<1x128xf32>
    %174 = vector.broadcast %173 : vector<1x128xf32> to vector<16x128xf32>
    %175 = arith.mulf %172, %174 : vector<16x128xf32>
    %c123_i32 = arith.constant 123 : i32
    %176 = tpu.dynamic_rotate %143 by %c123_i32 dim 1 : vector<16x128xf32>, i32 -> vector<16x128xf32>
    %177 = vector.extract_strided_slice %144 {offsets = [8, 0], sizes = [1, 128], strides = [1, 1]} : vector<9x128xf32> to vector<1x128xf32>
    %178 = vector.broadcast %177 : vector<1x128xf32> to vector<16x128xf32>
    %179 = arith.mulf %176, %178 : vector<16x128xf32>
    %180 = tpu.concatenate %148, %152, %156, %160, %163, %167, %171, %175, %179, %2 in 0 : vector<16x128xf32>, vector<16x128xf32>, vector<16x128xf32>, vector<16x128xf32>, vector<16x128xf32>, vector<16x128xf32>, vector<16x128xf32>, vector<16x128xf32>, vector<16x128xf32>, vector<1x128xf32> -> vector<145x128xf32>
    %181 = arith.truncf %180 : vector<145x128xf32> to vector<145x128xbf16>
    %c0_47 = arith.constant 0 : index
    %c0_48 = arith.constant 0 : index
    %182 = vector.load %arg6[%c0_47, %c0_48] : memref<32x145xbf16, #tpu.memory_space<vmem>>, vector<32x145xbf16>
    %cst_49 = arith.constant dense<0.000000e+00> : vector<32x128xf32>
    %183 = tpu.matmul %182, %181, %cst_49 {dimension_numbers = #tpu.dot_dimension_numbers<[1], [0], [0], [1], [0, 0, 1, 1], [], []>} : vector<32x145xbf16>, vector<145x128xbf16>, vector<32x128xf32> -> vector<32x128xf32>
    %cst_50 = arith.constant 0.000000e+00 : f32
    %184 = vector.broadcast %cst_50 : f32 to vector<32x128xf32>
    %185 = arith.maximumf %183, %184 : vector<32x128xf32>
    %186 = arith.truncf %185 : vector<32x128xf32> to vector<32x128xbf16>
    %c0_51 = arith.constant 0 : index
    %c0_52 = arith.constant 0 : index
    %187 = vector.load %arg12[%c0_51, %c0_52] : memref<128x128xbf16, #tpu.memory_space<vmem>>, vector<128x128xbf16>
    %cst_53 = arith.constant dense<0.000000e+00> : vector<32x128xf32>
    %188 = tpu.matmul %186, %187, %cst_53 {dimension_numbers = #tpu.dot_dimension_numbers<[1], [0], [0], [1], [0, 0, 1, 1], [], []>} : vector<32x128xbf16>, vector<128x128xbf16>, vector<32x128xf32> -> vector<32x128xf32>
    %189 = vector.extract_strided_slice %5 {offsets = [0, 0, 0], sizes = [1, 8, 128], strides = [1, 1, 1]} : vector<3x8x128xf32> to vector<1x8x128xf32>
    %190 = vector.shape_cast %189 : vector<1x8x128xf32> to vector<8x128xf32>
    %c0_54 = arith.constant 0 : index
    %c0_55 = arith.constant 0 : index
    %191 = vector.load %arg14[%c0_54, %c0_55] : memref<9x128xf32, #tpu.memory_space<vmem>>, vector<9x128xf32>
    %c9_i32_56 = arith.constant 9 : i32
    %192 = tpu.dynamic_rotate %92 by %c9_i32_56 dim 1 : vector<16x128xf32>, i32 -> vector<16x128xf32>
    %193 = vector.extract_strided_slice %191 {offsets = [0, 0], sizes = [1, 128], strides = [1, 1]} : vector<9x128xf32> to vector<1x128xf32>
    %194 = vector.broadcast %193 : vector<1x128xf32> to vector<16x128xf32>
    %195 = arith.mulf %192, %194 : vector<16x128xf32>
    %c8_i32_57 = arith.constant 8 : i32
    %196 = tpu.dynamic_rotate %92 by %c8_i32_57 dim 1 : vector<16x128xf32>, i32 -> vector<16x128xf32>
    %197 = vector.extract_strided_slice %191 {offsets = [1, 0], sizes = [1, 128], strides = [1, 1]} : vector<9x128xf32> to vector<1x128xf32>
    %198 = vector.broadcast %197 : vector<1x128xf32> to vector<16x128xf32>
    %199 = arith.mulf %196, %198 : vector<16x128xf32>
    %c7_i32_58 = arith.constant 7 : i32
    %200 = tpu.dynamic_rotate %92 by %c7_i32_58 dim 1 : vector<16x128xf32>, i32 -> vector<16x128xf32>
    %201 = vector.extract_strided_slice %191 {offsets = [2, 0], sizes = [1, 128], strides = [1, 1]} : vector<9x128xf32> to vector<1x128xf32>
    %202 = vector.broadcast %201 : vector<1x128xf32> to vector<16x128xf32>
    %203 = arith.mulf %200, %202 : vector<16x128xf32>
    %c1_i32_59 = arith.constant 1 : i32
    %204 = tpu.dynamic_rotate %92 by %c1_i32_59 dim 1 : vector<16x128xf32>, i32 -> vector<16x128xf32>
    %205 = vector.extract_strided_slice %191 {offsets = [3, 0], sizes = [1, 128], strides = [1, 1]} : vector<9x128xf32> to vector<1x128xf32>
    %206 = vector.broadcast %205 : vector<1x128xf32> to vector<16x128xf32>
    %207 = arith.mulf %204, %206 : vector<16x128xf32>
    %208 = vector.extract_strided_slice %191 {offsets = [4, 0], sizes = [1, 128], strides = [1, 1]} : vector<9x128xf32> to vector<1x128xf32>
    %209 = vector.broadcast %208 : vector<1x128xf32> to vector<16x128xf32>
    %210 = arith.mulf %92, %209 : vector<16x128xf32>
    %c127_i32_60 = arith.constant 127 : i32
    %211 = tpu.dynamic_rotate %92 by %c127_i32_60 dim 1 : vector<16x128xf32>, i32 -> vector<16x128xf32>
    %212 = vector.extract_strided_slice %191 {offsets = [5, 0], sizes = [1, 128], strides = [1, 1]} : vector<9x128xf32> to vector<1x128xf32>
    %213 = vector.broadcast %212 : vector<1x128xf32> to vector<16x128xf32>
    %214 = arith.mulf %211, %213 : vector<16x128xf32>
    %c121_i32_61 = arith.constant 121 : i32
    %215 = tpu.dynamic_rotate %92 by %c121_i32_61 dim 1 : vector<16x128xf32>, i32 -> vector<16x128xf32>
    %216 = vector.extract_strided_slice %191 {offsets = [6, 0], sizes = [1, 128], strides = [1, 1]} : vector<9x128xf32> to vector<1x128xf32>
    %217 = vector.broadcast %216 : vector<1x128xf32> to vector<16x128xf32>
    %218 = arith.mulf %215, %217 : vector<16x128xf32>
    %c120_i32_62 = arith.constant 120 : i32
    %219 = tpu.dynamic_rotate %92 by %c120_i32_62 dim 1 : vector<16x128xf32>, i32 -> vector<16x128xf32>
    %220 = vector.extract_strided_slice %191 {offsets = [7, 0], sizes = [1, 128], strides = [1, 1]} : vector<9x128xf32> to vector<1x128xf32>
    %221 = vector.broadcast %220 : vector<1x128xf32> to vector<16x128xf32>
    %222 = arith.mulf %219, %221 : vector<16x128xf32>
    %c119_i32_63 = arith.constant 119 : i32
    %223 = tpu.dynamic_rotate %92 by %c119_i32_63 dim 1 : vector<16x128xf32>, i32 -> vector<16x128xf32>
    %224 = vector.extract_strided_slice %191 {offsets = [8, 0], sizes = [1, 128], strides = [1, 1]} : vector<9x128xf32> to vector<1x128xf32>
    %225 = vector.broadcast %224 : vector<1x128xf32> to vector<16x128xf32>
    %226 = arith.mulf %223, %225 : vector<16x128xf32>
    %227 = tpu.concatenate %195, %199, %203, %207, %210, %214, %218, %222, %226, %2 in 0 : vector<16x128xf32>, vector<16x128xf32>, vector<16x128xf32>, vector<16x128xf32>, vector<16x128xf32>, vector<16x128xf32>, vector<16x128xf32>, vector<16x128xf32>, vector<16x128xf32>, vector<1x128xf32> -> vector<145x128xf32>
    %228 = arith.truncf %227 : vector<145x128xf32> to vector<145x128xbf16>
    %c0_64 = arith.constant 0 : index
    %c0_65 = arith.constant 0 : index
    %229 = vector.load %arg7[%c0_64, %c0_65] : memref<14x145xbf16, #tpu.memory_space<vmem>>, vector<14x145xbf16>
    %cst_66 = arith.constant dense<0.000000e+00> : vector<14x128xf32>
    %230 = tpu.matmul %229, %228, %cst_66 {dimension_numbers = #tpu.dot_dimension_numbers<[1], [0], [0], [1], [0, 0, 1, 1], [], []>} : vector<14x145xbf16>, vector<145x128xbf16>, vector<14x128xf32> -> vector<14x128xf32>
    %c64_i32 = arith.constant 64 : i32
    %231 = vector.broadcast %c64_i32 : i32 to vector<1x128xi32>
    %232 = arith.cmpi slt, %0, %231 : vector<1x128xi32>
    %cst_67 = arith.constant 0.000000e+00 : f32
    %233 = vector.broadcast %cst_67 : f32 to vector<2x128xf32>
    %234 = vector.extract_strided_slice %230 {offsets = [0, 0], sizes = [3, 128], strides = [1, 1]} : vector<14x128xf32> to vector<3x128xf32>
    %cst_68 = arith.constant dense<0xFF800000> : vector<128xf32>
    %235 = vector.multi_reduction <maximumf>, %234, %cst_68 [0] : vector<3x128xf32> to vector<128xf32>
    %236 = vector.shape_cast %235 : vector<128xf32> to vector<1x128xf32>
    %237 = vector.broadcast %236 : vector<1x128xf32> to vector<3x128xf32>
    %238 = arith.subf %234, %237 : vector<3x128xf32>
    %239 = math.exp %238 : vector<3x128xf32>
    %cst_69 = arith.constant dense<0.000000e+00> : vector<128xf32>
    %240 = vector.multi_reduction <add>, %239, %cst_69 [0] : vector<3x128xf32> to vector<128xf32>
    %241 = vector.shape_cast %240 : vector<128xf32> to vector<1x128xf32>
    %242 = tpu.reciprocal %241 {approx = true} : vector<1x128xf32> -> vector<1x128xf32>
    %243 = vector.broadcast %242 : vector<1x128xf32> to vector<3x128xf32>
    %244 = arith.mulf %239, %243 : vector<3x128xf32>
    %245 = vector.extract_strided_slice %230 {offsets = [3, 0], sizes = [3, 128], strides = [1, 1]} : vector<14x128xf32> to vector<3x128xf32>
    %cst_70 = arith.constant dense<0xFF800000> : vector<128xf32>
    %246 = vector.multi_reduction <maximumf>, %245, %cst_70 [0] : vector<3x128xf32> to vector<128xf32>
    %247 = vector.shape_cast %246 : vector<128xf32> to vector<1x128xf32>
    %248 = vector.broadcast %247 : vector<1x128xf32> to vector<3x128xf32>
    %249 = arith.subf %245, %248 : vector<3x128xf32>
    %250 = math.exp %249 : vector<3x128xf32>
    %cst_71 = arith.constant dense<0.000000e+00> : vector<128xf32>
    %251 = vector.multi_reduction <add>, %250, %cst_71 [0] : vector<3x128xf32> to vector<128xf32>
    %252 = vector.shape_cast %251 : vector<128xf32> to vector<1x128xf32>
    %253 = tpu.reciprocal %252 {approx = true} : vector<1x128xf32> -> vector<1x128xf32>
    %254 = vector.broadcast %253 : vector<1x128xf32> to vector<3x128xf32>
    %255 = arith.mulf %250, %254 : vector<3x128xf32>
    %256 = tpu.concatenate %244, %255, %233 in 0 : vector<3x128xf32>, vector<3x128xf32>, vector<2x128xf32> -> vector<8x128xf32>
    %257 = vector.extract_strided_slice %230 {offsets = [6, 0], sizes = [4, 128], strides = [1, 1]} : vector<14x128xf32> to vector<4x128xf32>
    %258 = vector.extract_strided_slice %190 {offsets = [0, 0], sizes = [4, 128], strides = [1, 1]} : vector<8x128xf32> to vector<4x128xf32>
    %259 = vector.extract_strided_slice %257 {offsets = [0, 0], sizes = [2, 128], strides = [1, 1]} : vector<4x128xf32> to vector<2x128xf32>
    %cst_72 = arith.constant 1.000000e-01 : f32
    %260 = vector.broadcast %cst_72 : f32 to vector<2x128xf32>
    %261 = arith.mulf %259, %260 : vector<2x128xf32>
    %262 = vector.extract_strided_slice %258 {offsets = [2, 0], sizes = [2, 128], strides = [1, 1]} : vector<4x128xf32> to vector<2x128xf32>
    %263 = arith.mulf %261, %262 : vector<2x128xf32>
    %264 = vector.extract_strided_slice %258 {offsets = [0, 0], sizes = [2, 128], strides = [1, 1]} : vector<4x128xf32> to vector<2x128xf32>
    %265 = arith.addf %263, %264 : vector<2x128xf32>
    %266 = vector.extract_strided_slice %257 {offsets = [2, 0], sizes = [2, 128], strides = [1, 1]} : vector<4x128xf32> to vector<2x128xf32>
    %cst_73 = arith.constant 2.000000e-01 : f32
    %267 = vector.broadcast %cst_73 : f32 to vector<2x128xf32>
    %268 = arith.mulf %266, %267 : vector<2x128xf32>
    %269 = math.exp %268 : vector<2x128xf32>
    %270 = vector.extract_strided_slice %258 {offsets = [2, 0], sizes = [2, 128], strides = [1, 1]} : vector<4x128xf32> to vector<2x128xf32>
    %271 = arith.mulf %269, %270 : vector<2x128xf32>
    %cst_74 = arith.constant 5.000000e-01 : f32
    %272 = vector.broadcast %cst_74 : f32 to vector<2x128xf32>
    %273 = arith.mulf %272, %271 : vector<2x128xf32>
    %274 = arith.subf %265, %273 : vector<2x128xf32>
    %cst_75 = arith.constant 5.000000e-01 : f32
    %275 = vector.broadcast %cst_75 : f32 to vector<2x128xf32>
    %276 = arith.mulf %275, %271 : vector<2x128xf32>
    %277 = arith.addf %265, %276 : vector<2x128xf32>
    %278 = tpu.concatenate %274, %277 in 0 : vector<2x128xf32>, vector<2x128xf32> -> vector<4x128xf32>
    %279 = vector.extract_strided_slice %230 {offsets = [10, 0], sizes = [4, 128], strides = [1, 1]} : vector<14x128xf32> to vector<4x128xf32>
    %280 = vector.extract_strided_slice %190 {offsets = [4, 0], sizes = [4, 128], strides = [1, 1]} : vector<8x128xf32> to vector<4x128xf32>
    %281 = vector.extract_strided_slice %279 {offsets = [0, 0], sizes = [2, 128], strides = [1, 1]} : vector<4x128xf32> to vector<2x128xf32>
    %cst_76 = arith.constant 1.000000e-01 : f32
    %282 = vector.broadcast %cst_76 : f32 to vector<2x128xf32>
    %283 = arith.mulf %281, %282 : vector<2x128xf32>
    %284 = vector.extract_strided_slice %280 {offsets = [2, 0], sizes = [2, 128], strides = [1, 1]} : vector<4x128xf32> to vector<2x128xf32>
    %285 = arith.mulf %283, %284 : vector<2x128xf32>
    %286 = vector.extract_strided_slice %280 {offsets = [0, 0], sizes = [2, 128], strides = [1, 1]} : vector<4x128xf32> to vector<2x128xf32>
    %287 = arith.addf %285, %286 : vector<2x128xf32>
    %288 = vector.extract_strided_slice %279 {offsets = [2, 0], sizes = [2, 128], strides = [1, 1]} : vector<4x128xf32> to vector<2x128xf32>
    %cst_77 = arith.constant 2.000000e-01 : f32
    %289 = vector.broadcast %cst_77 : f32 to vector<2x128xf32>
    %290 = arith.mulf %288, %289 : vector<2x128xf32>
    %291 = math.exp %290 : vector<2x128xf32>
    %292 = vector.extract_strided_slice %280 {offsets = [2, 0], sizes = [2, 128], strides = [1, 1]} : vector<4x128xf32> to vector<2x128xf32>
    %293 = arith.mulf %291, %292 : vector<2x128xf32>
    %cst_78 = arith.constant 5.000000e-01 : f32
    %294 = vector.broadcast %cst_78 : f32 to vector<2x128xf32>
    %295 = arith.mulf %294, %293 : vector<2x128xf32>
    %296 = arith.subf %287, %295 : vector<2x128xf32>
    %cst_79 = arith.constant 5.000000e-01 : f32
    %297 = vector.broadcast %cst_79 : f32 to vector<2x128xf32>
    %298 = arith.mulf %297, %293 : vector<2x128xf32>
    %299 = arith.addf %287, %298 : vector<2x128xf32>
    %300 = tpu.concatenate %296, %299 in 0 : vector<2x128xf32>, vector<2x128xf32> -> vector<4x128xf32>
    %301 = tpu.concatenate %278, %300 in 0 : vector<4x128xf32>, vector<4x128xf32> -> vector<8x128xf32>
    %302 = tpu.concatenate %256, %301 in 0 : vector<8x128xf32>, vector<8x128xf32> -> vector<16x128xf32>
    %cst_80 = arith.constant 0.000000e+00 : f32
    %303 = vector.shape_cast %232 : vector<1x128xi1> to vector<1x128xi1>
    %304 = vector.broadcast %303 : vector<1x128xi1> to vector<16x128xi1>
    %305 = vector.broadcast %cst_80 : f32 to vector<16x128xf32>
    %306 = arith.select %304, %302, %305 : vector<16x128xi1>, vector<16x128xf32>
    %c0_81 = arith.constant 0 : index
    %c0_82 = arith.constant 0 : index
    %c0_83 = arith.constant 0 : index
    %c0_84 = arith.constant 0 : index
    %307 = vector.load %arg18[%c0_81, %c0_82, %c0_83, %c0_84] : memref<1x3x16x128xf32, #tpu.memory_space<vmem>>, vector<1x1x16x128xf32>
    %308 = vector.shape_cast %307 : vector<1x1x16x128xf32> to vector<16x128xf32>
    %309 = vector.shape_cast %306 : vector<16x128xf32> to vector<1x1x16x128xf32>
    tpu.vector_store %arg18[%c0_81, %c0_82, %c0_83, %c0_84], %309 {strides = array<i32>} : memref<1x3x16x128xf32, #tpu.memory_space<vmem>>, vector<1x1x16x128xf32>,
    %310 = vector.extract_strided_slice %5 {offsets = [1, 0, 0], sizes = [1, 8, 128], strides = [1, 1, 1]} : vector<3x8x128xf32> to vector<1x8x128xf32>
    %311 = vector.shape_cast %310 : vector<1x8x128xf32> to vector<8x128xf32>
    %c0_85 = arith.constant 0 : index
    %c0_86 = arith.constant 0 : index
    %312 = vector.load %arg15[%c0_85, %c0_86] : memref<9x128xf32, #tpu.memory_space<vmem>>, vector<9x128xf32>
    %c5_i32_87 = arith.constant 5 : i32
    %313 = tpu.dynamic_rotate %137 by %c5_i32_87 dim 1 : vector<32x128xf32>, i32 -> vector<32x128xf32>
    %314 = vector.extract_strided_slice %312 {offsets = [0, 0], sizes = [1, 128], strides = [1, 1]} : vector<9x128xf32> to vector<1x128xf32>
    %315 = vector.broadcast %314 : vector<1x128xf32> to vector<32x128xf32>
    %316 = arith.mulf %313, %315 : vector<32x128xf32>
    %c4_i32_88 = arith.constant 4 : i32
    %317 = tpu.dynamic_rotate %137 by %c4_i32_88 dim 1 : vector<32x128xf32>, i32 -> vector<32x128xf32>
    %318 = vector.extract_strided_slice %312 {offsets = [1, 0], sizes = [1, 128], strides = [1, 1]} : vector<9x128xf32> to vector<1x128xf32>
    %319 = vector.broadcast %318 : vector<1x128xf32> to vector<32x128xf32>
    %320 = arith.mulf %317, %319 : vector<32x128xf32>
    %c3_i32_89 = arith.constant 3 : i32
    %321 = tpu.dynamic_rotate %137 by %c3_i32_89 dim 1 : vector<32x128xf32>, i32 -> vector<32x128xf32>
    %322 = vector.extract_strided_slice %312 {offsets = [2, 0], sizes = [1, 128], strides = [1, 1]} : vector<9x128xf32> to vector<1x128xf32>
    %323 = vector.broadcast %322 : vector<1x128xf32> to vector<32x128xf32>
    %324 = arith.mulf %321, %323 : vector<32x128xf32>
    %c1_i32_90 = arith.constant 1 : i32
    %325 = tpu.dynamic_rotate %137 by %c1_i32_90 dim 1 : vector<32x128xf32>, i32 -> vector<32x128xf32>
    %326 = vector.extract_strided_slice %312 {offsets = [3, 0], sizes = [1, 128], strides = [1, 1]} : vector<9x128xf32> to vector<1x128xf32>
    %327 = vector.broadcast %326 : vector<1x128xf32> to vector<32x128xf32>
    %328 = arith.mulf %325, %327 : vector<32x128xf32>
    %329 = vector.extract_strided_slice %312 {offsets = [4, 0], sizes = [1, 128], strides = [1, 1]} : vector<9x128xf32> to vector<1x128xf32>
    %330 = vector.broadcast %329 : vector<1x128xf32> to vector<32x128xf32>
    %331 = arith.mulf %137, %330 : vector<32x128xf32>
    %c127_i32_91 = arith.constant 127 : i32
    %332 = tpu.dynamic_rotate %137 by %c127_i32_91 dim 1 : vector<32x128xf32>, i32 -> vector<32x128xf32>
    %333 = vector.extract_strided_slice %312 {offsets = [5, 0], sizes = [1, 128], strides = [1, 1]} : vector<9x128xf32> to vector<1x128xf32>
    %334 = vector.broadcast %333 : vector<1x128xf32> to vector<32x128xf32>
    %335 = arith.mulf %332, %334 : vector<32x128xf32>
    %c125_i32_92 = arith.constant 125 : i32
    %336 = tpu.dynamic_rotate %137 by %c125_i32_92 dim 1 : vector<32x128xf32>, i32 -> vector<32x128xf32>
    %337 = vector.extract_strided_slice %312 {offsets = [6, 0], sizes = [1, 128], strides = [1, 1]} : vector<9x128xf32> to vector<1x128xf32>
    %338 = vector.broadcast %337 : vector<1x128xf32> to vector<32x128xf32>
    %339 = arith.mulf %336, %338 : vector<32x128xf32>
    %c124_i32_93 = arith.constant 124 : i32
    %340 = tpu.dynamic_rotate %137 by %c124_i32_93 dim 1 : vector<32x128xf32>, i32 -> vector<32x128xf32>
    %341 = vector.extract_strided_slice %312 {offsets = [7, 0], sizes = [1, 128], strides = [1, 1]} : vector<9x128xf32> to vector<1x128xf32>
    %342 = vector.broadcast %341 : vector<1x128xf32> to vector<32x128xf32>
    %343 = arith.mulf %340, %342 : vector<32x128xf32>
    %c123_i32_94 = arith.constant 123 : i32
    %344 = tpu.dynamic_rotate %137 by %c123_i32_94 dim 1 : vector<32x128xf32>, i32 -> vector<32x128xf32>
    %345 = vector.extract_strided_slice %312 {offsets = [8, 0], sizes = [1, 128], strides = [1, 1]} : vector<9x128xf32> to vector<1x128xf32>
    %346 = vector.broadcast %345 : vector<1x128xf32> to vector<32x128xf32>
    %347 = arith.mulf %344, %346 : vector<32x128xf32>
    %348 = tpu.concatenate %316, %320, %324, %328, %331, %335, %339, %343, %347, %2 in 0 : vector<32x128xf32>, vector<32x128xf32>, vector<32x128xf32>, vector<32x128xf32>, vector<32x128xf32>, vector<32x128xf32>, vector<32x128xf32>, vector<32x128xf32>, vector<32x128xf32>, vector<1x128xf32> -> vector<289x128xf32>
    %349 = arith.truncf %348 : vector<289x128xf32> to vector<289x128xbf16>
    %c0_95 = arith.constant 0 : index
    %c0_96 = arith.constant 0 : index
    %350 = vector.load %arg8[%c0_95, %c0_96] : memref<14x289xbf16, #tpu.memory_space<vmem>>, vector<14x289xbf16>
    %cst_97 = arith.constant dense<0.000000e+00> : vector<14x128xf32>
    %351 = tpu.matmul %350, %349, %cst_97 {dimension_numbers = #tpu.dot_dimension_numbers<[1], [0], [0], [1], [0, 0, 1, 1], [], []>} : vector<14x289xbf16>, vector<289x128xbf16>, vector<14x128xf32> -> vector<14x128xf32>
    %c16_i32_98 = arith.constant 16 : i32
    %352 = vector.broadcast %c16_i32_98 : i32 to vector<1x128xi32>
    %353 = arith.cmpi slt, %0, %352 : vector<1x128xi32>
    %cst_99 = arith.constant 0.000000e+00 : f32
    %354 = vector.broadcast %cst_99 : f32 to vector<2x128xf32>
    %355 = vector.extract_strided_slice %351 {offsets = [0, 0], sizes = [3, 128], strides = [1, 1]} : vector<14x128xf32> to vector<3x128xf32>
    %cst_100 = arith.constant dense<0xFF800000> : vector<128xf32>
    %356 = vector.multi_reduction <maximumf>, %355, %cst_100 [0] : vector<3x128xf32> to vector<128xf32>
    %357 = vector.shape_cast %356 : vector<128xf32> to vector<1x128xf32>
    %358 = vector.broadcast %357 : vector<1x128xf32> to vector<3x128xf32>
    %359 = arith.subf %355, %358 : vector<3x128xf32>
    %360 = math.exp %359 : vector<3x128xf32>
    %cst_101 = arith.constant dense<0.000000e+00> : vector<128xf32>
    %361 = vector.multi_reduction <add>, %360, %cst_101 [0] : vector<3x128xf32> to vector<128xf32>
    %362 = vector.shape_cast %361 : vector<128xf32> to vector<1x128xf32>
    %363 = tpu.reciprocal %362 {approx = true} : vector<1x128xf32> -> vector<1x128xf32>
    %364 = vector.broadcast %363 : vector<1x128xf32> to vector<3x128xf32>
    %365 = arith.mulf %360, %364 : vector<3x128xf32>
    %366 = vector.extract_strided_slice %351 {offsets = [3, 0], sizes = [3, 128], strides = [1, 1]} : vector<14x128xf32> to vector<3x128xf32>
    %cst_102 = arith.constant dense<0xFF800000> : vector<128xf32>
    %367 = vector.multi_reduction <maximumf>, %366, %cst_102 [0] : vector<3x128xf32> to vector<128xf32>
    %368 = vector.shape_cast %367 : vector<128xf32> to vector<1x128xf32>
    %369 = vector.broadcast %368 : vector<1x128xf32> to vector<3x128xf32>
    %370 = arith.subf %366, %369 : vector<3x128xf32>
    %371 = math.exp %370 : vector<3x128xf32>
    %cst_103 = arith.constant dense<0.000000e+00> : vector<128xf32>
    %372 = vector.multi_reduction <add>, %371, %cst_103 [0] : vector<3x128xf32> to vector<128xf32>
    %373 = vector.shape_cast %372 : vector<128xf32> to vector<1x128xf32>
    %374 = tpu.reciprocal %373 {approx = true} : vector<1x128xf32> -> vector<1x128xf32>
    %375 = vector.broadcast %374 : vector<1x128xf32> to vector<3x128xf32>
    %376 = arith.mulf %371, %375 : vector<3x128xf32>
    %377 = tpu.concatenate %365, %376, %354 in 0 : vector<3x128xf32>, vector<3x128xf32>, vector<2x128xf32> -> vector<8x128xf32>
    %378 = vector.extract_strided_slice %351 {offsets = [6, 0], sizes = [4, 128], strides = [1, 1]} : vector<14x128xf32> to vector<4x128xf32>
    %379 = vector.extract_strided_slice %311 {offsets = [0, 0], sizes = [4, 128], strides = [1, 1]} : vector<8x128xf32> to vector<4x128xf32>
    %380 = vector.extract_strided_slice %378 {offsets = [0, 0], sizes = [2, 128], strides = [1, 1]} : vector<4x128xf32> to vector<2x128xf32>
    %cst_104 = arith.constant 1.000000e-01 : f32
    %381 = vector.broadcast %cst_104 : f32 to vector<2x128xf32>
    %382 = arith.mulf %380, %381 : vector<2x128xf32>
    %383 = vector.extract_strided_slice %379 {offsets = [2, 0], sizes = [2, 128], strides = [1, 1]} : vector<4x128xf32> to vector<2x128xf32>
    %384 = arith.mulf %382, %383 : vector<2x128xf32>
    %385 = vector.extract_strided_slice %379 {offsets = [0, 0], sizes = [2, 128], strides = [1, 1]} : vector<4x128xf32> to vector<2x128xf32>
    %386 = arith.addf %384, %385 : vector<2x128xf32>
    %387 = vector.extract_strided_slice %378 {offsets = [2, 0], sizes = [2, 128], strides = [1, 1]} : vector<4x128xf32> to vector<2x128xf32>
    %cst_105 = arith.constant 2.000000e-01 : f32
    %388 = vector.broadcast %cst_105 : f32 to vector<2x128xf32>
    %389 = arith.mulf %387, %388 : vector<2x128xf32>
    %390 = math.exp %389 : vector<2x128xf32>
    %391 = vector.extract_strided_slice %379 {offsets = [2, 0], sizes = [2, 128], strides = [1, 1]} : vector<4x128xf32> to vector<2x128xf32>
    %392 = arith.mulf %390, %391 : vector<2x128xf32>
    %cst_106 = arith.constant 5.000000e-01 : f32
    %393 = vector.broadcast %cst_106 : f32 to vector<2x128xf32>
    %394 = arith.mulf %393, %392 : vector<2x128xf32>
    %395 = arith.subf %386, %394 : vector<2x128xf32>
    %cst_107 = arith.constant 5.000000e-01 : f32
    %396 = vector.broadcast %cst_107 : f32 to vector<2x128xf32>
    %397 = arith.mulf %396, %392 : vector<2x128xf32>
    %398 = arith.addf %386, %397 : vector<2x128xf32>
    %399 = tpu.concatenate %395, %398 in 0 : vector<2x128xf32>, vector<2x128xf32> -> vector<4x128xf32>
    %400 = vector.extract_strided_slice %351 {offsets = [10, 0], sizes = [4, 128], strides = [1, 1]} : vector<14x128xf32> to vector<4x128xf32>
    %401 = vector.extract_strided_slice %311 {offsets = [4, 0], sizes = [4, 128], strides = [1, 1]} : vector<8x128xf32> to vector<4x128xf32>
    %402 = vector.extract_strided_slice %400 {offsets = [0, 0], sizes = [2, 128], strides = [1, 1]} : vector<4x128xf32> to vector<2x128xf32>
    %cst_108 = arith.constant 1.000000e-01 : f32
    %403 = vector.broadcast %cst_108 : f32 to vector<2x128xf32>
    %404 = arith.mulf %402, %403 : vector<2x128xf32>
    %405 = vector.extract_strided_slice %401 {offsets = [2, 0], sizes = [2, 128], strides = [1, 1]} : vector<4x128xf32> to vector<2x128xf32>
    %406 = arith.mulf %404, %405 : vector<2x128xf32>
    %407 = vector.extract_strided_slice %401 {offsets = [0, 0], sizes = [2, 128], strides = [1, 1]} : vector<4x128xf32> to vector<2x128xf32>
    %408 = arith.addf %406, %407 : vector<2x128xf32>
    %409 = vector.extract_strided_slice %400 {offsets = [2, 0], sizes = [2, 128], strides = [1, 1]} : vector<4x128xf32> to vector<2x128xf32>
    %cst_109 = arith.constant 2.000000e-01 : f32
    %410 = vector.broadcast %cst_109 : f32 to vector<2x128xf32>
    %411 = arith.mulf %409, %410 : vector<2x128xf32>
    %412 = math.exp %411 : vector<2x128xf32>
    %413 = vector.extract_strided_slice %401 {offsets = [2, 0], sizes = [2, 128], strides = [1, 1]} : vector<4x128xf32> to vector<2x128xf32>
    %414 = arith.mulf %412, %413 : vector<2x128xf32>
    %cst_110 = arith.constant 5.000000e-01 : f32
    %415 = vector.broadcast %cst_110 : f32 to vector<2x128xf32>
    %416 = arith.mulf %415, %414 : vector<2x128xf32>
    %417 = arith.subf %408, %416 : vector<2x128xf32>
    %cst_111 = arith.constant 5.000000e-01 : f32
    %418 = vector.broadcast %cst_111 : f32 to vector<2x128xf32>
    %419 = arith.mulf %418, %414 : vector<2x128xf32>
    %420 = arith.addf %408, %419 : vector<2x128xf32>
    %421 = tpu.concatenate %417, %420 in 0 : vector<2x128xf32>, vector<2x128xf32> -> vector<4x128xf32>
    %422 = tpu.concatenate %399, %421 in 0 : vector<4x128xf32>, vector<4x128xf32> -> vector<8x128xf32>
    %423 = tpu.concatenate %377, %422 in 0 : vector<8x128xf32>, vector<8x128xf32> -> vector<16x128xf32>
    %cst_112 = arith.constant 0.000000e+00 : f32
    %424 = vector.shape_cast %353 : vector<1x128xi1> to vector<1x128xi1>
    %425 = vector.broadcast %424 : vector<1x128xi1> to vector<16x128xi1>
    %426 = vector.broadcast %cst_112 : f32 to vector<16x128xf32>
    %427 = arith.select %425, %423, %426 : vector<16x128xi1>, vector<16x128xf32>
    %c0_113 = arith.constant 0 : index
    %c1 = arith.constant 1 : index
    %c0_114 = arith.constant 0 : index
    %c0_115 = arith.constant 0 : index
    %428 = vector.load %arg18[%c0_113, %c1, %c0_114, %c0_115] : memref<1x3x16x128xf32, #tpu.memory_space<vmem>>, vector<1x1x16x128xf32>
    %429 = vector.shape_cast %428 : vector<1x1x16x128xf32> to vector<16x128xf32>
    %430 = vector.shape_cast %427 : vector<16x128xf32> to vector<1x1x16x128xf32>
    tpu.vector_store %arg18[%c0_113, %c1, %c0_114, %c0_115], %430 {strides = array<i32>} : memref<1x3x16x128xf32, #tpu.memory_space<vmem>>, vector<1x1x16x128xf32>,
    %431 = vector.extract_strided_slice %5 {offsets = [2, 0, 0], sizes = [1, 8, 128], strides = [1, 1, 1]} : vector<3x8x128xf32> to vector<1x8x128xf32>
    %432 = vector.shape_cast %431 : vector<1x8x128xf32> to vector<8x128xf32>
    %c0_116 = arith.constant 0 : index
    %c0_117 = arith.constant 0 : index
    %433 = vector.load %arg16[%c0_116, %c0_117] : memref<9x128xf32, #tpu.memory_space<vmem>>, vector<9x128xf32>
    %c3_i32_118 = arith.constant 3 : i32
    %434 = tpu.dynamic_rotate %188 by %c3_i32_118 dim 1 : vector<32x128xf32>, i32 -> vector<32x128xf32>
    %435 = vector.extract_strided_slice %433 {offsets = [0, 0], sizes = [1, 128], strides = [1, 1]} : vector<9x128xf32> to vector<1x128xf32>
    %436 = vector.broadcast %435 : vector<1x128xf32> to vector<32x128xf32>
    %437 = arith.mulf %434, %436 : vector<32x128xf32>
    %c2_i32 = arith.constant 2 : i32
    %438 = tpu.dynamic_rotate %188 by %c2_i32 dim 1 : vector<32x128xf32>, i32 -> vector<32x128xf32>
    %439 = vector.extract_strided_slice %433 {offsets = [1, 0], sizes = [1, 128], strides = [1, 1]} : vector<9x128xf32> to vector<1x128xf32>
    %440 = vector.broadcast %439 : vector<1x128xf32> to vector<32x128xf32>
    %441 = arith.mulf %438, %440 : vector<32x128xf32>
    %c1_i32_119 = arith.constant 1 : i32
    %442 = tpu.dynamic_rotate %188 by %c1_i32_119 dim 1 : vector<32x128xf32>, i32 -> vector<32x128xf32>
    %443 = vector.extract_strided_slice %433 {offsets = [2, 0], sizes = [1, 128], strides = [1, 1]} : vector<9x128xf32> to vector<1x128xf32>
    %444 = vector.broadcast %443 : vector<1x128xf32> to vector<32x128xf32>
    %445 = arith.mulf %442, %444 : vector<32x128xf32>
    %c1_i32_120 = arith.constant 1 : i32
    %446 = tpu.dynamic_rotate %188 by %c1_i32_120 dim 1 : vector<32x128xf32>, i32 -> vector<32x128xf32>
    %447 = vector.extract_strided_slice %433 {offsets = [3, 0], sizes = [1, 128], strides = [1, 1]} : vector<9x128xf32> to vector<1x128xf32>
    %448 = vector.broadcast %447 : vector<1x128xf32> to vector<32x128xf32>
    %449 = arith.mulf %446, %448 : vector<32x128xf32>
    %450 = vector.extract_strided_slice %433 {offsets = [4, 0], sizes = [1, 128], strides = [1, 1]} : vector<9x128xf32> to vector<1x128xf32>
    %451 = vector.broadcast %450 : vector<1x128xf32> to vector<32x128xf32>
    %452 = arith.mulf %188, %451 : vector<32x128xf32>
    %c127_i32_121 = arith.constant 127 : i32
    %453 = tpu.dynamic_rotate %188 by %c127_i32_121 dim 1 : vector<32x128xf32>, i32 -> vector<32x128xf32>
    %454 = vector.extract_strided_slice %433 {offsets = [5, 0], sizes = [1, 128], strides = [1, 1]} : vector<9x128xf32> to vector<1x128xf32>
    %455 = vector.broadcast %454 : vector<1x128xf32> to vector<32x128xf32>
    %456 = arith.mulf %453, %455 : vector<32x128xf32>
    %c127_i32_122 = arith.constant 127 : i32
    %457 = tpu.dynamic_rotate %188 by %c127_i32_122 dim 1 : vector<32x128xf32>, i32 -> vector<32x128xf32>
    %458 = vector.extract_strided_slice %433 {offsets = [6, 0], sizes = [1, 128], strides = [1, 1]} : vector<9x128xf32> to vector<1x128xf32>
    %459 = vector.broadcast %458 : vector<1x128xf32> to vector<32x128xf32>
    %460 = arith.mulf %457, %459 : vector<32x128xf32>
    %c126_i32 = arith.constant 126 : i32
    %461 = tpu.dynamic_rotate %188 by %c126_i32 dim 1 : vector<32x128xf32>, i32 -> vector<32x128xf32>
    %462 = vector.extract_strided_slice %433 {offsets = [7, 0], sizes = [1, 128], strides = [1, 1]} : vector<9x128xf32> to vector<1x128xf32>
    %463 = vector.broadcast %462 : vector<1x128xf32> to vector<32x128xf32>
    %464 = arith.mulf %461, %463 : vector<32x128xf32>
    %c125_i32_123 = arith.constant 125 : i32
    %465 = tpu.dynamic_rotate %188 by %c125_i32_123 dim 1 : vector<32x128xf32>, i32 -> vector<32x128xf32>
    %466 = vector.extract_strided_slice %433 {offsets = [8, 0], sizes = [1, 128], strides = [1, 1]} : vector<9x128xf32> to vector<1x128xf32>
    %467 = vector.broadcast %466 : vector<1x128xf32> to vector<32x128xf32>
    %468 = arith.mulf %465, %467 : vector<32x128xf32>
    %469 = tpu.concatenate %437, %441, %445, %449, %452, %456, %460, %464, %468, %2 in 0 : vector<32x128xf32>, vector<32x128xf32>, vector<32x128xf32>, vector<32x128xf32>, vector<32x128xf32>, vector<32x128xf32>, vector<32x128xf32>, vector<32x128xf32>, vector<32x128xf32>, vector<1x128xf32> -> vector<289x128xf32>
    %470 = arith.truncf %469 : vector<289x128xf32> to vector<289x128xbf16>
    %c0_124 = arith.constant 0 : index
    %c0_125 = arith.constant 0 : index
    %471 = vector.load %arg9[%c0_124, %c0_125] : memref<14x289xbf16, #tpu.memory_space<vmem>>, vector<14x289xbf16>
    %cst_126 = arith.constant dense<0.000000e+00> : vector<14x128xf32>
    %472 = tpu.matmul %471, %470, %cst_126 {dimension_numbers = #tpu.dot_dimension_numbers<[1], [0], [0], [1], [0, 0, 1, 1], [], []>} : vector<14x289xbf16>, vector<289x128xbf16>, vector<14x128xf32> -> vector<14x128xf32>
    %c4_i32_127 = arith.constant 4 : i32
    %473 = vector.broadcast %c4_i32_127 : i32 to vector<1x128xi32>
    %474 = arith.cmpi slt, %0, %473 : vector<1x128xi32>
    %cst_128 = arith.constant 0.000000e+00 : f32
    %475 = vector.broadcast %cst_128 : f32 to vector<2x128xf32>
    %476 = vector.extract_strided_slice %472 {offsets = [0, 0], sizes = [3, 128], strides = [1, 1]} : vector<14x128xf32> to vector<3x128xf32>
    %cst_129 = arith.constant dense<0xFF800000> : vector<128xf32>
    %477 = vector.multi_reduction <maximumf>, %476, %cst_129 [0] : vector<3x128xf32> to vector<128xf32>
    %478 = vector.shape_cast %477 : vector<128xf32> to vector<1x128xf32>
    %479 = vector.broadcast %478 : vector<1x128xf32> to vector<3x128xf32>
    %480 = arith.subf %476, %479 : vector<3x128xf32>
    %481 = math.exp %480 : vector<3x128xf32>
    %cst_130 = arith.constant dense<0.000000e+00> : vector<128xf32>
    %482 = vector.multi_reduction <add>, %481, %cst_130 [0] : vector<3x128xf32> to vector<128xf32>
    %483 = vector.shape_cast %482 : vector<128xf32> to vector<1x128xf32>
    %484 = tpu.reciprocal %483 {approx = true} : vector<1x128xf32> -> vector<1x128xf32>
    %485 = vector.broadcast %484 : vector<1x128xf32> to vector<3x128xf32>
    %486 = arith.mulf %481, %485 : vector<3x128xf32>
    %487 = vector.extract_strided_slice %472 {offsets = [3, 0], sizes = [3, 128], strides = [1, 1]} : vector<14x128xf32> to vector<3x128xf32>
    %cst_131 = arith.constant dense<0xFF800000> : vector<128xf32>
    %488 = vector.multi_reduction <maximumf>, %487, %cst_131 [0] : vector<3x128xf32> to vector<128xf32>
    %489 = vector.shape_cast %488 : vector<128xf32> to vector<1x128xf32>
    %490 = vector.broadcast %489 : vector<1x128xf32> to vector<3x128xf32>
    %491 = arith.subf %487, %490 : vector<3x128xf32>
    %492 = math.exp %491 : vector<3x128xf32>
    %cst_132 = arith.constant dense<0.000000e+00> : vector<128xf32>
    %493 = vector.multi_reduction <add>, %492, %cst_132 [0] : vector<3x128xf32> to vector<128xf32>
    %494 = vector.shape_cast %493 : vector<128xf32> to vector<1x128xf32>
    %495 = tpu.reciprocal %494 {approx = true} : vector<1x128xf32> -> vector<1x128xf32>
    %496 = vector.broadcast %495 : vector<1x128xf32> to vector<3x128xf32>
    %497 = arith.mulf %492, %496 : vector<3x128xf32>
    %498 = tpu.concatenate %486, %497, %475 in 0 : vector<3x128xf32>, vector<3x128xf32>, vector<2x128xf32> -> vector<8x128xf32>
    %499 = vector.extract_strided_slice %472 {offsets = [6, 0], sizes = [4, 128], strides = [1, 1]} : vector<14x128xf32> to vector<4x128xf32>
    %500 = vector.extract_strided_slice %432 {offsets = [0, 0], sizes = [4, 128], strides = [1, 1]} : vector<8x128xf32> to vector<4x128xf32>
    %501 = vector.extract_strided_slice %499 {offsets = [0, 0], sizes = [2, 128], strides = [1, 1]} : vector<4x128xf32> to vector<2x128xf32>
    %cst_133 = arith.constant 1.000000e-01 : f32
    %502 = vector.broadcast %cst_133 : f32 to vector<2x128xf32>
    %503 = arith.mulf %501, %502 : vector<2x128xf32>
    %504 = vector.extract_strided_slice %500 {offsets = [2, 0], sizes = [2, 128], strides = [1, 1]} : vector<4x128xf32> to vector<2x128xf32>
    %505 = arith.mulf %503, %504 : vector<2x128xf32>
    %506 = vector.extract_strided_slice %500 {offsets = [0, 0], sizes = [2, 128], strides = [1, 1]} : vector<4x128xf32> to vector<2x128xf32>
    %507 = arith.addf %505, %506 : vector<2x128xf32>
    %508 = vector.extract_strided_slice %499 {offsets = [2, 0], sizes = [2, 128], strides = [1, 1]} : vector<4x128xf32> to vector<2x128xf32>
    %cst_134 = arith.constant 2.000000e-01 : f32
    %509 = vector.broadcast %cst_134 : f32 to vector<2x128xf32>
    %510 = arith.mulf %508, %509 : vector<2x128xf32>
    %511 = math.exp %510 : vector<2x128xf32>
    %512 = vector.extract_strided_slice %500 {offsets = [2, 0], sizes = [2, 128], strides = [1, 1]} : vector<4x128xf32> to vector<2x128xf32>
    %513 = arith.mulf %511, %512 : vector<2x128xf32>
    %cst_135 = arith.constant 5.000000e-01 : f32
    %514 = vector.broadcast %cst_135 : f32 to vector<2x128xf32>
    %515 = arith.mulf %514, %513 : vector<2x128xf32>
    %516 = arith.subf %507, %515 : vector<2x128xf32>
    %cst_136 = arith.constant 5.000000e-01 : f32
    %517 = vector.broadcast %cst_136 : f32 to vector<2x128xf32>
    %518 = arith.mulf %517, %513 : vector<2x128xf32>
    %519 = arith.addf %507, %518 : vector<2x128xf32>
    %520 = tpu.concatenate %516, %519 in 0 : vector<2x128xf32>, vector<2x128xf32> -> vector<4x128xf32>
    %521 = vector.extract_strided_slice %472 {offsets = [10, 0], sizes = [4, 128], strides = [1, 1]} : vector<14x128xf32> to vector<4x128xf32>
    %522 = vector.extract_strided_slice %432 {offsets = [4, 0], sizes = [4, 128], strides = [1, 1]} : vector<8x128xf32> to vector<4x128xf32>
    %523 = vector.extract_strided_slice %521 {offsets = [0, 0], sizes = [2, 128], strides = [1, 1]} : vector<4x128xf32> to vector<2x128xf32>
    %cst_137 = arith.constant 1.000000e-01 : f32
    %524 = vector.broadcast %cst_137 : f32 to vector<2x128xf32>
    %525 = arith.mulf %523, %524 : vector<2x128xf32>
    %526 = vector.extract_strided_slice %522 {offsets = [2, 0], sizes = [2, 128], strides = [1, 1]} : vector<4x128xf32> to vector<2x128xf32>
    %527 = arith.mulf %525, %526 : vector<2x128xf32>
    %528 = vector.extract_strided_slice %522 {offsets = [0, 0], sizes = [2, 128], strides = [1, 1]} : vector<4x128xf32> to vector<2x128xf32>
    %529 = arith.addf %527, %528 : vector<2x128xf32>
    %530 = vector.extract_strided_slice %521 {offsets = [2, 0], sizes = [2, 128], strides = [1, 1]} : vector<4x128xf32> to vector<2x128xf32>
    %cst_138 = arith.constant 2.000000e-01 : f32
    %531 = vector.broadcast %cst_138 : f32 to vector<2x128xf32>
    %532 = arith.mulf %530, %531 : vector<2x128xf32>
    %533 = math.exp %532 : vector<2x128xf32>
    %534 = vector.extract_strided_slice %522 {offsets = [2, 0], sizes = [2, 128], strides = [1, 1]} : vector<4x128xf32> to vector<2x128xf32>
    %535 = arith.mulf %533, %534 : vector<2x128xf32>
    %cst_139 = arith.constant 5.000000e-01 : f32
    %536 = vector.broadcast %cst_139 : f32 to vector<2x128xf32>
    %537 = arith.mulf %536, %535 : vector<2x128xf32>
    %538 = arith.subf %529, %537 : vector<2x128xf32>
    %cst_140 = arith.constant 5.000000e-01 : f32
    %539 = vector.broadcast %cst_140 : f32 to vector<2x128xf32>
    %540 = arith.mulf %539, %535 : vector<2x128xf32>
    %541 = arith.addf %529, %540 : vector<2x128xf32>
    %542 = tpu.concatenate %538, %541 in 0 : vector<2x128xf32>, vector<2x128xf32> -> vector<4x128xf32>
    %543 = tpu.concatenate %520, %542 in 0 : vector<4x128xf32>, vector<4x128xf32> -> vector<8x128xf32>
    %544 = tpu.concatenate %498, %543 in 0 : vector<8x128xf32>, vector<8x128xf32> -> vector<16x128xf32>
    %cst_141 = arith.constant 0.000000e+00 : f32
    %545 = vector.shape_cast %474 : vector<1x128xi1> to vector<1x128xi1>
    %546 = vector.broadcast %545 : vector<1x128xi1> to vector<16x128xi1>
    %547 = vector.broadcast %cst_141 : f32 to vector<16x128xf32>
    %548 = arith.select %546, %544, %547 : vector<16x128xi1>, vector<16x128xf32>
    %c0_142 = arith.constant 0 : index
    %c2 = arith.constant 2 : index
    %c0_143 = arith.constant 0 : index
    %c0_144 = arith.constant 0 : index
    %549 = vector.load %arg18[%c0_142, %c2, %c0_143, %c0_144] : memref<1x3x16x128xf32, #tpu.memory_space<vmem>>, vector<1x1x16x128xf32>
    %550 = vector.shape_cast %549 : vector<1x1x16x128xf32> to vector<16x128xf32>
    %551 = vector.shape_cast %548 : vector<16x128xf32> to vector<1x1x16x128xf32>
    tpu.vector_store %arg18[%c0_142, %c2, %c0_143, %c0_144], %551 {strides = array<i32>} : memref<1x3x16x128xf32, #tpu.memory_space<vmem>>, vector<1x1x16x128xf32>,
    return
  }
  func.func @transform_0(%arg0: i32) -> (i32, i32, i32) {
    %c0_i32 = arith.constant 0 : i32
    %c0_i32_0 = arith.constant 0 : i32
    %c0_i32_1 = arith.constant 0 : i32
    return %arg0, %c0_i32, %c0_i32_0 : i32, i32, i32
  }
  func.func @transform_1(%arg0: i32) -> (i32, i32) {
    %c0_i32 = arith.constant 0 : i32
    %c0_i32_0 = arith.constant 0 : i32
    %c0_i32_1 = arith.constant 0 : i32
    return %c0_i32, %c0_i32_0 : i32, i32
  }
  func.func @transform_2(%arg0: i32) -> (i32, i32) {
    %c0_i32 = arith.constant 0 : i32
    %c0_i32_0 = arith.constant 0 : i32
    %c0_i32_1 = arith.constant 0 : i32
    return %c0_i32, %c0_i32_0 : i32, i32
  }
  func.func @transform_3(%arg0: i32) -> (i32, i32) {
    %c0_i32 = arith.constant 0 : i32
    %c0_i32_0 = arith.constant 0 : i32
    %c0_i32_1 = arith.constant 0 : i32
    return %c0_i32, %c0_i32_0 : i32, i32
  }
  func.func @transform_4(%arg0: i32) -> (i32, i32) {
    %c0_i32 = arith.constant 0 : i32
    %c0_i32_0 = arith.constant 0 : i32
    %c0_i32_1 = arith.constant 0 : i32
    return %c0_i32, %c0_i32_0 : i32, i32
  }
  func.func @transform_5(%arg0: i32) -> (i32, i32) {
    %c0_i32 = arith.constant 0 : i32
    %c0_i32_0 = arith.constant 0 : i32
    %c0_i32_1 = arith.constant 0 : i32
    return %c0_i32, %c0_i32_0 : i32, i32
  }
  func.func @transform_6(%arg0: i32) -> (i32, i32) {
    %c0_i32 = arith.constant 0 : i32
    %c0_i32_0 = arith.constant 0 : i32
    %c0_i32_1 = arith.constant 0 : i32
    return %c0_i32, %c0_i32_0 : i32, i32
  }
  func.func @transform_7(%arg0: i32) -> (i32, i32) {
    %c0_i32 = arith.constant 0 : i32
    %c0_i32_0 = arith.constant 0 : i32
    %c0_i32_1 = arith.constant 0 : i32
    return %c0_i32, %c0_i32_0 : i32, i32
  }
  func.func @transform_8(%arg0: i32) -> (i32, i32) {
    %c0_i32 = arith.constant 0 : i32
    %c0_i32_0 = arith.constant 0 : i32
    %c0_i32_1 = arith.constant 0 : i32
    return %c0_i32, %c0_i32_0 : i32, i32
  }
  func.func @transform_9(%arg0: i32) -> (i32, i32) {
    %c0_i32 = arith.constant 0 : i32
    %c0_i32_0 = arith.constant 0 : i32
    %c0_i32_1 = arith.constant 0 : i32
    return %c0_i32, %c0_i32_0 : i32, i32
  }
  func.func @transform_10(%arg0: i32) -> (i32, i32) {
    %c0_i32 = arith.constant 0 : i32
    %c0_i32_0 = arith.constant 0 : i32
    %c0_i32_1 = arith.constant 0 : i32
    return %c0_i32, %c0_i32_0 : i32, i32
  }
  func.func @transform_11(%arg0: i32) -> (i32, i32) {
    %c0_i32 = arith.constant 0 : i32
    %c0_i32_0 = arith.constant 0 : i32
    %c0_i32_1 = arith.constant 0 : i32
    return %c0_i32, %c0_i32_0 : i32, i32
  }
  func.func @transform_12(%arg0: i32) -> (i32, i32) {
    %c0_i32 = arith.constant 0 : i32
    %c0_i32_0 = arith.constant 0 : i32
    %c0_i32_1 = arith.constant 0 : i32
    return %c0_i32, %c0_i32_0 : i32, i32
  }
  func.func @transform_13(%arg0: i32) -> (i32, i32) {
    %c0_i32 = arith.constant 0 : i32
    %c0_i32_0 = arith.constant 0 : i32
    %c0_i32_1 = arith.constant 0 : i32
    return %c0_i32, %c0_i32_0 : i32, i32
  }
  func.func @transform_14(%arg0: i32) -> (i32, i32) {
    %c0_i32 = arith.constant 0 : i32
    %c0_i32_0 = arith.constant 0 : i32
    %c0_i32_1 = arith.constant 0 : i32
    return %c0_i32, %c0_i32_0 : i32, i32
  }
  func.func @transform_15(%arg0: i32) -> (i32, i32) {
    %c0_i32 = arith.constant 0 : i32
    %c0_i32_0 = arith.constant 0 : i32
    %c0_i32_1 = arith.constant 0 : i32
    return %c0_i32, %c0_i32_0 : i32, i32
  }
  func.func @transform_16(%arg0: i32) -> (i32, i32, i32) {
    %c0_i32 = arith.constant 0 : i32
    %c0_i32_0 = arith.constant 0 : i32
    %c0_i32_1 = arith.constant 0 : i32
    %c0_i32_2 = arith.constant 0 : i32
    return %c0_i32, %c0_i32_0, %c0_i32_1 : i32, i32, i32
  }
  func.func @transform_17(%arg0: i32) -> (i32, i32, i32, i32) {
    %c0_i32 = arith.constant 0 : i32
    %c0_i32_0 = arith.constant 0 : i32
    %c0_i32_1 = arith.constant 0 : i32
    %c0_i32_2 = arith.constant 0 : i32
    return %arg0, %c0_i32, %c0_i32_0, %c0_i32_1 : i32, i32, i32, i32
  }
}

</mosaic_0001>

<llo_original>
// kernel: ssd_forward.1
$region0: #{ssd_forward.1}
  #allocation0 [shape = 'u32[]', space=smem, size = 0x4, offset = 0x4, fixed_abs, tag = 'smem constant byte address 0x4 - core index']
  #allocation1 [shape = 'u32[144,128]{1,0:T(1,128)}', space=vmem, size = 0x12000, scoped, tag = 'internal scratch']
  %s0 = inlined_call_operand.vmem [shape: f32[2,8,256], index: 0, kind: input, shape index: {}]
  %s1 = inlined_call_operand.vmem [shape: bf16[8,73], index: 1, kind: input, shape index: {}]
  %s2 = inlined_call_operand.vmem [shape: bf16[16,73], index: 2, kind: input, shape index: {}]
  %s3 = inlined_call_operand.vmem [shape: bf16[32,145], index: 3, kind: input, shape index: {}]
  %s4 = inlined_call_operand.vmem [shape: bf16[16,33], index: 4, kind: input, shape index: {}]
  %s5 = inlined_call_operand.vmem [shape: bf16[32,145], index: 5, kind: input, shape index: {}]
  %s6 = inlined_call_operand.vmem [shape: bf16[14,145], index: 6, kind: input, shape index: {}]
  %s7 = inlined_call_operand.vmem [shape: bf16[14,289], index: 7, kind: input, shape index: {}]
  %s8 = inlined_call_operand.vmem [shape: bf16[14,289], index: 8, kind: input, shape index: {}]
  %s9 = inlined_call_operand.vmem [shape: bf16[256,128], index: 9, kind: input, shape index: {}]
  %s10 = inlined_call_operand.vmem [shape: bf16[128,128], index: 10, kind: input, shape index: {}]
  %s11 = inlined_call_operand.vmem [shape: bf16[128,128], index: 11, kind: input, shape index: {}]
  %s12 = inlined_call_operand.vmem [shape: f32[9,256], index: 12, kind: input, shape index: {}]
  %s13 = inlined_call_operand.vmem [shape: f32[9,128], index: 13, kind: input, shape index: {}]
  %s14 = inlined_call_operand.vmem [shape: f32[9,128], index: 14, kind: input, shape index: {}]
  %s15 = inlined_call_operand.vmem [shape: f32[9,128], index: 15, kind: input, shape index: {}]
  %s16 = inlined_call_operand.vmem [shape: f32[3,8,128], index: 16, kind: input, shape index: {}]
  %s17 = inlined_call_operand.vmem [shape: f32[2,3,16,128], index: 17, kind: output, shape index: {}]
  %s18 = sld [smem:[#allocation0]]
  $region101: #{ssd_forward.1} parent=0
    _
  %s20 = ssub.s32 1, %s18
  %s21 = scalar_select 0, %s20, %s18
  loop: start=0, step=1, limit=4
  $region2: #{ssd_forward.1} parent=0 // loop_pre_header
    _
  $region3: #{ssd_forward.1} parent=0 // loop_header
    %s23 = sphi 0, %s27
    %p24 = scmp.ge.s32.totalorder %s23, 4
    %s33 = sphi 0, %s35
    %s36 = sphi 0, %s33
    %s37 = sphi 0, %s36
    %s53 = sphi 0, %s37
    %s57 = sphi 0, %s57
    %s59 = sphi 0, %s57
    %s60 = sphi 0, %s59
    %s74 = sphi 0, %s60
    %s78 = sphi 0, %s78
    %s80 = sphi 0, %s78
    %s81 = sphi 0, %s80
    %s95 = sphi 0, %s81
    %s99 = sphi 0, %s99
    %s101 = sphi 0, %s99
    %s102 = sphi 0, %s101
    %s116 = sphi 0, %s102
    %s120 = sphi 0, %s120
    %s122 = sphi 0, %s120
    %s123 = sphi 0, %s122
    %s137 = sphi 0, %s123
    %s141 = sphi 0, %s141
    %s143 = sphi 0, %s141
    %s144 = sphi 0, %s143
    %s158 = sphi 0, %s144
    %s162 = sphi 0, %s162
    %s164 = sphi 0, %s162
    %s165 = sphi 0, %s164
    %s179 = sphi 0, %s165
    %s183 = sphi 0, %s183
    %s185 = sphi 0, %s183
    %s186 = sphi 0, %s185
    %s200 = sphi 0, %s186
    %s204 = sphi 0, %s204
    %s206 = sphi 0, %s204
    %s207 = sphi 0, %s206
    %s221 = sphi 0, %s207
    %s225 = sphi 0, %s225
    %s227 = sphi 0, %s225
    %s228 = sphi 0, %s227
    %s242 = sphi 0, %s228
    %s246 = sphi 0, %s246
    %s248 = sphi 0, %s246
    %s249 = sphi 0, %s248
    %s263 = sphi 0, %s249
    %s267 = sphi 0, %s267
    %s269 = sphi 0, %s267
    %s270 = sphi 0, %s269
    %s284 = sphi 0, %s270
    %s288 = sphi 0, %s288
    %s290 = sphi 0, %s288
    %s291 = sphi 0, %s290
    %s305 = sphi 0, %s291
    %s309 = sphi 0, %s309
    %s311 = sphi 0, %s309
    %s312 = sphi 0, %s311
    %s326 = sphi 0, %s312
    %s330 = sphi 0, %s330
    %s332 = sphi 0, %s330
    %s333 = sphi 0, %s332
    %s347 = sphi 0, %s333
    %s351 = sphi 0, %s351
    %s353 = sphi 0, %s351
    %s354 = sphi 0, %s353
    %s368 = sphi 0, %s354
    %s372 = sphi 0, %s372
    %s374 = sphi 0, %s372
    %s375 = sphi 0, %s374
    %s389 = sphi 0, %s375
    %s395 = sphi 0, %s397
    %s398 = sphi 0, %s395
    %s399 = sphi 0, %s398
    %s415 = sphi 0, %s399
  $region4: #{ssd_forward.1} parent=0 // loop_header_branch
    %26 = sbr.rel (%p24) target = $region8
  $region5: #{ssd_forward.1} parent=0 // loop_body
    %s28 = ssub.s32 %s23, 1
    %s29 = ssub.s32 %s23, 2
    %s30 = sadd.s32 %s23, 1
    %s31 = ssub.s32 %s23, %s30
    %p32 = scmp.eq.s32.totalorder %s31, 0
    %s34 = sadd.s32 %s33, 1
    %s35 = scalar_select %p32, %s33, %s34
    %p38 = pneg %p32
    %p39 = scmp.eq.s32.totalorder %s23, 1
    %p40 = por %p38, %p39
    %p41 = scmp.ne.s32.totalorder %s33, %s36
    %p42 = scmp.eq.s32.totalorder %s23, 0
    %p43 = por %p41, %p42
    %p44 = scmp.ne.s32.totalorder %s33, %s36
    %p45 = scmp.eq.s32.totalorder %s28, 1
    %p46 = por %p44, %p45
    %p47 = scmp.ne.s32.totalorder %s36, %s37
    %p48 = scmp.eq.s32.totalorder %s28, 0
    %p49 = por %p47, %p48
    %p50 = scmp.ne.s32.totalorder %s36, %s37
    %p51 = scmp.eq.s32.totalorder %s29, 1
    %p52 = por %p50, %p51
    %p54 = scmp.ne.s32.totalorder %s37, %s53
    %p55 = scmp.eq.s32.totalorder %s29, 0
    %p56 = por %p54, %p55
    %s58 = sadd.s32 %s57, 1
    %p61 = scmp.eq.s32.totalorder %s23, 1
    %p62 = scmp.ne.s32.totalorder %s57, %s59
    %p63 = scmp.eq.s32.totalorder %s23, 0
    %p64 = por %p62, %p63
    %p65 = scmp.ne.s32.totalorder %s57, %s59
    %p66 = scmp.eq.s32.totalorder %s28, 1
    %p67 = por %p65, %p66
    %p68 = scmp.ne.s32.totalorder %s59, %s60
    %p69 = scmp.eq.s32.totalorder %s28, 0
    %p70 = por %p68, %p69
    %p71 = scmp.ne.s32.totalorder %s59, %s60
    %p72 = scmp.eq.s32.totalorder %s29, 1
    %p73 = por %p71, %p72
    %p75 = scmp.ne.s32.totalorder %s60, %s74
    %p76 = scmp.eq.s32.totalorder %s29, 0
    %p77 = por %p75, %p76
    %s79 = sadd.s32 %s78, 1
    %p82 = scmp.eq.s32.totalorder %s23, 1
    %p83 = scmp.ne.s32.totalorder %s78, %s80
    %p84 = scmp.eq.s32.totalorder %s23, 0
    %p85 = por %p83, %p84
    %p86 = scmp.ne.s32.totalorder %s78, %s80
    %p87 = scmp.eq.s32.totalorder %s28, 1
    %p88 = por %p86, %p87
    %p89 = scmp.ne.s32.totalorder %s80, %s81
    %p90 = scmp.eq.s32.totalorder %s28, 0
    %p91 = por %p89, %p90
    %p92 = scmp.ne.s32.totalorder %s80, %s81
    %p93 = scmp.eq.s32.totalorder %s29, 1
    %p94 = por %p92, %p93
    %p96 = scmp.ne.s32.totalorder %s81, %s95
    %p97 = scmp.eq.s32.totalorder %s29, 0
    %p98 = por %p96, %p97
    %s100 = sadd.s32 %s99, 1
    %p103 = scmp.eq.s32.totalorder %s23, 1
    %p104 = scmp.ne.s32.totalorder %s99, %s101
    %p105 = scmp.eq.s32.totalorder %s23, 0
    %p106 = por %p104, %p105
    %p107 = scmp.ne.s32.totalorder %s99, %s101
    %p108 = scmp.eq.s32.totalorder %s28, 1
    %p109 = por %p107, %p108
    %p110 = scmp.ne.s32.totalorder %s101, %s102
    %p111 = scmp.eq.s32.totalorder %s28, 0
    %p112 = por %p110, %p111
    %p113 = scmp.ne.s32.totalorder %s101, %s102
    %p114 = scmp.eq.s32.totalorder %s29, 1
    %p115 = por %p113, %p114
    %p117 = scmp.ne.s32.totalorder %s102, %s116
    %p118 = scmp.eq.s32.totalorder %s29, 0
    %p119 = por %p117, %p118
    %s121 = sadd.s32 %s120, 1
    %p124 = scmp.eq.s32.totalorder %s23, 1
    %p125 = scmp.ne.s32.totalorder %s120, %s122
    %p126 = scmp.eq.s32.totalorder %s23, 0
    %p127 = por %p125, %p126
    %p128 = scmp.ne.s32.totalorder %s120, %s122
    %p129 = scmp.eq.s32.totalorder %s28, 1
    %p130 = por %p128, %p129
    %p131 = scmp.ne.s32.totalorder %s122, %s123
    %p132 = scmp.eq.s32.totalorder %s28, 0
    %p133 = por %p131, %p132
    %p134 = scmp.ne.s32.totalorder %s122, %s123
    %p135 = scmp.eq.s32.totalorder %s29, 1
    %p136 = por %p134, %p135
    %p138 = scmp.ne.s32.totalorder %s123, %s137
    %p139 = scmp.eq.s32.totalorder %s29, 0
    %p140 = por %p138, %p139
    %s142 = sadd.s32 %s141, 1
    %p145 = scmp.eq.s32.totalorder %s23, 1
    %p146 = scmp.ne.s32.totalorder %s141, %s143
    %p147 = scmp.eq.s32.totalorder %s23, 0
    %p148 = por %p146, %p147
    %p149 = scmp.ne.s32.totalorder %s141, %s143
    %p150 = scmp.eq.s32.totalorder %s28, 1
    %p151 = por %p149, %p150
    %p152 = scmp.ne.s32.totalorder %s143, %s144
    %p153 = scmp.eq.s32.totalorder %s28, 0
    %p154 = por %p152, %p153
    %p155 = scmp.ne.s32.totalorder %s143, %s144
    %p156 = scmp.eq.s32.totalorder %s29, 1
    %p157 = por %p155, %p156
    %p159 = scmp.ne.s32.totalorder %s144, %s158
    %p160 = scmp.eq.s32.totalorder %s29, 0
    %p161 = por %p159, %p160
    %s163 = sadd.s32 %s162, 1
    %p166 = scmp.eq.s32.totalorder %s23, 1
    %p167 = scmp.ne.s32.totalorder %s162, %s164
    %p168 = scmp.eq.s32.totalorder %s23, 0
    %p169 = por %p167, %p168
    %p170 = scmp.ne.s32.totalorder %s162, %s164
    %p171 = scmp.eq.s32.totalorder %s28, 1
    %p172 = por %p170, %p171
    %p173 = scmp.ne.s32.totalorder %s164, %s165
    %p174 = scmp.eq.s32.totalorder %s28, 0
    %p175 = por %p173, %p174
    %p176 = scmp.ne.s32.totalorder %s164, %s165
    %p177 = scmp.eq.s32.totalorder %s29, 1
    %p178 = por %p176, %p177
    %p180 = scmp.ne.s32.totalorder %s165, %s179
    %p181 = scmp.eq.s32.totalorder %s29, 0
    %p182 = por %p180, %p181
    %s184 = sadd.s32 %s183, 1
    %p187 = scmp.eq.s32.totalorder %s23, 1
    %p188 = scmp.ne.s32.totalorder %s183, %s185
    %p189 = scmp.eq.s32.totalorder %s23, 0
    %p190 = por %p188, %p189
    %p191 = scmp.ne.s32.totalorder %s183, %s185
    %p192 = scmp.eq.s32.totalorder %s28, 1
    %p193 = por %p191, %p192
    %p194 = scmp.ne.s32.totalorder %s185, %s186
    %p195 = scmp.eq.s32.totalorder %s28, 0
    %p196 = por %p194, %p195
    %p197 = scmp.ne.s32.totalorder %s185, %s186
    %p198 = scmp.eq.s32.totalorder %s29, 1
    %p199 = por %p197, %p198
    %p201 = scmp.ne.s32.totalorder %s186, %s200
    %p202 = scmp.eq.s32.totalorder %s29, 0
    %p203 = por %p201, %p202
    %s205 = sadd.s32 %s204, 1
    %p208 = scmp.eq.s32.totalorder %s23, 1
    %p209 = scmp.ne.s32.totalorder %s204, %s206
    %p210 = scmp.eq.s32.totalorder %s23, 0
    %p211 = por %p209, %p210
    %p212 = scmp.ne.s32.totalorder %s204, %s206
    %p213 = scmp.eq.s32.totalorder %s28, 1
    %p214 = por %p212, %p213
    %p215 = scmp.ne.s32.totalorder %s206, %s207
    %p216 = scmp.eq.s32.totalorder %s28, 0
    %p217 = por %p215, %p216
    %p218 = scmp.ne.s32.totalorder %s206, %s207
    %p219 = scmp.eq.s32.totalorder %s29, 1
    %p220 = por %p218, %p219
    %p222 = scmp.ne.s32.totalorder %s207, %s221
    %p223 = scmp.eq.s32.totalorder %s29, 0
    %p224 = por %p222, %p223
    %s226 = sadd.s32 %s225, 1
    %p229 = scmp.eq.s32.totalorder %s23, 1
    %p230 = scmp.ne.s32.totalorder %s225, %s227
    %p231 = scmp.eq.s32.totalorder %s23, 0
    %p232 = por %p230, %p231
    %p233 = scmp.ne.s32.totalorder %s225, %s227
    %p234 = scmp.eq.s32.totalorder %s28, 1
    %p235 = por %p233, %p234
    %p236 = scmp.ne.s32.totalorder %s227, %s228
    %p237 = scmp.eq.s32.totalorder %s28, 0
    %p238 = por %p236, %p237
    %p239 = scmp.ne.s32.totalorder %s227, %s228
    %p240 = scmp.eq.s32.totalorder %s29, 1
    %p241 = por %p239, %p240
    %p243 = scmp.ne.s32.totalorder %s228, %s242
    %p244 = scmp.eq.s32.totalorder %s29, 0
    %p245 = por %p243, %p244
    %s247 = sadd.s32 %s246, 1
    %p250 = scmp.eq.s32.totalorder %s23, 1
    %p251 = scmp.ne.s32.totalorder %s246, %s248
    %p252 = scmp.eq.s32.totalorder %s23, 0
    %p253 = por %p251, %p252
    %p254 = scmp.ne.s32.totalorder %s246, %s248
    %p255 = scmp.eq.s32.totalorder %s28, 1
    %p256 = por %p254, %p255
    %p257 = scmp.ne.s32.totalorder %s248, %s249
    %p258 = scmp.eq.s32.totalorder %s28, 0
    %p259 = por %p257, %p258
    %p260 = scmp.ne.s32.totalorder %s248, %s249
    %p261 = scmp.eq.s32.totalorder %s29, 1
    %p262 = por %p260, %p261
    %p264 = scmp.ne.s32.totalorder %s249, %s263
    %p265 = scmp.eq.s32.totalorder %s29, 0
    %p266 = por %p264, %p265
    %s268 = sadd.s32 %s267, 1
    %p271 = scmp.eq.s32.totalorder %s23, 1
    %p272 = scmp.ne.s32.totalorder %s267, %s269
    %p273 = scmp.eq.s32.totalorder %s23, 0
    %p274 = por %p272, %p273
    %p275 = scmp.ne.s32.totalorder %s267, %s269
    %p276 = scmp.eq.s32.totalorder %s28, 1
    %p277 = por %p275, %p276
    %p278 = scmp.ne.s32.totalorder %s269, %s270
    %p279 = scmp.eq.s32.totalorder %s28, 0
    %p280 = por %p278, %p279
    %p281 = scmp.ne.s32.totalorder %s269, %s270
    %p282 = scmp.eq.s32.totalorder %s29, 1
    %p283 = por %p281, %p282
    %p285 = scmp.ne.s32.totalorder %s270, %s284
    %p286 = scmp.eq.s32.totalorder %s29, 0
    %p287 = por %p285, %p286
    %s289 = sadd.s32 %s288, 1
    %p292 = scmp.eq.s32.totalorder %s23, 1
    %p293 = scmp.ne.s32.totalorder %s288, %s290
    %p294 = scmp.eq.s32.totalorder %s23, 0
    %p295 = por %p293, %p294
    %p296 = scmp.ne.s32.totalorder %s288, %s290
    %p297 = scmp.eq.s32.totalorder %s28, 1
    %p298 = por %p296, %p297
    %p299 = scmp.ne.s32.totalorder %s290, %s291
    %p300 = scmp.eq.s32.totalorder %s28, 0
    %p301 = por %p299, %p300
    %p302 = scmp.ne.s32.totalorder %s290, %s291
    %p303 = scmp.eq.s32.totalorder %s29, 1
    %p304 = por %p302, %p303
    %p306 = scmp.ne.s32.totalorder %s291, %s305
    %p307 = scmp.eq.s32.totalorder %s29, 0
    %p308 = por %p306, %p307
    %s310 = sadd.s32 %s309, 1
    %p313 = scmp.eq.s32.totalorder %s23, 1
    %p314 = scmp.ne.s32.totalorder %s309, %s311
    %p315 = scmp.eq.s32.totalorder %s23, 0
    %p316 = por %p314, %p315
    %p317 = scmp.ne.s32.totalorder %s309, %s311
    %p318 = scmp.eq.s32.totalorder %s28, 1
    %p319 = por %p317, %p318
    %p320 = scmp.ne.s32.totalorder %s311, %s312
    %p321 = scmp.eq.s32.totalorder %s28, 0
    %p322 = por %p320, %p321
    %p323 = scmp.ne.s32.totalorder %s311, %s312
    %p324 = scmp.eq.s32.totalorder %s29, 1
    %p325 = por %p323, %p324
    %p327 = scmp.ne.s32.totalorder %s312, %s326
    %p328 = scmp.eq.s32.totalorder %s29, 0
    %p329 = por %p327, %p328
    %s331 = sadd.s32 %s330, 1
    %p334 = scmp.eq.s32.totalorder %s23, 1
    %p335 = scmp.ne.s32.totalorder %s330, %s332
    %p336 = scmp.eq.s32.totalorder %s23, 0
    %p337 = por %p335, %p336
    %p338 = scmp.ne.s32.totalorder %s330, %s332
    %p339 = scmp.eq.s32.totalorder %s28, 1
    %p340 = por %p338, %p339
    %p341 = scmp.ne.s32.totalorder %s332, %s333
    %p342 = scmp.eq.s32.totalorder %s28, 0
    %p343 = por %p341, %p342
    %p344 = scmp.ne.s32.totalorder %s332, %s333
    %p345 = scmp.eq.s32.totalorder %s29, 1
    %p346 = por %p344, %p345
    %p348 = scmp.ne.s32.totalorder %s333, %s347
    %p349 = scmp.eq.s32.totalorder %s29, 0
    %p350 = por %p348, %p349
    %s352 = sadd.s32 %s351, 1
    %p355 = scmp.eq.s32.totalorder %s23, 1
    %p356 = scmp.ne.s32.totalorder %s351, %s353
    %p357 = scmp.eq.s32.totalorder %s23, 0
    %p358 = por %p356, %p357
    %p359 = scmp.ne.s32.totalorder %s351, %s353
    %p360 = scmp.eq.s32.totalorder %s28, 1
    %p361 = por %p359, %p360
    %p362 = scmp.ne.s32.totalorder %s353, %s354
    %p363 = scmp.eq.s32.totalorder %s28, 0
    %p364 = por %p362, %p363
    %p365 = scmp.ne.s32.totalorder %s353, %s354
    %p366 = scmp.eq.s32.totalorder %s29, 1
    %p367 = por %p365, %p366
    %p369 = scmp.ne.s32.totalorder %s354, %s368
    %p370 = scmp.eq.s32.totalorder %s29, 0
    %p371 = por %p369, %p370
    %s373 = sadd.s32 %s372, 1
    %p376 = scmp.eq.s32.totalorder %s23, 1
    %p377 = scmp.ne.s32.totalorder %s372, %s374
    %p378 = scmp.eq.s32.totalorder %s23, 0
    %p379 = por %p377, %p378
    %p380 = scmp.ne.s32.totalorder %s372, %s374
    %p381 = scmp.eq.s32.totalorder %s28, 1
    %p382 = por %p380, %p381
    %p383 = scmp.ne.s32.totalorder %s374, %s375
    %p384 = scmp.eq.s32.totalorder %s28, 0
    %p385 = por %p383, %p384
    %p386 = scmp.ne.s32.totalorder %s374, %s375
    %p387 = scmp.eq.s32.totalorder %s29, 1
    %p388 = por %p386, %p387
    %p390 = scmp.ne.s32.totalorder %s375, %s389
    %p391 = scmp.eq.s32.totalorder %s29, 0
    %p392 = por %p390, %p391
    %s393 = ssub.s32 %s23, %s30
    %p394 = scmp.eq.s32.totalorder %s393, 0
    %s396 = sadd.s32 %s395, 1
    %s397 = scalar_select %p394, %s395, %s396
    %p400 = pneg %p394
    %p401 = scmp.eq.s32.totalorder %s23, 1
    %p402 = por %p400, %p401
    %p403 = scmp.ne.s32.totalorder %s395, %s398
    %p404 = scmp.eq.s32.totalorder %s23, 0
    %p405 = por %p403, %p404
    %p406 = scmp.ne.s32.totalorder %s395, %s398
    %p407 = scmp.eq.s32.totalorder %s28, 1
    %p408 = por %p406, %p407
    %p409 = scmp.ne.s32.totalorder %s398, %s399
    %p410 = scmp.eq.s32.totalorder %s28, 0
    %p411 = por %p409, %p410
    %p412 = scmp.ne.s32.totalorder %s398, %s399
    %p413 = scmp.eq.s32.totalorder %s29, 1
    %p414 = por %p412, %p413
    %p416 = scmp.ne.s32.totalorder %s399, %s415
    %p417 = scmp.eq.s32.totalorder %s29, 0
    %p418 = por %p416, %p417
    %p419 = scmp.le.s32.totalorder 1, %s23
    %p420 = scmp.lt.s32.totalorder %s23, 3
    %p421 = pnand %p419, %p420
    %p422 = pneg %p421
    // Predicated region
    $region9: #{ssd_forward.1} parent=5 // pred_check
      _
    $region10: #{ssd_forward.1} parent=5 // pred_check_branch
      %424 = sbr.rel (%p421) target = $region12
    $region11: #{ssd_forward.1} parent=5 // pred_region
      %s425 = ssub.s32 %s23, 1
      // Predicated region
      $region13: #{ssd_forward.1} parent=11 // pred_check
        %p426 = pneg %p70
      $region14: #{ssd_forward.1} parent=11 // pred_check_branch
        %428 = sbr.rel (%p426) target = $region16
      $region15: #{ssd_forward.1} parent=11 // pred_region
        _
      $region16: #{ssd_forward.1} parent=11 // pred_fallthru
        _
      // Predicated region
      $region17: #{ssd_forward.1} parent=11 // pred_check
        %p429 = pneg %p91
      $region18: #{ssd_forward.1} parent=11 // pred_check_branch
        %431 = sbr.rel (%p429) target = $region20
      $region19: #{ssd_forward.1} parent=11 // pred_region
        _
      $region20: #{ssd_forward.1} parent=11 // pred_fallthru
        _
      // Predicated region
      $region21: #{ssd_forward.1} parent=11 // pred_check
        %p432 = pneg %p112
      $region22: #{ssd_forward.1} parent=11 // pred_check_branch
        %434 = sbr.rel (%p432) target = $region24
      $region23: #{ssd_forward.1} parent=11 // pred_region
        _
      $region24: #{ssd_forward.1} parent=11 // pred_fallthru
        _
      // Predicated region
      $region25: #{ssd_forward.1} parent=11 // pred_check
        %p435 = pneg %p133
      $region26: #{ssd_forward.1} parent=11 // pred_check_branch
        %437 = sbr.rel (%p435) target = $region28
      $region27: #{ssd_forward.1} parent=11 // pred_region
        _
      $region28: #{ssd_forward.1} parent=11 // pred_fallthru
        _
      // Predicated region
      $region29: #{ssd_forward.1} parent=11 // pred_check
        %p438 = pneg %p154
      $region30: #{ssd_forward.1} parent=11 // pred_check_branch
        %440 = sbr.rel (%p438) target = $region32
      $region31: #{ssd_forward.1} parent=11 // pred_region
        _
      $region32: #{ssd_forward.1} parent=11 // pred_fallthru
        _
      // Predicated region
      $region33: #{ssd_forward.1} parent=11 // pred_check
        %p441 = pneg %p175
      $region34: #{ssd_forward.1} parent=11 // pred_check_branch
        %443 = sbr.rel (%p441) target = $region36
      $region35: #{ssd_forward.1} parent=11 // pred_region
        _
      $region36: #{ssd_forward.1} parent=11 // pred_fallthru
        _
      // Predicated region
      $region37: #{ssd_forward.1} parent=11 // pred_check
        %p444 = pneg %p196
      $region38: #{ssd_forward.1} parent=11 // pred_check_branch
        %446 = sbr.rel (%p444) target = $region40
      $region39: #{ssd_forward.1} parent=11 // pred_region
        _
      $region40: #{ssd_forward.1} parent=11 // pred_fallthru
        _
      // Predicated region
      $region41: #{ssd_forward.1} parent=11 // pred_check
        %p447 = pneg %p217
      $region42: #{ssd_forward.1} parent=11 // pred_check_branch
        %449 = sbr.rel (%p447) target = $region44
      $region43: #{ssd_forward.1} parent=11 // pred_region
        _
      $region44: #{ssd_forward.1} parent=11 // pred_fallthru
        _
      // Predicated region
      $region45: #{ssd_forward.1} parent=11 // pred_check
        %p450 = pneg %p238
      $region46: #{ssd_forward.1} parent=11 // pred_check_branch
        %452 = sbr.rel (%p450) target = $region48
      $region47: #{ssd_forward.1} parent=11 // pred_region
        _
      $region48: #{ssd_forward.1} parent=11 // pred_fallthru
        _
      // Predicated region
      $region49: #{ssd_forward.1} parent=11 // pred_check
        %p453 = pneg %p259
      $region50: #{ssd_forward.1} parent=11 // pred_check_branch
        %455 = sbr.rel (%p453) target = $region52
      $region51: #{ssd_forward.1} parent=11 // pred_region
        _
      $region52: #{ssd_forward.1} parent=11 // pred_fallthru
        _
      // Predicated region
      $region53: #{ssd_forward.1} parent=11 // pred_check
        %p456 = pneg %p280
      $region54: #{ssd_forward.1} parent=11 // pred_check_branch
        %458 = sbr.rel (%p456) target = $region56
      $region55: #{ssd_forward.1} parent=11 // pred_region
        _
      $region56: #{ssd_forward.1} parent=11 // pred_fallthru
        _
      // Predicated region
      $region57: #{ssd_forward.1} parent=11 // pred_check
        %p459 = pneg %p301
      $region58: #{ssd_forward.1} parent=11 // pred_check_branch
        %461 = sbr.rel (%p459) target = $region60
      $region59: #{ssd_forward.1} parent=11 // pred_region
        _
      $region60: #{ssd_forward.1} parent=11 // pred_fallthru
        _
      // Predicated region
      $region61: #{ssd_forward.1} parent=11 // pred_check
        %p462 = pneg %p322
      $region62: #{ssd_forward.1} parent=11 // pred_check_branch
        %464 = sbr.rel (%p462) target = $region64
      $region63: #{ssd_forward.1} parent=11 // pred_region
        _
      $region64: #{ssd_forward.1} parent=11 // pred_fallthru
        _
      // Predicated region
      $region65: #{ssd_forward.1} parent=11 // pred_check
        %p465 = pneg %p343
      $region66: #{ssd_forward.1} parent=11 // pred_check_branch
        %467 = sbr.rel (%p465) target = $region68
      $region67: #{ssd_forward.1} parent=11 // pred_region
        _
      $region68: #{ssd_forward.1} parent=11 // pred_fallthru
        _
      // Predicated region
      $region69: #{ssd_forward.1} parent=11 // pred_check
        %p468 = pneg %p364
      $region70: #{ssd_forward.1} parent=11 // pred_check_branch
        %470 = sbr.rel (%p468) target = $region72
      $region71: #{ssd_forward.1} parent=11 // pred_region
        _
      $region72: #{ssd_forward.1} parent=11 // pred_fallthru
        _
      // Predicated region
      $region73: #{ssd_forward.1} parent=11 // pred_check
        %p471 = pneg %p385
      $region74: #{ssd_forward.1} parent=11 // pred_check_branch
        %473 = sbr.rel (%p471) target = $region76
      $region75: #{ssd_forward.1} parent=11 // pred_region
        _
      $region76: #{ssd_forward.1} parent=11 // pred_fallthru
        _
    $region12: #{ssd_forward.1} parent=5 // pred_fallthru
      _
    %p474 = scmp.lt.s32.totalorder %s23, 2
    // Predicated region
    $region77: #{ssd_forward.1} parent=5 // pred_check
      %p475 = pneg %p474
    $region78: #{ssd_forward.1} parent=5 // pred_check_branch
      %477 = sbr.rel (%p475) target = $region80
    $region79: #{ssd_forward.1} parent=5 // pred_region
      // Predicated region
      $region81: #{ssd_forward.1} parent=79 // pred_check
        %p478 = pneg %p43
      $region82: #{ssd_forward.1} parent=79 // pred_check_branch
        %480 = sbr.rel (%p478) target = $region84
      $region83: #{ssd_forward.1} parent=79 // pred_region
        %p481 = scmp.lt.s32.totalorder %s23, 1
        %s482 = scalar_select %p481, %s23, 1
        %s483 = smul.addr %s482, 2
        %s484 = smul.addr %s483, 8
        %s485 = scalar_lea.vmem %s0, %s484
      $region84: #{ssd_forward.1} parent=79 // pred_fallthru
        _
    $region80: #{ssd_forward.1} parent=5 // pred_fallthru
      _
    %p486 = scmp.le.s32.totalorder 1, %s23
    %p487 = scmp.lt.s32.totalorder %s23, 3
    %p488 = pnand %p486, %p487
    %p489 = pneg %p488
    // Predicated region
    $region85: #{ssd_forward.1} parent=5 // pred_check
      _
    $region86: #{ssd_forward.1} parent=5 // pred_check_branch
      %491 = sbr.rel (%p488) target = $region88
    $region87: #{ssd_forward.1} parent=5 // pred_region
      %s492 = ssub.s32 %s23, 1
      %p493 = scmp.lt.s32.totalorder %s28, 1
      %s494 = scalar_select %p493, %s28, 1
      %s495 = smul.addr %s494, 2
      %s496 = smul.addr %s495, 8
      %s497 = scalar_lea.vmem %s0, %s496
      %p498 = pneg %p49
      %p499 = pneg %p46
      %p500 = pneg %p70
      %p501 = pneg %p67
      %p502 = pneg %p91
      %p503 = pneg %p88
      %p504 = pneg %p112
      %p505 = pneg %p109
      %p506 = pneg %p133
      %p507 = pneg %p130
      %p508 = pneg %p154
      %p509 = pneg %p151
      %p510 = pneg %p175
      %p511 = pneg %p172
      %p512 = pneg %p196
      %p513 = pneg %p193
      %p514 = pneg %p217
      %p515 = pneg %p214
      %p516 = pneg %p238
      %p517 = pneg %p235
      %p518 = pneg %p259
      %p519 = pneg %p256
      %p520 = pneg %p280
      %p521 = pneg %p277
      %p522 = pneg %p301
      %p523 = pneg %p298
      %p524 = pneg %p322
      %p525 = pneg %p319
      %p526 = pneg %p343
      %p527 = pneg %p340
      %p528 = pneg %p364
      %p529 = pneg %p361
      %p530 = pneg %p385
      %p531 = pneg %p382
      %p532 = pneg %p411
      %p533 = pneg %p408
      %p534 = scmp.lt.s32.totalorder %s28, 1
      %s535 = scalar_select %p534, %s28, 1
      %s536 = smul.addr %s535, 6
      %s537 = smul.addr %s536, 8
      %s538 = scalar_lea.vmem %s17, %s537
      %p539 = scmp.lt.s32.totalorder %s28, 1
      %s540 = scalar_select %p539, %s28, 1
      %s541 = smul.addr %s540, 2
      %s542 = smul.addr %s541, 8
      %s543 = scalar_lea.vmem %s0, %s542
      %p544 = scmp.lt.s32.totalorder %s28, 1
      %s545 = scalar_select %p544, %s28, 1
      %s546 = smul.addr %s545, 6
      %s547 = smul.addr %s546, 8
      %s548 = scalar_lea.vmem %s17, %s547
      %v550 = vlaneseq
      %v551 = vand.u32 %v550, 127
      %v552 = vld [vmem:[%s543] sm:$0xff]
      %v553 = vld [vmem:[%s543 + $0x8] sm:$0xff]
      %v554 = vld [vmem:[%s16] sm:$0xff]
      %v555 = vld [vmem:[%s16 + $0x8] sm:$0xff]
      %v556 = vld [vmem:[%s16 + $0x10] sm:$0xff]
      %v557 = vld [vmem:[%s12] sm:$0xff]
      %v558 = vld [vmem:[%s12 + $0x8] sm:$0xff]
      %v559 = vld [vmem:[%s12 + $0x10] sm:$0x1]
      %v560 = vld [vmem:[%s12 + $0x18] sm:$0x1]
      %561 = vrot.lane.b32.xlu0 %v552, 17
      %v562 = vpop.permute.xlu0 %561
      %563 = vrot.lane.b32.xlu0 %v553, 17
      %v564 = vpop.permute.xlu0 %563
      %vm565 = vcmp.lt.s32.totalorder %v551, 17
      %v566 = vsel %vm565, %v562, %v564
      %v567 = vsel %vm565, %v564, %v562
      %v568 = vlaneseq
      %v569 = vshrl.u32 %v568, 7
      %v570 = vsub.s32 0, %v569
      %v571 = vrot.slane %v557, %v570
      %v572 = vlaneseq
      %v573 = vshrl.u32 %v572, 7
      %v574 = vsub.s32 0, %v573
      %v575 = vrot.slane %v558, %v574
      %v576 = vmul.f32 %v567, %v571
      %v577 = vmul.f32 %v566, %v575
      %578 = vrot.lane.b32.xlu0 %v552, 16
      %v579 = vpop.permute.xlu0 %578
      %580 = vrot.lane.b32.xlu0 %v553, 16
      %v581 = vpop.permute.xlu0 %580
      %vm582 = vcmp.lt.s32.totalorder %v551, 16
      %v583 = vsel %vm582, %v579, %v581
      %v584 = vsel %vm582, %v581, %v579
      %v585 = vlaneseq
      %v586 = vshrl.u32 %v585, 7
      %v587 = vsub.s32 1, %v586
      %v588 = vrot.slane %v557, %v587
      %v589 = vlaneseq
      %v590 = vshrl.u32 %v589, 7
      %v591 = vsub.s32 1, %v590
      %v592 = vrot.slane %v558, %v591
      %v593 = vmul.f32 %v584, %v588
      %v594 = vmul.f32 %v583, %v592
      %595 = vrot.lane.b32.xlu0 %v552, 15
      %v596 = vpop.permute.xlu0 %595
      %597 = vrot.lane.b32.xlu0 %v553, 15
      %v598 = vpop.permute.xlu0 %597
      %vm599 = vcmp.lt.s32.totalorder %v551, 15
      %v600 = vsel %vm599, %v596, %v598
      %v601 = vsel %vm599, %v598, %v596
      %v602 = vlaneseq
      %v603 = vshrl.u32 %v602, 7
      %v604 = vsub.s32 2, %v603
      %v605 = vrot.slane %v557, %v604
      %v606 = vlaneseq
      %v607 = vshrl.u32 %v606, 7
      %v608 = vsub.s32 2, %v607
      %v609 = vrot.slane %v558, %v608
      %v610 = vmul.f32 %v601, %v605
      %v611 = vmul.f32 %v600, %v609
      %612 = vrot.lane.b32.xlu0 %v552, 1
      %v613 = vpop.permute.xlu0 %612
      %614 = vrot.lane.b32.xlu0 %v553, 1
      %v615 = vpop.permute.xlu0 %614
      %vm616 = vcmp.lt.s32.totalorder %v551, 1
      %v617 = vsel %vm616, %v613, %v615
      %v618 = vsel %vm616, %v615, %v613
      %v619 = vlaneseq
      %v620 = vshrl.u32 %v619, 7
      %v621 = vsub.s32 3, %v620
      %v622 = vrot.slane %v557, %v621
      %v623 = vlaneseq
      %v624 = vshrl.u32 %v623, 7
      %v625 = vsub.s32 3, %v624
      %v626 = vrot.slane %v558, %v625
      %v627 = vmul.f32 %v618, %v622
      %v628 = vmul.f32 %v617, %v626
      %v629 = vlaneseq
      %v630 = vshrl.u32 %v629, 7
      %v631 = vsub.s32 4, %v630
      %v632 = vrot.slane %v557, %v631
      %v633 = vlaneseq
      %v634 = vshrl.u32 %v633, 7
      %v635 = vsub.s32 4, %v634
      %v636 = vrot.slane %v558, %v635
      %v637 = vmul.f32 %v552, %v632
      %v638 = vmul.f32 %v553, %v636
      %639 = vrot.lane.b32.xlu0 %v552, 127
      %v640 = vpop.permute.xlu0 %639
      %641 = vrot.lane.b32.xlu0 %v553, 127
      %v642 = vpop.permute.xlu0 %641
      %vm643 = vcmp.lt.s32.totalorder %v551, 127
      %v644 = vsel %vm643, %v640, %v642
      %v645 = vsel %vm643, %v642, %v640
      %v646 = vlaneseq
      %v647 = vshrl.u32 %v646, 7
      %v648 = vsub.s32 5, %v647
      %v649 = vrot.slane %v557, %v648
      %v650 = vlaneseq
      %v651 = vshrl.u32 %v650, 7
      %v652 = vsub.s32 5, %v651
      %v653 = vrot.slane %v558, %v652
      %v654 = vmul.f32 %v644, %v649
      %v655 = vmul.f32 %v645, %v653
      %656 = vrot.lane.b32.xlu0 %v552, 113
      %v657 = vpop.permute.xlu0 %656
      %658 = vrot.lane.b32.xlu0 %v553, 113
      %v659 = vpop.permute.xlu0 %658
      %vm660 = vcmp.lt.s32.totalorder %v551, 113
      %v661 = vsel %vm660, %v657, %v659
      %v662 = vsel %vm660, %v659, %v657
      %v663 = vlaneseq
      %v664 = vshrl.u32 %v663, 7
      %v665 = vsub.s32 6, %v664
      %v666 = vrot.slane %v557, %v665
      %v667 = vlaneseq
      %v668 = vshrl.u32 %v667, 7
      %v669 = vsub.s32 6, %v668
      %v670 = vrot.slane %v558, %v669
      %v671 = vmul.f32 %v661, %v666
      %v672 = vmul.f32 %v662, %v670
      %673 = vrot.lane.b32.xlu0 %v552, 112
      %v674 = vpop.permute.xlu0 %673
      %675 = vrot.lane.b32.xlu0 %v553, 112
      %v676 = vpop.permute.xlu0 %675
      %vm677 = vcmp.lt.s32.totalorder %v551, 112
      %v678 = vsel %vm677, %v674, %v676
      %v679 = vsel %vm677, %v676, %v674
      %v680 = vlaneseq
      %v681 = vshrl.u32 %v680, 7
      %v682 = vsub.s32 7, %v681
      %v683 = vrot.slane %v557, %v682
      %v684 = vlaneseq
      %v685 = vshrl.u32 %v684, 7
      %v686 = vsub.s32 7, %v685
      %v687 = vrot.slane %v558, %v686
      %v688 = vmul.f32 %v678, %v683
      %v689 = vmul.f32 %v679, %v687
      %690 = vrot.lane.b32.xlu0 %v552, 111
      %v691 = vpop.permute.xlu0 %690
      %692 = vrot.lane.b32.xlu0 %v553, 111
      %v693 = vpop.permute.xlu0 %692
      %vm694 = vcmp.lt.s32.totalorder %v551, 111
      %v695 = vsel %vm694, %v691, %v693
      %v696 = vsel %vm694, %v693, %v691
      %v697 = vlaneseq
      %v698 = vshrl.u32 %v697, 7
      %v699 = vsub.s32 0, %v698
      %v700 = vrot.slane %v559, %v699
      %v701 = vlaneseq
      %v702 = vshrl.u32 %v701, 7
      %v703 = vsub.s32 0, %v702
      %v704 = vrot.slane %v560, %v703
      %v705 = vmul.f32 %v695, %v700
      %v706 = vmul.f32 %v696, %v704
      %v707 = vpack.c.bf16 %v593, %v576
      %v708 = vpack.c.bf16 %v594, %v577
      %v709 = vpack.c.bf16 %v627, %v610
      %v710 = vpack.c.bf16 %v628, %v611
      %v711 = vpack.c.bf16 %v654, %v637
      %v712 = vpack.c.bf16 %v655, %v638
      %v713 = vpack.c.bf16 %v688, %v671
      %v714 = vpack.c.bf16 %v689, %v672
      %v715 = vpack.c.bf16 1.0, %v705
      %v716 = vpack.c.bf16 1.0, %v706
      %v717 = vld [vmem:[%s1] sm:$0xf]
      %vm718 = vcmask 596992
      %v720 = vsel %vm718, %v717, 0
      %vm722 = vcmask 1043456
      %vm723 = vcmask 1044480
      %v724 = vsel %vm722, 4294967295, 65535
      %v725 = vsel %vm723, %v724, 0
      %v727 = vand.u32 %v715, %v725
      %v730 = vand.u32 %v716, %v725
      %732 = vmatprep.subr.bf16.mxu0 0
      %733 = vmatpush1.bf16.msra.mxu0 0
      %734 = vmatprep.subr.bf16.mxu0 0
      %735 = vmatpush1.bf16.msra.mxu0 0
      %736 = vmatprep.subr.bf16.mxu0 0
      %737 = vmatpush1.bf16.msra.mxu0 0
      %738 = vmatprep.subr.bf16.mxu0 %v730
      %739 = vmatpush1.bf16.msra.mxu0 %v727
      %740 = vmatprep.subr.bf16.mxu0 %v714
      %741 = vmatpush1.bf16.msra.mxu0 %v713
      %742 = vmatprep.subr.bf16.mxu0 %v712
      %743 = vmatpush1.bf16.msra.mxu0 %v711
      %744 = vmatprep.subr.bf16.mxu0 %v710
      %745 = vmatpush1.bf16.msra.mxu0 %v709
      %746 = vmatprep.subr.bf16.mxu0 %v708
      %747 = vmatpush1.bf16.msra.mxu0 %v707
      %748 = vmatprep.subr.bf16.mxu0 0
      %749 = vmatpush2.bf16.msra.mxu0 0
      %750 = vmatprep.subr.bf16.mxu0 0
      %751 = vmatpush2.bf16.msra.mxu0 0
      %752 = vmatprep.subr.bf16.mxu0 0
      %753 = vmatpush2.bf16.msra.mxu0 0
      %754 = vmatprep.subr.bf16.mxu0 0
      %755 = vmatpush2.bf16.msra.mxu0 0
      %756 = vmatprep.subr.bf16.mxu0 0
      %757 = vmatpush2.bf16.msra.mxu0 0
      %758 = vmatprep.subr.bf16.mxu0 0
      %759 = vmatpush2.bf16.msra.mxu0 0
      %760 = vmatprep.subr.bf16.mxu0 0
      %761 = vmatpush2.bf16.msra.mxu0 0
      %762 = vmatprep.subr.bf16.mxu0 0
      %763 = vmatpush2.bf16.msra.mxu0 0
      %764 = vmatprep.mubr.bf16.mxu0 0
      %765 = vmatmul.mubr.bf16.gmra.mxu0 %v720
      %v766 = vpop.f32.mrf.mxu0
      %v767 = vadd.f32 0.0, %v766
      %v768 = vpop.f32.mrf.mxu0
      %v769 = vadd.f32 0.0, %v768
      %v770 = vpop.f32.mrf.mxu0
      %v771 = vpop.f32.mrf.mxu0
      %772 = vdwg.mxu0
      %v773 = vmax.f32 %v767, 0.0
      %v774 = vmax.f32 %v769, 0.0
      %775 = vrot.lane.b32.xlu0 %v773, 17
      %v776 = vpop.permute.xlu0 %775
      %777 = vrot.lane.b32.xlu0 %v774, 17
      %v778 = vpop.permute.xlu0 %777
      %v779 = vsel %vm565, %v776, %v778
      %v780 = vsel %vm565, %v778, %v776
      %v781 = vmul.f32 %v780, %v571
      %v782 = vmul.f32 %v779, %v575
      %783 = vrot.lane.b32.xlu0 %v773, 16
      %v784 = vpop.permute.xlu0 %783
      %785 = vrot.lane.b32.xlu0 %v774, 16
      %v786 = vpop.permute.xlu0 %785
      %v787 = vsel %vm582, %v784, %v786
      %v788 = vsel %vm582, %v786, %v784
      %v789 = vmul.f32 %v788, %v588
      %v790 = vmul.f32 %v787, %v592
      %791 = vrot.lane.b32.xlu0 %v773, 15
      %v792 = vpop.permute.xlu0 %791
      %793 = vrot.lane.b32.xlu0 %v774, 15
      %v794 = vpop.permute.xlu0 %793
      %v795 = vsel %vm599, %v792, %v794
      %v796 = vsel %vm599, %v794, %v792
      %v797 = vmul.f32 %v796, %v605
      %v798 = vmul.f32 %v795, %v609
      %799 = vrot.lane.b32.xlu0 %v773, 1
      %v800 = vpop.permute.xlu0 %799
      %801 = vrot.lane.b32.xlu0 %v774, 1
      %v802 = vpop.permute.xlu0 %801
      %v803 = vsel %vm616, %v800, %v802
      %v804 = vsel %vm616, %v802, %v800
      %v805 = vmul.f32 %v804, %v622
      %v806 = vmul.f32 %v803, %v626
      %v807 = vmul.f32 %v773, %v632
      %v808 = vmul.f32 %v774, %v636
      %809 = vrot.lane.b32.xlu0 %v773, 127
      %v810 = vpop.permute.xlu0 %809
      %811 = vrot.lane.b32.xlu0 %v774, 127
      %v812 = vpop.permute.xlu0 %811
      %v813 = vsel %vm643, %v810, %v812
      %v814 = vsel %vm643, %v812, %v810
      %v815 = vmul.f32 %v813, %v649
      %v816 = vmul.f32 %v814, %v653
      %817 = vrot.lane.b32.xlu0 %v773, 113
      %v818 = vpop.permute.xlu0 %817
      %819 = vrot.lane.b32.xlu0 %v774, 113
      %v820 = vpop.permute.xlu0 %819
      %v821 = vsel %vm660, %v818, %v820
      %v822 = vsel %vm660, %v820, %v818
      %v823 = vmul.f32 %v821, %v666
      %v824 = vmul.f32 %v822, %v670
      %825 = vrot.lane.b32.xlu0 %v773, 112
      %v826 = vpop.permute.xlu0 %825
      %827 = vrot.lane.b32.xlu0 %v774, 112
      %v828 = vpop.permute.xlu0 %827
      %v829 = vsel %vm677, %v826, %v828
      %v830 = vsel %vm677, %v828, %v826
      %v831 = vmul.f32 %v829, %v683
      %v832 = vmul.f32 %v830, %v687
      %833 = vrot.lane.b32.xlu0 %v773, 111
      %v834 = vpop.permute.xlu0 %833
      %835 = vrot.lane.b32.xlu0 %v774, 111
      %v836 = vpop.permute.xlu0 %835
      %v837 = vsel %vm694, %v834, %v836
      %v838 = vsel %vm694, %v836, %v834
      %v839 = vmul.f32 %v837, %v700
      %v840 = vmul.f32 %v838, %v704
      %v841 = vpack.c.bf16 %v789, %v781
      %v842 = vpack.c.bf16 %v790, %v782
      %v843 = vpack.c.bf16 %v805, %v797
      %v844 = vpack.c.bf16 %v806, %v798
      %v845 = vpack.c.bf16 %v815, %v807
      %v846 = vpack.c.bf16 %v816, %v808
      %v847 = vpack.c.bf16 %v831, %v823
      %v848 = vpack.c.bf16 %v832, %v824
      %v849 = vpack.c.bf16 1.0, %v839
      %v850 = vpack.c.bf16 1.0, %v840
      %v851 = vld [vmem:[%s2] sm:$0xf]
      %v852 = vld [vmem:[%s2 + $0x4] sm:$0xf]
      %v855 = vunpack.c.l.b16 %v851
      %v856 = vunpack.c.l.b16 %v852
      %v857 = vpack.c.b16 %v856, %v855
      %v859 = vsel %vm718, %v857, 0
      %v862 = vand.u32 %v849, %v725
      %v865 = vand.u32 %v850, %v725
      %867 = vmatprep.subr.bf16.mxu0 0
      %868 = vmatpush1.bf16.msra.mxu0 0
      %869 = vmatprep.subr.bf16.mxu0 0
      %870 = vmatpush1.bf16.msra.mxu0 0
      %871 = vmatprep.subr.bf16.mxu0 0
      %872 = vmatpush1.bf16.msra.mxu0 0
      %873 = vmatprep.subr.bf16.mxu0 %v865
      %874 = vmatpush1.bf16.msra.mxu0 %v862
      %875 = vmatprep.subr.bf16.mxu0 %v848
      %876 = vmatpush1.bf16.msra.mxu0 %v847
      %877 = vmatprep.subr.bf16.mxu0 %v846
      %878 = vmatpush1.bf16.msra.mxu0 %v845
      %879 = vmatprep.subr.bf16.mxu0 %v844
      %880 = vmatpush1.bf16.msra.mxu0 %v843
      %881 = vmatprep.subr.bf16.mxu0 %v842
      %882 = vmatpush1.bf16.msra.mxu0 %v841
      %883 = vmatprep.subr.bf16.mxu0 0
      %884 = vmatpush2.bf16.msra.mxu0 0
      %885 = vmatprep.subr.bf16.mxu0 0
      %886 = vmatpush2.bf16.msra.mxu0 0
      %887 = vmatprep.subr.bf16.mxu0 0
      %888 = vmatpush2.bf16.msra.mxu0 0
      %889 = vmatprep.subr.bf16.mxu0 0
      %890 = vmatpush2.bf16.msra.mxu0 0
      %891 = vmatprep.subr.bf16.mxu0 0
      %892 = vmatpush2.bf16.msra.mxu0 0
      %893 = vmatprep.subr.bf16.mxu0 0
      %894 = vmatpush2.bf16.msra.mxu0 0
      %895 = vmatprep.subr.bf16.mxu0 0
      %896 = vmatpush2.bf16.msra.mxu0 0
      %897 = vmatprep.subr.bf16.mxu0 0
      %898 = vmatpush2.bf16.msra.mxu0 0
      %899 = vmatprep.mubr.bf16.mxu0 0
      %900 = vmatmul.mubr.bf16.gmra.mxu0 %v859
      %v901 = vpop.f32.mrf.mxu0
      %v902 = vadd.f32 0.0, %v901
      %v903 = vpop.f32.mrf.mxu0
      %v904 = vadd.f32 0.0, %v903
      %v905 = vpop.f32.mrf.mxu0
      %v906 = vadd.f32 0.0, %v905
      %v907 = vpop.f32.mrf.mxu0
      %v908 = vadd.f32 0.0, %v907
      %909 = vdwg.mxu0
      %v910 = vmax.f32 %v902, 0.0
      %v911 = vmax.f32 %v904, 0.0
      %v912 = vmax.f32 %v906, 0.0
      %v913 = vmax.f32 %v908, 0.0
      %v914 = vpack.c.bf16 %v912, %v910
      %v915 = vpack.c.bf16 %v913, %v911
      %v916 = vld [vmem:[%s9] sm:$0xf]
      %v917 = vld [vmem:[%s9 + $0x4] sm:$0xf]
      %v918 = vld [vmem:[%s9 + $0x8] sm:$0xf]
      %v919 = vld [vmem:[%s9 + $0xc] sm:$0xf]
      %v920 = vld [vmem:[%s9 + $0x10] sm:$0xf]
      %v921 = vld [vmem:[%s9 + $0x14] sm:$0xf]
      %v922 = vld [vmem:[%s9 + $0x18] sm:$0xf]
      %v923 = vld [vmem:[%s9 + $0x1c] sm:$0xf]
      %v924 = vld [vmem:[%s9 + $0x20] sm:$0xf]
      %v925 = vld [vmem:[%s9 + $0x24] sm:$0xf]
      %v926 = vld [vmem:[%s9 + $0x28] sm:$0xf]
      %v927 = vld [vmem:[%s9 + $0x2c] sm:$0xf]
      %v928 = vld [vmem:[%s9 + $0x30] sm:$0xf]
      %v929 = vld [vmem:[%s9 + $0x34] sm:$0xf]
      %v930 = vld [vmem:[%s9 + $0x38] sm:$0xf]
      %v931 = vld [vmem:[%s9 + $0x3c] sm:$0xf]
      %v932 = vld [vmem:[%s9 + $0x40] sm:$0xf]
      %v933 = vld [vmem:[%s9 + $0x44] sm:$0xf]
      %v934 = vld [vmem:[%s9 + $0x48] sm:$0xf]
      %v935 = vld [vmem:[%s9 + $0x4c] sm:$0xf]
      %v936 = vld [vmem:[%s9 + $0x50] sm:$0xf]
      %v937 = vld [vmem:[%s9 + $0x54] sm:$0xf]
      %v938 = vld [vmem:[%s9 + $0x58] sm:$0xf]
      %v939 = vld [vmem:[%s9 + $0x5c] sm:$0xf]
      %v940 = vld [vmem:[%s9 + $0x60] sm:$0xf]
      %v941 = vld [vmem:[%s9 + $0x64] sm:$0xf]
      %v942 = vld [vmem:[%s9 + $0x68] sm:$0xf]
      %v943 = vld [vmem:[%s9 + $0x6c] sm:$0xf]
      %v944 = vld [vmem:[%s9 + $0x70] sm:$0xf]
      %v945 = vld [vmem:[%s9 + $0x74] sm:$0xf]
      %v946 = vld [vmem:[%s9 + $0x78] sm:$0xf]
      %v947 = vld [vmem:[%s9 + $0x7c] sm:$0xf]
      %v980 = vunpack.c.l.b16 %v916
      %v981 = vunpack.c.l.b16 %v917
      %v982 = vunpack.c.l.b16 %v918
      %v983 = vunpack.c.l.b16 %v919
      %v984 = vunpack.c.l.b16 %v920
      %v985 = vunpack.c.l.b16 %v921
      %v986 = vunpack.c.l.b16 %v922
      %v987 = vunpack.c.l.b16 %v923
      %v988 = vunpack.c.l.b16 %v924
      %v989 = vunpack.c.l.b16 %v925
      %v990 = vunpack.c.l.b16 %v926
      %v991 = vunpack.c.l.b16 %v927
      %v992 = vunpack.c.l.b16 %v928
      %v993 = vunpack.c.l.b16 %v929
      %v994 = vunpack.c.l.b16 %v930
      %v995 = vunpack.c.l.b16 %v931
      %v996 = vunpack.c.l.b16 %v932
      %v997 = vunpack.c.l.b16 %v933
      %v998 = vunpack.c.l.b16 %v934
      %v999 = vunpack.c.l.b16 %v935
      %v1000 = vunpack.c.l.b16 %v936
      %v1001 = vunpack.c.l.b16 %v937
      %v1002 = vunpack.c.l.b16 %v938
      %v1003 = vunpack.c.l.b16 %v939
      %v1004 = vunpack.c.l.b16 %v940
      %v1005 = vunpack.c.l.b16 %v941
      %v1006 = vunpack.c.l.b16 %v942
      %v1007 = vunpack.c.l.b16 %v943
      %v1008 = vunpack.c.l.b16 %v944
      %v1009 = vunpack.c.l.b16 %v945
      %v1010 = vunpack.c.l.b16 %v946
      %v1011 = vunpack.c.l.b16 %v947
      %v1012 = vpack.c.b16 %v981, %v980
      %v1013 = vpack.c.b16 %v983, %v982
      %v1014 = vpack.c.b16 %v985, %v984
      %v1015 = vpack.c.b16 %v987, %v986
      %v1016 = vpack.c.b16 %v989, %v988
      %v1017 = vpack.c.b16 %v991, %v990
      %v1018 = vpack.c.b16 %v993, %v992
      %v1019 = vpack.c.b16 %v995, %v994
      %v1020 = vpack.c.b16 %v997, %v996
      %v1021 = vpack.c.b16 %v999, %v998
      %v1022 = vpack.c.b16 %v1001, %v1000
      %v1023 = vpack.c.b16 %v1003, %v1002
      %v1024 = vpack.c.b16 %v1005, %v1004
      %v1025 = vpack.c.b16 %v1007, %v1006
      %v1026 = vpack.c.b16 %v1009, %v1008
      %v1027 = vpack.c.b16 %v1011, %v1010
      %1044 = vmatprep.subr.bf16.mxu0 0
      %1045 = vmatpush1.bf16.msra.mxu0 %v1019
      %1046 = vmatprep.subr.bf16.mxu0 0
      %1047 = vmatpush1.bf16.msra.mxu0 %v1018
      %1048 = vmatprep.subr.bf16.mxu0 0
      %1049 = vmatpush1.bf16.msra.mxu0 %v1017
      %1050 = vmatprep.subr.bf16.mxu0 0
      %1051 = vmatpush1.bf16.msra.mxu0 %v1016
      %1052 = vmatprep.subr.bf16.mxu0 0
      %1053 = vmatpush1.bf16.msra.mxu0 %v1015
      %1054 = vmatprep.subr.bf16.mxu0 0
      %1055 = vmatpush1.bf16.msra.mxu0 %v1014
      %1056 = vmatprep.subr.bf16.mxu0 0
      %1057 = vmatpush1.bf16.msra.mxu0 %v1013
      %1058 = vmatprep.subr.bf16.mxu0 0
      %1059 = vmatpush1.bf16.msra.mxu0 %v1012
      %1060 = vmatprep.subr.bf16.mxu0 0
      %1061 = vmatpush2.bf16.msra.mxu0 %v1027
      %1062 = vmatprep.subr.bf16.mxu0 0
      %1063 = vmatpush2.bf16.msra.mxu0 %v1026
      %1064 = vmatprep.subr.bf16.mxu0 0
      %1065 = vmatpush2.bf16.msra.mxu0 %v1025
      %1066 = vmatprep.subr.bf16.mxu0 0
      %1067 = vmatpush2.bf16.msra.mxu0 %v1024
      %1068 = vmatprep.subr.bf16.mxu0 0
      %1069 = vmatpush2.bf16.msra.mxu0 %v1023
      %1070 = vmatprep.subr.bf16.mxu0 0
      %1071 = vmatpush2.bf16.msra.mxu0 %v1022
      %1072 = vmatprep.subr.bf16.mxu0 0
      %1073 = vmatpush2.bf16.msra.mxu0 %v1021
      %1074 = vmatprep.subr.bf16.mxu0 0
      %1075 = vmatpush2.bf16.msra.mxu0 %v1020
      %1076 = vmatprep.mubr.bf16.mxu0 %v915
      %1077 = vmatmul.mubr.bf16.gmra.mxu0 %v914
      %v1078 = vpop.f32.mrf.mxu0
      %v1079 = vadd.f32 0.0, %v1078
      %v1080 = vpop.f32.mrf.mxu0
      %v1081 = vpop.f32.mrf.mxu0
      %v1082 = vadd.f32 0.0, %v1081
      %v1083 = vpop.f32.mrf.mxu0
      %1084 = vdwg.mxu0
      %v1085 = vld [vmem:[%s13] sm:$0xff]
      %v1086 = vld [vmem:[%s13 + $0x8] sm:$0x1]
      %1087 = vrot.lane.b32.xlu0 %v1079, 9
      %v1088 = vpop.permute.xlu0 %1087
      %1089 = vrot.lane.b32.xlu0 %v1082, 9
      %v1090 = vpop.permute.xlu0 %1089
      %v1091 = vlaneseq
      %v1092 = vshrl.u32 %v1091, 7
      %v1093 = vsub.s32 0, %v1092
      %v1094 = vrot.slane %v1085, %v1093
      %v1095 = vmul.f32 %v1088, %v1094
      %v1096 = vmul.f32 %v1090, %v1094
      %1097 = vrot.lane.b32.xlu0 %v1079, 8
      %v1098 = vpop.permute.xlu0 %1097
      %1099 = vrot.lane.b32.xlu0 %v1082, 8
      %v1100 = vpop.permute.xlu0 %1099
      %v1101 = vlaneseq
      %v1102 = vshrl.u32 %v1101, 7
      %v1103 = vsub.s32 1, %v1102
      %v1104 = vrot.slane %v1085, %v1103
      %v1105 = vmul.f32 %v1098, %v1104
      %v1106 = vmul.f32 %v1100, %v1104
      %1107 = vrot.lane.b32.xlu0 %v1079, 7
      %v1108 = vpop.permute.xlu0 %1107
      %1109 = vrot.lane.b32.xlu0 %v1082, 7
      %v1110 = vpop.permute.xlu0 %1109
      %v1111 = vlaneseq
      %v1112 = vshrl.u32 %v1111, 7
      %v1113 = vsub.s32 2, %v1112
      %v1114 = vrot.slane %v1085, %v1113
      %v1115 = vmul.f32 %v1108, %v1114
      %v1116 = vmul.f32 %v1110, %v1114
      %1117 = vrot.lane.b32.xlu0 %v1079, 1
      %v1118 = vpop.permute.xlu0 %1117
      %1119 = vrot.lane.b32.xlu0 %v1082, 1
      %v1120 = vpop.permute.xlu0 %1119
      %v1121 = vlaneseq
      %v1122 = vshrl.u32 %v1121, 7
      %v1123 = vsub.s32 3, %v1122
      %v1124 = vrot.slane %v1085, %v1123
      %v1125 = vmul.f32 %v1118, %v1124
      %v1126 = vmul.f32 %v1120, %v1124
      %v1127 = vlaneseq
      %v1128 = vshrl.u32 %v1127, 7
      %v1129 = vsub.s32 4, %v1128
      %v1130 = vrot.slane %v1085, %v1129
      %v1131 = vmul.f32 %v1079, %v1130
      %v1132 = vmul.f32 %v1082, %v1130
      %1133 = vrot.lane.b32.xlu0 %v1079, 127
      %v1134 = vpop.permute.xlu0 %1133
      %1135 = vrot.lane.b32.xlu0 %v1082, 127
      %v1136 = vpop.permute.xlu0 %1135
      %v1137 = vlaneseq
      %v1138 = vshrl.u32 %v1137, 7
      %v1139 = vsub.s32 5, %v1138
      %v1140 = vrot.slane %v1085, %v1139
      %v1141 = vmul.f32 %v1134, %v1140
      %v1142 = vmul.f32 %v1136, %v1140
      %1143 = vrot.lane.b32.xlu0 %v1079, 121
      %v1144 = vpop.permute.xlu0 %1143
      %1145 = vrot.lane.b32.xlu0 %v1082, 121
      %v1146 = vpop.permute.xlu0 %1145
      %v1147 = vlaneseq
      %v1148 = vshrl.u32 %v1147, 7
      %v1149 = vsub.s32 6, %v1148
      %v1150 = vrot.slane %v1085, %v1149
      %v1151 = vmul.f32 %v1144, %v1150
      %v1152 = vmul.f32 %v1146, %v1150
      %1153 = vrot.lane.b32.xlu0 %v1079, 120
      %v1154 = vpop.permute.xlu0 %1153
      %1155 = vrot.lane.b32.xlu0 %v1082, 120
      %v1156 = vpop.permute.xlu0 %1155
      %v1157 = vlaneseq
      %v1158 = vshrl.u32 %v1157, 7
      %v1159 = vsub.s32 7, %v1158
      %v1160 = vrot.slane %v1085, %v1159
      %v1161 = vmul.f32 %v1154, %v1160
      %v1162 = vmul.f32 %v1156, %v1160
      %1163 = vrot.lane.b32.xlu0 %v1079, 119
      %v1164 = vpop.permute.xlu0 %1163
      %1165 = vrot.lane.b32.xlu0 %v1082, 119
      %v1166 = vpop.permute.xlu0 %1165
      %v1167 = vlaneseq
      %v1168 = vshrl.u32 %v1167, 7
      %v1169 = vsub.s32 0, %v1168
      %v1170 = vrot.slane %v1086, %v1169
      %v1171 = vmul.f32 %v1164, %v1170
      %v1172 = vmul.f32 %v1166, %v1170
      %v1173 = vpack.c.bf16 %v1096, %v1095
      %v1174 = vpack.c.bf16 %v1106, %v1105
      %v1175 = vpack.c.bf16 %v1116, %v1115
      %v1176 = vpack.c.bf16 %v1126, %v1125
      %v1177 = vpack.c.bf16 %v1132, %v1131
      %v1178 = vpack.c.bf16 %v1142, %v1141
      %v1179 = vpack.c.bf16 %v1152, %v1151
      %v1180 = vpack.c.bf16 %v1162, %v1161
      %v1181 = vpack.c.bf16 %v1172, %v1171
      %v1182 = vpack.c.bf16 1.0, 1.0
      %v1183 = vld [vmem:[%s3] sm:$0xff]
      %v1184 = vld [vmem:[%s3 + $0x8] sm:$0xff]
      %v1185 = vld [vmem:[%s3 + $0x10] sm:$0xff]
      %v1186 = vld [vmem:[%s3 + $0x18] sm:$0xff]
      %v1191 = vunpack.c.l.b16 %v1183
      %v1192 = vunpack.c.h.b16 %v1183
      %v1193 = vunpack.c.l.b16 %v1184
      %v1194 = vunpack.c.h.b16 %v1184
      %v1195 = vunpack.c.l.b16 %v1185
      %v1196 = vunpack.c.h.b16 %v1185
      %v1197 = vunpack.c.l.b16 %v1186
      %v1198 = vunpack.c.h.b16 %v1186
      %v1199 = vpack.c.b16 %v1193, %v1191
      %v1200 = vpack.c.b16 %v1194, %v1192
      %v1201 = vpack.c.b16 %v1197, %v1195
      %v1202 = vpack.c.b16 %v1198, %v1196
      %vm1205 = vcmask 138240
      %v1207 = vsel %vm1205, %v1200, 0
      %v1210 = vsel %vm1205, %v1202, 0
      %vm1212 = vcmask 1040384
      %v1213 = vsel 0, 4294967295, 65535
      %v1214 = vsel %vm1212, %v1213, 0
      %v1216 = vand.u32 %v1182, %v1214
      %1218 = vmatprep.subr.bf16.mxu0 0
      %1219 = vmatpush1.bf16.msra.mxu0 %v1180
      %1220 = vmatprep.subr.bf16.mxu0 0
      %1221 = vmatpush1.bf16.msra.mxu0 %v1179
      %1222 = vmatprep.subr.bf16.mxu0 0
      %1223 = vmatpush1.bf16.msra.mxu0 %v1178
      %1224 = vmatprep.subr.bf16.mxu0 0
      %1225 = vmatpush1.bf16.msra.mxu0 %v1177
      %1226 = vmatprep.subr.bf16.mxu0 0
      %1227 = vmatpush1.bf16.msra.mxu0 %v1176
      %1228 = vmatprep.subr.bf16.mxu0 0
      %1229 = vmatpush1.bf16.msra.mxu0 %v1175
      %1230 = vmatprep.subr.bf16.mxu0 0
      %1231 = vmatpush1.bf16.msra.mxu0 %v1174
      %1232 = vmatprep.subr.bf16.mxu0 0
      %1233 = vmatpush1.bf16.msra.mxu0 %v1173
      %1234 = vmatprep.subr.bf16.mxu0 0
      %1235 = vmatpush2.bf16.msra.mxu0 0
      %1236 = vmatprep.subr.bf16.mxu0 0
      %1237 = vmatpush2.bf16.msra.mxu0 0
      %1238 = vmatprep.subr.bf16.mxu0 0
      %1239 = vmatpush2.bf16.msra.mxu0 0
      %1240 = vmatprep.subr.bf16.mxu0 0
      %1241 = vmatpush2.bf16.msra.mxu0 0
      %1242 = vmatprep.subr.bf16.mxu0 0
      %1243 = vmatpush2.bf16.msra.mxu0 0
      %1244 = vmatprep.subr.bf16.mxu0 0
      %1245 = vmatpush2.bf16.msra.mxu0 0
      %1246 = vmatprep.subr.bf16.mxu0 0
      %1247 = vmatpush2.bf16.msra.mxu0 %v1216
      %1248 = vmatprep.subr.bf16.mxu0 0
      %1249 = vmatpush2.bf16.msra.mxu0 %v1181
      %1250 = vmatprep.mubr.bf16.mxu0 %v1207
      %1251 = vmatmul.mubr.bf16.gmra.mxu0 %v1199
      %v1252 = vpop.f32.mrf.mxu0
      %v1253 = vadd.f32 0.0, %v1252
      %v1254 = vpop.f32.mrf.mxu0
      %v1255 = vpop.f32.mrf.mxu0
      %v1256 = vadd.f32 0.0, %v1255
      %v1257 = vpop.f32.mrf.mxu0
      %1258 = vmatprep.mubr.bf16.mxu0 %v1210
      %1259 = vmatmul.mubr.bf16.gmra.mxu0 %v1201
      %v1260 = vpop.f32.mrf.mxu0
      %v1261 = vadd.f32 0.0, %v1260
      %v1262 = vpop.f32.mrf.mxu0
      %v1263 = vpop.f32.mrf.mxu0
      %v1264 = vadd.f32 0.0, %v1263
      %v1265 = vpop.f32.mrf.mxu0
      %1266 = vdwg.mxu0
      %v1267 = vmax.f32 %v1253, 0.0
      %v1268 = vmax.f32 %v1256, 0.0
      %v1269 = vmax.f32 %v1261, 0.0
      %v1270 = vmax.f32 %v1264, 0.0
      %v1271 = vpack.c.bf16 %v1268, %v1267
      %v1272 = vpack.c.bf16 %v1270, %v1269
      %v1273 = vld [vmem:[%s10] sm:$0xf]
      %v1274 = vld [vmem:[%s10 + $0x4] sm:$0xf]
      %v1275 = vld [vmem:[%s10 + $0x8] sm:$0xf]
      %v1276 = vld [vmem:[%s10 + $0xc] sm:$0xf]
      %v1277 = vld [vmem:[%s10 + $0x10] sm:$0xf]
      %v1278 = vld [vmem:[%s10 + $0x14] sm:$0xf]
      %v1279 = vld [vmem:[%s10 + $0x18] sm:$0xf]
      %v1280 = vld [vmem:[%s10 + $0x1c] sm:$0xf]
      %v1281 = vld [vmem:[%s10 + $0x20] sm:$0xf]
      %v1282 = vld [vmem:[%s10 + $0x24] sm:$0xf]
      %v1283 = vld [vmem:[%s10 + $0x28] sm:$0xf]
      %v1284 = vld [vmem:[%s10 + $0x2c] sm:$0xf]
      %v1285 = vld [vmem:[%s10 + $0x30] sm:$0xf]
      %v1286 = vld [vmem:[%s10 + $0x34] sm:$0xf]
      %v1287 = vld [vmem:[%s10 + $0x38] sm:$0xf]
      %v1288 = vld [vmem:[%s10 + $0x3c] sm:$0xf]
      %v1305 = vunpack.c.l.b16 %v1273
      %v1306 = vunpack.c.l.b16 %v1274
      %v1307 = vunpack.c.l.b16 %v1275
      %v1308 = vunpack.c.l.b16 %v1276
      %v1309 = vunpack.c.l.b16 %v1277
      %v1310 = vunpack.c.l.b16 %v1278
      %v1311 = vunpack.c.l.b16 %v1279
      %v1312 = vunpack.c.l.b16 %v1280
      %v1313 = vunpack.c.l.b16 %v1281
      %v1314 = vunpack.c.l.b16 %v1282
      %v1315 = vunpack.c.l.b16 %v1283
      %v1316 = vunpack.c.l.b16 %v1284
      %v1317 = vunpack.c.l.b16 %v1285
      %v1318 = vunpack.c.l.b16 %v1286
      %v1319 = vunpack.c.l.b16 %v1287
      %v1320 = vunpack.c.l.b16 %v1288
      %v1321 = vpack.c.b16 %v1306, %v1305
      %v1322 = vpack.c.b16 %v1308, %v1307
      %v1323 = vpack.c.b16 %v1310, %v1309
      %v1324 = vpack.c.b16 %v1312, %v1311
      %v1325 = vpack.c.b16 %v1314, %v1313
      %v1326 = vpack.c.b16 %v1316, %v1315
      %v1327 = vpack.c.b16 %v1318, %v1317
      %v1328 = vpack.c.b16 %v1320, %v1319
      %1337 = vmatprep.subr.bf16.mxu0 0
      %1338 = vmatpush1.bf16.msra.mxu0 %v1328
      %1339 = vmatprep.subr.bf16.mxu0 0
      %1340 = vmatpush1.bf16.msra.mxu0 %v1327
      %1341 = vmatprep.subr.bf16.mxu0 0
      %1342 = vmatpush1.bf16.msra.mxu0 %v1326
      %1343 = vmatprep.subr.bf16.mxu0 0
      %1344 = vmatpush1.bf16.msra.mxu0 %v1325
      %1345 = vmatprep.subr.bf16.mxu0 0
      %1346 = vmatpush1.bf16.msra.mxu0 %v1324
      %1347 = vmatprep.subr.bf16.mxu0 0
      %1348 = vmatpush1.bf16.msra.mxu0 %v1323
      %1349 = vmatprep.subr.bf16.mxu0 0
      %1350 = vmatpush1.bf16.msra.mxu0 %v1322
      %1351 = vmatprep.subr.bf16.mxu0 0
      %1352 = vmatpush1.bf16.msra.mxu0 %v1321
      %1353 = vmatprep.subr.bf16.mxu0 0
      %1354 = vmatpush2.bf16.msra.mxu0 0
      %1355 = vmatprep.subr.bf16.mxu0 0
      %1356 = vmatpush2.bf16.msra.mxu0 0
      %1357 = vmatprep.subr.bf16.mxu0 0
      %1358 = vmatpush2.bf16.msra.mxu0 0
      %1359 = vmatprep.subr.bf16.mxu0 0
      %1360 = vmatpush2.bf16.msra.mxu0 0
      %1361 = vmatprep.subr.bf16.mxu0 0
      %1362 = vmatpush2.bf16.msra.mxu0 0
      %1363 = vmatprep.subr.bf16.mxu0 0
      %1364 = vmatpush2.bf16.msra.mxu0 0
      %1365 = vmatprep.subr.bf16.mxu0 0
      %1366 = vmatpush2.bf16.msra.mxu0 0
      %1367 = vmatprep.subr.bf16.mxu0 0
      %1368 = vmatpush2.bf16.msra.mxu0 0
      %1369 = vmatprep.mubr.bf16.mxu0 0
      %1370 = vmatmul.mubr.bf16.gmra.mxu0 %v1271
      %v1371 = vpop.f32.mrf.mxu0
      %v1372 = vadd.f32 0.0, %v1371
      %v1373 = vpop.f32.mrf.mxu0
      %v1374 = vpop.f32.mrf.mxu0
      %v1375 = vadd.f32 0.0, %v1374
      %v1376 = vpop.f32.mrf.mxu0
      %1377 = vmatprep.mubr.bf16.mxu0 0
      %1378 = vmatmul.mubr.bf16.gmra.mxu0 %v1272
      %v1379 = vpop.f32.mrf.mxu0
      %v1380 = vadd.f32 0.0, %v1379
      %v1381 = vpop.f32.mrf.mxu0
      %v1382 = vpop.f32.mrf.mxu0
      %v1383 = vadd.f32 0.0, %v1382
      %v1384 = vpop.f32.mrf.mxu0
      %1385 = vdwg.mxu0
      %v1386 = vpack.c.bf16 %v1375, %v1372
      %v1387 = vpack.c.bf16 %v1383, %v1380
      %v1388 = vld [vmem:[%s4] sm:$0xf]
      %v1389 = vld [vmem:[%s4 + $0x4] sm:$0xf]
      %v1392 = vunpack.c.l.b16 %v1388
      %v1393 = vunpack.c.l.b16 %v1389
      %v1394 = vpack.c.b16 %v1393, %v1392
      %vm1395 = vcmask 269312
      %v1397 = vsel %vm1395, %v1394, 0
      %1399 = vmatprep.subr.bf16.mxu0 0
      %1400 = vmatpush1.bf16.msra.mxu0 0
      %1401 = vmatprep.subr.bf16.mxu0 0
      %1402 = vmatpush1.bf16.msra.mxu0 0
      %1403 = vmatprep.subr.bf16.mxu0 0
      %1404 = vmatpush1.bf16.msra.mxu0 0
      %1405 = vmatprep.subr.bf16.mxu0 0
      %1406 = vmatpush1.bf16.msra.mxu0 0
      %1407 = vmatprep.subr.bf16.mxu0 0
      %1408 = vmatpush1.bf16.msra.mxu0 0
      %1409 = vmatprep.subr.bf16.mxu0 0
      %1410 = vmatpush1.bf16.msra.mxu0 %v1216
      %1411 = vmatprep.subr.bf16.mxu0 0
      %1412 = vmatpush1.bf16.msra.mxu0 %v1387
      %1413 = vmatprep.subr.bf16.mxu0 0
      %1414 = vmatpush1.bf16.msra.mxu0 %v1386
      %1415 = vmatprep.subr.bf16.mxu0 0
      %1416 = vmatpush2.bf16.msra.mxu0 0
      %1417 = vmatprep.subr.bf16.mxu0 0
      %1418 = vmatpush2.bf16.msra.mxu0 0
      %1419 = vmatprep.subr.bf16.mxu0 0
      %1420 = vmatpush2.bf16.msra.mxu0 0
      %1421 = vmatprep.subr.bf16.mxu0 0
      %1422 = vmatpush2.bf16.msra.mxu0 0
      %1423 = vmatprep.subr.bf16.mxu0 0
      %1424 = vmatpush2.bf16.msra.mxu0 0
      %1425 = vmatprep.subr.bf16.mxu0 0
      %1426 = vmatpush2.bf16.msra.mxu0 0
      %1427 = vmatprep.subr.bf16.mxu0 0
      %1428 = vmatpush2.bf16.msra.mxu0 0
      %1429 = vmatprep.subr.bf16.mxu0 0
      %1430 = vmatpush2.bf16.msra.mxu0 0
      %1431 = vmatprep.mubr.bf16.mxu0 0
      %1432 = vmatmul.mubr.bf16.gmra.mxu0 %v1397
      %v1433 = vpop.f32.mrf.mxu0
      %v1434 = vadd.f32 0.0, %v1433
      %v1435 = vpop.f32.mrf.mxu0
      %v1436 = vpop.f32.mrf.mxu0
      %v1437 = vadd.f32 0.0, %v1436
      %v1438 = vpop.f32.mrf.mxu0
      %1439 = vdwg.mxu0
      %v1440 = vmax.f32 %v1434, 0.0
      %v1441 = vmax.f32 %v1437, 0.0
      %v1442 = vld [vmem:[%s14] sm:$0xff]
      %v1443 = vld [vmem:[%s14 + $0x8] sm:$0x1]
      %1444 = vrot.lane.b32.xlu0 %v1440, 5
      %v1445 = vpop.permute.xlu0 %1444
      %1446 = vrot.lane.b32.xlu0 %v1441, 5
      %v1447 = vpop.permute.xlu0 %1446
      %v1448 = vlaneseq
      %v1449 = vshrl.u32 %v1448, 7
      %v1450 = vsub.s32 0, %v1449
      %v1451 = vrot.slane %v1442, %v1450
      %v1452 = vmul.f32 %v1445, %v1451
      %v1453 = vmul.f32 %v1447, %v1451
      %1454 = vrot.lane.b32.xlu0 %v1440, 4
      %v1455 = vpop.permute.xlu0 %1454
      %1456 = vrot.lane.b32.xlu0 %v1441, 4
      %v1457 = vpop.permute.xlu0 %1456
      %v1458 = vlaneseq
      %v1459 = vshrl.u32 %v1458, 7
      %v1460 = vsub.s32 1, %v1459
      %v1461 = vrot.slane %v1442, %v1460
      %v1462 = vmul.f32 %v1455, %v1461
      %v1463 = vmul.f32 %v1457, %v1461
      %1464 = vrot.lane.b32.xlu0 %v1440, 3
      %v1465 = vpop.permute.xlu0 %1464
      %1466 = vrot.lane.b32.xlu0 %v1441, 3
      %v1467 = vpop.permute.xlu0 %1466
      %v1468 = vlaneseq
      %v1469 = vshrl.u32 %v1468, 7
      %v1470 = vsub.s32 2, %v1469
      %v1471 = vrot.slane %v1442, %v1470
      %v1472 = vmul.f32 %v1465, %v1471
      %v1473 = vmul.f32 %v1467, %v1471
      %1474 = vrot.lane.b32.xlu0 %v1440, 1
      %v1475 = vpop.permute.xlu0 %1474
      %1476 = vrot.lane.b32.xlu0 %v1441, 1
      %v1477 = vpop.permute.xlu0 %1476
      %v1478 = vlaneseq
      %v1479 = vshrl.u32 %v1478, 7
      %v1480 = vsub.s32 3, %v1479
      %v1481 = vrot.slane %v1442, %v1480
      %v1482 = vmul.f32 %v1475, %v1481
      %v1483 = vmul.f32 %v1477, %v1481
      %v1484 = vlaneseq
      %v1485 = vshrl.u32 %v1484, 7
      %v1486 = vsub.s32 4, %v1485
      %v1487 = vrot.slane %v1442, %v1486
      %v1488 = vmul.f32 %v1440, %v1487
      %v1489 = vmul.f32 %v1441, %v1487
      %1490 = vrot.lane.b32.xlu0 %v1440, 127
      %v1491 = vpop.permute.xlu0 %1490
      %1492 = vrot.lane.b32.xlu0 %v1441, 127
      %v1493 = vpop.permute.xlu0 %1492
      %v1494 = vlaneseq
      %v1495 = vshrl.u32 %v1494, 7
      %v1496 = vsub.s32 5, %v1495
      %v1497 = vrot.slane %v1442, %v1496
      %v1498 = vmul.f32 %v1491, %v1497
      %v1499 = vmul.f32 %v1493, %v1497
      %1500 = vrot.lane.b32.xlu0 %v1440, 125
      %v1501 = vpop.permute.xlu0 %1500
      %1502 = vrot.lane.b32.xlu0 %v1441, 125
      %v1503 = vpop.permute.xlu0 %1502
      %v1504 = vlaneseq
      %v1505 = vshrl.u32 %v1504, 7
      %v1506 = vsub.s32 6, %v1505
      %v1507 = vrot.slane %v1442, %v1506
      %v1508 = vmul.f32 %v1501, %v1507
      %v1509 = vmul.f32 %v1503, %v1507
      %1510 = vrot.lane.b32.xlu0 %v1440, 124
      %v1511 = vpop.permute.xlu0 %1510
      %1512 = vrot.lane.b32.xlu0 %v1441, 124
      %v1513 = vpop.permute.xlu0 %1512
      %v1514 = vlaneseq
      %v1515 = vshrl.u32 %v1514, 7
      %v1516 = vsub.s32 7, %v1515
      %v1517 = vrot.slane %v1442, %v1516
      %v1518 = vmul.f32 %v1511, %v1517
      %v1519 = vmul.f32 %v1513, %v1517
      %1520 = vrot.lane.b32.xlu0 %v1440, 123
      %v1521 = vpop.permute.xlu0 %1520
      %1522 = vrot.lane.b32.xlu0 %v1441, 123
      %v1523 = vpop.permute.xlu0 %1522
      %v1524 = vlaneseq
      %v1525 = vshrl.u32 %v1524, 7
      %v1526 = vsub.s32 0, %v1525
      %v1527 = vrot.slane %v1443, %v1526
      %v1528 = vmul.f32 %v1521, %v1527
      %v1529 = vmul.f32 %v1523, %v1527
      %v1530 = vpack.c.bf16 %v1453, %v1452
      %v1531 = vpack.c.bf16 %v1463, %v1462
      %v1532 = vpack.c.bf16 %v1473, %v1472
      %v1533 = vpack.c.bf16 %v1483, %v1482
      %v1534 = vpack.c.bf16 %v1489, %v1488
      %v1535 = vpack.c.bf16 %v1499, %v1498
      %v1536 = vpack.c.bf16 %v1509, %v1508
      %v1537 = vpack.c.bf16 %v1519, %v1518
      %v1538 = vpack.c.bf16 %v1529, %v1528
      %v1539 = vld [vmem:[%s5] sm:$0xff]
      %v1540 = vld [vmem:[%s5 + $0x8] sm:$0xff]
      %v1541 = vld [vmem:[%s5 + $0x10] sm:$0xff]
      %v1542 = vld [vmem:[%s5 + $0x18] sm:$0xff]
      %v1547 = vunpack.c.l.b16 %v1539
      %v1548 = vunpack.c.h.b16 %v1539
      %v1549 = vunpack.c.l.b16 %v1540
      %v1550 = vunpack.c.h.b16 %v1540
      %v1551 = vunpack.c.l.b16 %v1541
      %v1552 = vunpack.c.h.b16 %v1541
      %v1553 = vunpack.c.l.b16 %v1542
      %v1554 = vunpack.c.h.b16 %v1542
      %v1555 = vpack.c.b16 %v1549, %v1547
      %v1556 = vpack.c.b16 %v1550, %v1548
      %v1557 = vpack.c.b16 %v1553, %v1551
      %v1558 = vpack.c.b16 %v1554, %v1552
      %v1562 = vsel %vm1205, %v1556, 0
      %v1565 = vsel %vm1205, %v1558, 0
      %1567 = vmatprep.subr.bf16.mxu0 0
      %1568 = vmatpush1.bf16.msra.mxu0 %v1537
      %1569 = vmatprep.subr.bf16.mxu0 0
      %1570 = vmatpush1.bf16.msra.mxu0 %v1536
      %1571 = vmatprep.subr.bf16.mxu0 0
      %1572 = vmatpush1.bf16.msra.mxu0 %v1535
      %1573 = vmatprep.subr.bf16.mxu0 0
      %1574 = vmatpush1.bf16.msra.mxu0 %v1534
      %1575 = vmatprep.subr.bf16.mxu0 0
      %1576 = vmatpush1.bf16.msra.mxu0 %v1533
      %1577 = vmatprep.subr.bf16.mxu0 0
      %1578 = vmatpush1.bf16.msra.mxu0 %v1532
      %1579 = vmatprep.subr.bf16.mxu0 0
      %1580 = vmatpush1.bf16.msra.mxu0 %v1531
      %1581 = vmatprep.subr.bf16.mxu0 0
      %1582 = vmatpush1.bf16.msra.mxu0 %v1530
      %1583 = vmatprep.subr.bf16.mxu0 0
      %1584 = vmatpush2.bf16.msra.mxu0 0
      %1585 = vmatprep.subr.bf16.mxu0 0
      %1586 = vmatpush2.bf16.msra.mxu0 0
      %1587 = vmatprep.subr.bf16.mxu0 0
      %1588 = vmatpush2.bf16.msra.mxu0 0
      %1589 = vmatprep.subr.bf16.mxu0 0
      %1590 = vmatpush2.bf16.msra.mxu0 0
      %1591 = vmatprep.subr.bf16.mxu0 0
      %1592 = vmatpush2.bf16.msra.mxu0 0
      %1593 = vmatprep.subr.bf16.mxu0 0
      %1594 = vmatpush2.bf16.msra.mxu0 0
      %1595 = vmatprep.subr.bf16.mxu0 0
      %1596 = vmatpush2.bf16.msra.mxu0 %v1216
      %1597 = vmatprep.subr.bf16.mxu0 0
      %1598 = vmatpush2.bf16.msra.mxu0 %v1538
      %1599 = vmatprep.mubr.bf16.mxu0 %v1562
      %1600 = vmatmul.mubr.bf16.gmra.mxu0 %v1555
      %v1601 = vpop.f32.mrf.mxu0
      %v1602 = vadd.f32 0.0, %v1601
      %v1603 = vpop.f32.mrf.mxu0
      %v1604 = vpop.f32.mrf.mxu0
      %v1605 = vadd.f32 0.0, %v1604
      %v1606 = vpop.f32.mrf.mxu0
      %1607 = vmatprep.mubr.bf16.mxu0 %v1565
      %1608 = vmatmul.mubr.bf16.gmra.mxu0 %v1557
      %v1609 = vpop.f32.mrf.mxu0
      %v1610 = vadd.f32 0.0, %v1609
      %v1611 = vpop.f32.mrf.mxu0
      %v1612 = vpop.f32.mrf.mxu0
      %v1613 = vadd.f32 0.0, %v1612
      %v1614 = vpop.f32.mrf.mxu0
      %1615 = vdwg.mxu0
      %v1616 = vmax.f32 %v1602, 0.0
      %v1617 = vmax.f32 %v1605, 0.0
      %v1618 = vmax.f32 %v1610, 0.0
      %v1619 = vmax.f32 %v1613, 0.0
      %v1620 = vpack.c.bf16 %v1617, %v1616
      %v1621 = vpack.c.bf16 %v1619, %v1618
      %v1622 = vld [vmem:[%s11] sm:$0xf]
      %v1623 = vld [vmem:[%s11 + $0x4] sm:$0xf]
      %v1624 = vld [vmem:[%s11 + $0x8] sm:$0xf]
      %v1625 = vld [vmem:[%s11 + $0xc] sm:$0xf]
      %v1626 = vld [vmem:[%s11 + $0x10] sm:$0xf]
      %v1627 = vld [vmem:[%s11 + $0x14] sm:$0xf]
      %v1628 = vld [vmem:[%s11 + $0x18] sm:$0xf]
      %v1629 = vld [vmem:[%s11 + $0x1c] sm:$0xf]
      %v1630 = vld [vmem:[%s11 + $0x20] sm:$0xf]
      %v1631 = vld [vmem:[%s11 + $0x24] sm:$0xf]
      %v1632 = vld [vmem:[%s11 + $0x28] sm:$0xf]
      %v1633 = vld [vmem:[%s11 + $0x2c] sm:$0xf]
      %v1634 = vld [vmem:[%s11 + $0x30] sm:$0xf]
      %v1635 = vld [vmem:[%s11 + $0x34] sm:$0xf]
      %v1636 = vld [vmem:[%s11 + $0x38] sm:$0xf]
      %v1637 = vld [vmem:[%s11 + $0x3c] sm:$0xf]
      %v1654 = vunpack.c.l.b16 %v1622
      %v1655 = vunpack.c.l.b16 %v1623
      %v1656 = vunpack.c.l.b16 %v1624
      %v1657 = vunpack.c.l.b16 %v1625
      %v1658 = vunpack.c.l.b16 %v1626
      %v1659 = vunpack.c.l.b16 %v1627
      %v1660 = vunpack.c.l.b16 %v1628
      %v1661 = vunpack.c.l.b16 %v1629
      %v1662 = vunpack.c.l.b16 %v1630
      %v1663 = vunpack.c.l.b16 %v1631
      %v1664 = vunpack.c.l.b16 %v1632
      %v1665 = vunpack.c.l.b16 %v1633
      %v1666 = vunpack.c.l.b16 %v1634
      %v1667 = vunpack.c.l.b16 %v1635
      %v1668 = vunpack.c.l.b16 %v1636
      %v1669 = vunpack.c.l.b16 %v1637
      %v1670 = vpack.c.b16 %v1655, %v1654
      %v1671 = vpack.c.b16 %v1657, %v1656
      %v1672 = vpack.c.b16 %v1659, %v1658
      %v1673 = vpack.c.b16 %v1661, %v1660
      %v1674 = vpack.c.b16 %v1663, %v1662
      %v1675 = vpack.c.b16 %v1665, %v1664
      %v1676 = vpack.c.b16 %v1667, %v1666
      %v1677 = vpack.c.b16 %v1669, %v1668
      %1686 = vmatprep.subr.bf16.mxu0 0
      %1687 = vmatpush1.bf16.msra.mxu0 %v1677
      %1688 = vmatprep.subr.bf16.mxu0 0
      %1689 = vmatpush1.bf16.msra.mxu0 %v1676
      %1690 = vmatprep.subr.bf16.mxu0 0
      %1691 = vmatpush1.bf16.msra.mxu0 %v1675
      %1692 = vmatprep.subr.bf16.mxu0 0
      %1693 = vmatpush1.bf16.msra.mxu0 %v1674
      %1694 = vmatprep.subr.bf16.mxu0 0
      %1695 = vmatpush1.bf16.msra.mxu0 %v1673
      %1696 = vmatprep.subr.bf16.mxu0 0
      %1697 = vmatpush1.bf16.msra.mxu0 %v1672
      %1698 = vmatprep.subr.bf16.mxu0 0
      %1699 = vmatpush1.bf16.msra.mxu0 %v1671
      %1700 = vmatprep.subr.bf16.mxu0 0
      %1701 = vmatpush1.bf16.msra.mxu0 %v1670
      %1702 = vmatprep.subr.bf16.mxu0 0
      %1703 = vmatpush2.bf16.msra.mxu0 0
      %1704 = vmatprep.subr.bf16.mxu0 0
      %1705 = vmatpush2.bf16.msra.mxu0 0
      %1706 = vmatprep.subr.bf16.mxu0 0
      %1707 = vmatpush2.bf16.msra.mxu0 0
      %1708 = vmatprep.subr.bf16.mxu0 0
      %1709 = vmatpush2.bf16.msra.mxu0 0
      %1710 = vmatprep.subr.bf16.mxu0 0
      %1711 = vmatpush2.bf16.msra.mxu0 0
      %1712 = vmatprep.subr.bf16.mxu0 0
      %1713 = vmatpush2.bf16.msra.mxu0 0
      %1714 = vmatprep.subr.bf16.mxu0 0
      %1715 = vmatpush2.bf16.msra.mxu0 0
      %1716 = vmatprep.subr.bf16.mxu0 0
      %1717 = vmatpush2.bf16.msra.mxu0 0
      %1718 = vmatprep.mubr.bf16.mxu0 0
      %1719 = vmatmul.mubr.bf16.gmra.mxu0 %v1620
      %v1720 = vpop.f32.mrf.mxu0
      %v1721 = vadd.f32 0.0, %v1720
      %v1722 = vpop.f32.mrf.mxu0
      %v1723 = vpop.f32.mrf.mxu0
      %v1724 = vadd.f32 0.0, %v1723
      %v1725 = vpop.f32.mrf.mxu0
      %1726 = vmatprep.mubr.bf16.mxu0 0
      %1727 = vmatmul.mubr.bf16.gmra.mxu0 %v1621
      %v1728 = vpop.f32.mrf.mxu0
      %v1729 = vadd.f32 0.0, %v1728
      %v1730 = vpop.f32.mrf.mxu0
      %v1731 = vpop.f32.mrf.mxu0
      %v1732 = vadd.f32 0.0, %v1731
      %v1733 = vpop.f32.mrf.mxu0
      %1734 = vdwg.mxu0
      %v1735 = vld [vmem:[%s6] sm:$0xff]
      %v1736 = vld [vmem:[%s6 + $0x8] sm:$0x77]
      %v1739 = vunpack.c.l.b16 %v1735
      %v1740 = vunpack.c.h.b16 %v1735
      %v1741 = vunpack.c.l.b16 %v1736
      %v1742 = vunpack.c.h.b16 %v1736
      %v1743 = vpack.c.b16 %v1741, %v1739
      %v1744 = vpack.c.b16 %v1742, %v1740
      %v1747 = vsel %vm1205, %v1744, 0
      %1749 = vmatprep.subr.bf16.mxu0 0
      %1750 = vmatpush1.bf16.msra.mxu0 %v1180
      %1751 = vmatprep.subr.bf16.mxu0 0
      %1752 = vmatpush1.bf16.msra.mxu0 %v1179
      %1753 = vmatprep.subr.bf16.mxu0 0
      %1754 = vmatpush1.bf16.msra.mxu0 %v1178
      %1755 = vmatprep.subr.bf16.mxu0 0
      %1756 = vmatpush1.bf16.msra.mxu0 %v1177
      %1757 = vmatprep.subr.bf16.mxu0 0
      %1758 = vmatpush1.bf16.msra.mxu0 %v1176
      %1759 = vmatprep.subr.bf16.mxu0 0
      %1760 = vmatpush1.bf16.msra.mxu0 %v1175
      %1761 = vmatprep.subr.bf16.mxu0 0
      %1762 = vmatpush1.bf16.msra.mxu0 %v1174
      %1763 = vmatprep.subr.bf16.mxu0 0
      %1764 = vmatpush1.bf16.msra.mxu0 %v1173
      %1765 = vmatprep.subr.bf16.mxu0 0
      %1766 = vmatpush2.bf16.msra.mxu0 0
      %1767 = vmatprep.subr.bf16.mxu0 0
      %1768 = vmatpush2.bf16.msra.mxu0 0
      %1769 = vmatprep.subr.bf16.mxu0 0
      %1770 = vmatpush2.bf16.msra.mxu0 0
      %1771 = vmatprep.subr.bf16.mxu0 0
      %1772 = vmatpush2.bf16.msra.mxu0 0
      %1773 = vmatprep.subr.bf16.mxu0 0
      %1774 = vmatpush2.bf16.msra.mxu0 0
      %1775 = vmatprep.subr.bf16.mxu0 0
      %1776 = vmatpush2.bf16.msra.mxu0 0
      %1777 = vmatprep.subr.bf16.mxu0 0
      %1778 = vmatpush2.bf16.msra.mxu0 %v1216
      %1779 = vmatprep.subr.bf16.mxu0 0
      %1780 = vmatpush2.bf16.msra.mxu0 %v1181
      %1781 = vmatprep.mubr.bf16.mxu0 %v1747
      %1782 = vmatmul.mubr.bf16.gmra.mxu0 %v1743
      %v1783 = vpop.f32.mrf.mxu0
      %v1784 = vadd.f32 0.0, %v1783
      %v1785 = vpop.f32.mrf.mxu0
      %v1786 = vpop.f32.mrf.mxu0
      %v1787 = vadd.f32 0.0, %v1786
      %v1788 = vpop.f32.mrf.mxu0
      %1789 = vdwg.mxu0
      %vm1790 = vcmp.lt.s32.totalorder %v551, 64
      %vm1791 = vcmask 1042432
      %v1792 = vsel %vm1791, %v1784, -inf
      %v1793 = vrot.slane %v1792, 4
      %v1794 = vmax.f32 %v1792, %v1793
      %v1795 = vrot.slane %v1794, 2
      %v1796 = vmax.f32 %v1794, %v1795
      %v1797 = vrot.slane %v1796, 1
      %v1798 = vmax.f32 %v1796, %v1797
      %v1799 = vsub.f32 %v1784, %v1798
      %v1800 = vmul.f32 %v1799, 1.442695
      %v1801 = vpow.pop %v1800
      %v1802 = vsel %vm1791, %v1801, 0.0
      %v1803 = vrot.slane %v1802, 4
      %v1804 = vadd.f32 %v1802, %v1803
      %v1805 = vrot.slane %v1804, 2
      %v1806 = vadd.f32 %v1804, %v1805
      %v1807 = vrot.slane %v1806, 1
      %v1808 = vadd.f32 %v1806, %v1807
      %v1809 = vrcp.pop %v1808
      %v1810 = vmul.f32 %v1801, %v1809
      %vm1811 = vcmask 1045507
      %v1812 = vsel %vm1811, %v1784, -inf
      %v1813 = vrot.slane %v1812, 4
      %v1814 = vmax.f32 %v1812, %v1813
      %v1815 = vrot.slane %v1814, 2
      %v1816 = vmax.f32 %v1814, %v1815
      %v1817 = vrot.slane %v1816, 1
      %v1818 = vmax.f32 %v1816, %v1817
      %v1819 = vsub.f32 %v1784, %v1818
      %v1820 = vmul.f32 %v1819, 1.442695
      %v1821 = vpow.pop %v1820
      %v1823 = vrot.slane %v1821, 3
      %v1825 = vsel %vm1791, %v1823, 0.0
      %v1826 = vrot.slane %v1825, 4
      %v1827 = vadd.f32 %v1825, %v1826
      %v1828 = vrot.slane %v1827, 2
      %v1829 = vadd.f32 %v1827, %v1828
      %v1830 = vrot.slane %v1829, 1
      %v1831 = vadd.f32 %v1829, %v1830
      %v1832 = vrcp.pop %v1831
      %v1833 = vmul.f32 %v1821, %v1832
      %v1834 = vsel %vm1791, %v1810, %v1833
      %vm1835 = vcmask 1045504
      %v1836 = vsel %vm1835, %v1834, 0.0
      %v1837 = vmul.f32 %v1784, 0.1
      %v1839 = vrot.slane %v554, 4
      %v1841 = vmul.f32 %v1837, %v1839
      %v1842 = vrot.slane %v554, 2
      %v1844 = vadd.f32 %v1841, %v1842
      %v1845 = vmul.f32 %v1787, 0.2
      %v1846 = vmul.f32 %v1845, 1.442695
      %v1847 = vpow.pop %v1846
      %v1848 = vmul.f32 %v1847, %v1842
      %v1849 = vmul.f32 %v1848, 0.5
      %v1851 = vrot.slane %v1849, 2
      %v1853 = vsub.f32 %v1844, %v1851
      %v1854 = vadd.f32 %v1844, %v1851
      %v1856 = vrot.slane %v1853, 6
      %v1859 = vrot.slane %v1854, 4
      %vm1861 = vcmask 1041408
      %v1862 = vsel %vm1861, %v1856, %v1859
      %v1863 = vmul.f32 %v1787, 0.1
      %v1864 = vmul.f32 %v1863, %v1839
      %v1865 = vadd.f32 %v1864, %v1842
      %v1866 = vsub.f32 %v1865, %v1851
      %v1867 = vadd.f32 %v1865, %v1851
      %v1869 = vrot.slane %v1866, 2
      %v1871 = vsel %vm1861, %v1869, %v1867
      %v1873 = vrot.slane %v1871, 4
      %v1875 = vsel %vm722, %v1862, %v1873
      %v1876 = vsel %vm1790, 1, 0
      %vm1877 = vcmp.eq.s32.totalorder %v1876, 1
      %v1878 = vsel %vm1877, %v1836, 0.0
      %v1879 = vsel %vm1877, %v1875, 0.0
      %1880 = vst [vmem:[%s548] sm:$0xff] %v1878
      %1881 = vst [vmem:[%s548 + $0x8] sm:$0xff] %v1879
      %v1882 = vld [vmem:[%s14] sm:$0xff]
      %v1883 = vld [vmem:[%s14 + $0x8] sm:$0x1]
      %1884 = vrot.lane.b32.xlu0 %v1372, 5
      %v1885 = vpop.permute.xlu0 %1884
      %1886 = vrot.lane.b32.xlu0 %v1375, 5
      %v1887 = vpop.permute.xlu0 %1886
      %1888 = vrot.lane.b32.xlu0 %v1380, 5
      %v1889 = vpop.permute.xlu0 %1888
      %1890 = vrot.lane.b32.xlu0 %v1383, 5
      %v1891 = vpop.permute.xlu0 %1890
      %v1892 = vlaneseq
      %v1893 = vshrl.u32 %v1892, 7
      %v1894 = vsub.s32 0, %v1893
      %v1895 = vrot.slane %v1882, %v1894
      %v1896 = vmul.f32 %v1885, %v1895
      %v1897 = vmul.f32 %v1887, %v1895
      %v1898 = vmul.f32 %v1889, %v1895
      %v1899 = vmul.f32 %v1891, %v1895
      %1900 = vrot.lane.b32.xlu0 %v1372, 4
      %v1901 = vpop.permute.xlu0 %1900
      %1902 = vrot.lane.b32.xlu0 %v1375, 4
      %v1903 = vpop.permute.xlu0 %1902
      %1904 = vrot.lane.b32.xlu0 %v1380, 4
      %v1905 = vpop.permute.xlu0 %1904
      %1906 = vrot.lane.b32.xlu0 %v1383, 4
      %v1907 = vpop.permute.xlu0 %1906
      %v1908 = vlaneseq
      %v1909 = vshrl.u32 %v1908, 7
      %v1910 = vsub.s32 1, %v1909
      %v1911 = vrot.slane %v1882, %v1910
      %v1912 = vmul.f32 %v1901, %v1911
      %v1913 = vmul.f32 %v1903, %v1911
      %v1914 = vmul.f32 %v1905, %v1911
      %v1915 = vmul.f32 %v1907, %v1911
      %1916 = vrot.lane.b32.xlu0 %v1372, 3
      %v1917 = vpop.permute.xlu0 %1916
      %1918 = vrot.lane.b32.xlu0 %v1375, 3
      %v1919 = vpop.permute.xlu0 %1918
      %1920 = vrot.lane.b32.xlu0 %v1380, 3
      %v1921 = vpop.permute.xlu0 %1920
      %1922 = vrot.lane.b32.xlu0 %v1383, 3
      %v1923 = vpop.permute.xlu0 %1922
      %v1924 = vlaneseq
      %v1925 = vshrl.u32 %v1924, 7
      %v1926 = vsub.s32 2, %v1925
      %v1927 = vrot.slane %v1882, %v1926
      %v1928 = vmul.f32 %v1917, %v1927
      %v1929 = vmul.f32 %v1919, %v1927
      %v1930 = vmul.f32 %v1921, %v1927
      %v1931 = vmul.f32 %v1923, %v1927
      %1932 = vrot.lane.b32.xlu0 %v1372, 1
      %v1933 = vpop.permute.xlu0 %1932
      %1934 = vrot.lane.b32.xlu0 %v1375, 1
      %v1935 = vpop.permute.xlu0 %1934
      %1936 = vrot.lane.b32.xlu0 %v1380, 1
      %v1937 = vpop.permute.xlu0 %1936
      %1938 = vrot.lane.b32.xlu0 %v1383, 1
      %v1939 = vpop.permute.xlu0 %1938
      %v1940 = vlaneseq
      %v1941 = vshrl.u32 %v1940, 7
      %v1942 = vsub.s32 3, %v1941
      %v1943 = vrot.slane %v1882, %v1942
      %v1944 = vmul.f32 %v1933, %v1943
      %v1945 = vmul.f32 %v1935, %v1943
      %v1946 = vmul.f32 %v1937, %v1943
      %v1947 = vmul.f32 %v1939, %v1943
      %v1948 = vlaneseq
      %v1949 = vshrl.u32 %v1948, 7
      %v1950 = vsub.s32 4, %v1949
      %v1951 = vrot.slane %v1882, %v1950
      %v1952 = vmul.f32 %v1372, %v1951
      %v1953 = vmul.f32 %v1375, %v1951
      %v1954 = vmul.f32 %v1380, %v1951
      %v1955 = vmul.f32 %v1383, %v1951
      %1956 = vrot.lane.b32.xlu0 %v1372, 127
      %v1957 = vpop.permute.xlu0 %1956
      %1958 = vrot.lane.b32.xlu0 %v1375, 127
      %v1959 = vpop.permute.xlu0 %1958
      %1960 = vrot.lane.b32.xlu0 %v1380, 127
      %v1961 = vpop.permute.xlu0 %1960
      %1962 = vrot.lane.b32.xlu0 %v1383, 127
      %v1963 = vpop.permute.xlu0 %1962
      %v1964 = vlaneseq
      %v1965 = vshrl.u32 %v1964, 7
      %v1966 = vsub.s32 5, %v1965
      %v1967 = vrot.slane %v1882, %v1966
      %v1968 = vmul.f32 %v1957, %v1967
      %v1969 = vmul.f32 %v1959, %v1967
      %v1970 = vmul.f32 %v1961, %v1967
      %v1971 = vmul.f32 %v1963, %v1967
      %1972 = vrot.lane.b32.xlu0 %v1372, 125
      %v1973 = vpop.permute.xlu0 %1972
      %1974 = vrot.lane.b32.xlu0 %v1375, 125
      %v1975 = vpop.permute.xlu0 %1974
      %1976 = vrot.lane.b32.xlu0 %v1380, 125
      %v1977 = vpop.permute.xlu0 %1976
      %1978 = vrot.lane.b32.xlu0 %v1383, 125
      %v1979 = vpop.permute.xlu0 %1978
      %v1980 = vlaneseq
      %v1981 = vshrl.u32 %v1980, 7
      %v1982 = vsub.s32 6, %v1981
      %v1983 = vrot.slane %v1882, %v1982
      %v1984 = vmul.f32 %v1973, %v1983
      %v1985 = vmul.f32 %v1975, %v1983
      %v1986 = vmul.f32 %v1977, %v1983
      %v1987 = vmul.f32 %v1979, %v1983
      %1988 = vrot.lane.b32.xlu0 %v1372, 124
      %v1989 = vpop.permute.xlu0 %1988
      %1990 = vrot.lane.b32.xlu0 %v1375, 124
      %v1991 = vpop.permute.xlu0 %1990
      %1992 = vrot.lane.b32.xlu0 %v1380, 124
      %v1993 = vpop.permute.xlu0 %1992
      %1994 = vrot.lane.b32.xlu0 %v1383, 124
      %v1995 = vpop.permute.xlu0 %1994
      %v1996 = vlaneseq
      %v1997 = vshrl.u32 %v1996, 7
      %v1998 = vsub.s32 7, %v1997
      %v1999 = vrot.slane %v1882, %v1998
      %v2000 = vmul.f32 %v1989, %v1999
      %v2001 = vmul.f32 %v1991, %v1999
      %v2002 = vmul.f32 %v1993, %v1999
      %v2003 = vmul.f32 %v1995, %v1999
      %2004 = vrot.lane.b32.xlu0 %v1372, 123
      %v2005 = vpop.permute.xlu0 %2004
      %2006 = vrot.lane.b32.xlu0 %v1375, 123
      %v2007 = vpop.permute.xlu0 %2006
      %2008 = vrot.lane.b32.xlu0 %v1380, 123
      %v2009 = vpop.permute.xlu0 %2008
      %2010 = vrot.lane.b32.xlu0 %v1383, 123
      %v2011 = vpop.permute.xlu0 %2010
      %v2012 = vlaneseq
      %v2013 = vshrl.u32 %v2012, 7
      %v2014 = vsub.s32 0, %v2013
      %v2015 = vrot.slane %v1883, %v2014
      %v2016 = vmul.f32 %v2005, %v2015
      %v2017 = vmul.f32 %v2007, %v2015
      %v2018 = vmul.f32 %v2009, %v2015
      %v2019 = vmul.f32 %v2011, %v2015
      %v2020 = vpack.c.bf16 %v1897, %v1896
      %v2021 = vpack.c.bf16 %v1899, %v1898
      %v2022 = vpack.c.bf16 %v1913, %v1912
      %v2023 = vpack.c.bf16 %v1915, %v1914
      %v2024 = vpack.c.bf16 %v1929, %v1928
      %v2025 = vpack.c.bf16 %v1931, %v1930
      %v2026 = vpack.c.bf16 %v1945, %v1944
      %v2027 = vpack.c.bf16 %v1947, %v1946
      %v2028 = vpack.c.bf16 %v1953, %v1952
      %v2029 = vpack.c.bf16 %v1955, %v1954
      %v2030 = vpack.c.bf16 %v1969, %v1968
      %v2031 = vpack.c.bf16 %v1971, %v1970
      %v2032 = vpack.c.bf16 %v1985, %v1984
      %v2033 = vpack.c.bf16 %v1987, %v1986
      %v2034 = vpack.c.bf16 %v2001, %v2000
      %v2035 = vpack.c.bf16 %v2003, %v2002
      %v2036 = vpack.c.bf16 %v2017, %v2016
      %v2037 = vpack.c.bf16 %v2019, %v2018
      %v2038 = vld [vmem:[%s7] sm:$0xff]
      %v2039 = vld [vmem:[%s7 + $0x8] sm:$0xf]
      %v2040 = vld [vmem:[%s7 + $0xc] sm:$0x77]
      %v2041 = vld [vmem:[%s7 + $0x14] sm:$0x7]
      %v2046 = vunpack.c.l.b16 %v2038
      %v2047 = vunpack.c.h.b16 %v2038
      %v2048 = vunpack.c.l.b16 %v2039
      %v2049 = vunpack.c.l.b16 %v2040
      %v2050 = vunpack.c.h.b16 %v2040
      %v2051 = vunpack.c.l.b16 %v2041
      %v2052 = vpack.c.b16 %v2049, %v2046
      %v2053 = vpack.c.b16 %v2050, %v2047
      %v2054 = vpack.c.b16 %v2051, %v2048
      %v2058 = vsel %vm1395, %v2054, 0
      %2060 = vmatprep.subr.bf16.mxu0 0
      %2061 = vmatpush1.bf16.msra.mxu0 %v2027
      %2062 = vmatprep.subr.bf16.mxu0 0
      %2063 = vmatpush1.bf16.msra.mxu0 %v2026
      %2064 = vmatprep.subr.bf16.mxu0 0
      %2065 = vmatpush1.bf16.msra.mxu0 %v2025
      %2066 = vmatprep.subr.bf16.mxu0 0
      %2067 = vmatpush1.bf16.msra.mxu0 %v2024
      %2068 = vmatprep.subr.bf16.mxu0 0
      %2069 = vmatpush1.bf16.msra.mxu0 %v2023
      %2070 = vmatprep.subr.bf16.mxu0 0
      %2071 = vmatpush1.bf16.msra.mxu0 %v2022
      %2072 = vmatprep.subr.bf16.mxu0 0
      %2073 = vmatpush1.bf16.msra.mxu0 %v2021
      %2074 = vmatprep.subr.bf16.mxu0 0
      %2075 = vmatpush1.bf16.msra.mxu0 %v2020
      %2076 = vmatprep.subr.bf16.mxu0 0
      %2077 = vmatpush2.bf16.msra.mxu0 %v2035
      %2078 = vmatprep.subr.bf16.mxu0 0
      %2079 = vmatpush2.bf16.msra.mxu0 %v2034
      %2080 = vmatprep.subr.bf16.mxu0 0
      %2081 = vmatpush2.bf16.msra.mxu0 %v2033
      %2082 = vmatprep.subr.bf16.mxu0 0
      %2083 = vmatpush2.bf16.msra.mxu0 %v2032
      %2084 = vmatprep.subr.bf16.mxu0 0
      %2085 = vmatpush2.bf16.msra.mxu0 %v2031
      %2086 = vmatprep.subr.bf16.mxu0 0
      %2087 = vmatpush2.bf16.msra.mxu0 %v2030
      %2088 = vmatprep.subr.bf16.mxu0 0
      %2089 = vmatpush2.bf16.msra.mxu0 %v2029
      %2090 = vmatprep.subr.bf16.mxu0 0
      %2091 = vmatpush2.bf16.msra.mxu0 %v2028
      %2092 = vmatprep.mubr.bf16.mxu0 %v2053
      %2093 = vmatmul.mubr.bf16.gmra.mxu0 %v2052
      %v2094 = vpop.f32.mrf.mxu0
      %v2095 = vadd.f32 0.0, %v2094
      %v2096 = vpop.f32.mrf.mxu0
      %v2097 = vpop.f32.mrf.mxu0
      %v2098 = vadd.f32 0.0, %v2097
      %v2099 = vpop.f32.mrf.mxu0
      %2100 = vdwg.mxu0
      %2101 = vmatprep.subr.bf16.mxu0 0
      %2102 = vmatpush1.bf16.msra.mxu0 0
      %2103 = vmatprep.subr.bf16.mxu0 0
      %2104 = vmatpush1.bf16.msra.mxu0 0
      %2105 = vmatprep.subr.bf16.mxu0 0
      %2106 = vmatpush1.bf16.msra.mxu0 0
      %2107 = vmatprep.subr.bf16.mxu0 0
      %2108 = vmatpush1.bf16.msra.mxu0 0
      %2109 = vmatprep.subr.bf16.mxu0 0
      %2110 = vmatpush1.bf16.msra.mxu0 0
      %2111 = vmatprep.subr.bf16.mxu0 0
      %2112 = vmatpush1.bf16.msra.mxu0 %v1216
      %2113 = vmatprep.subr.bf16.mxu0 0
      %2114 = vmatpush1.bf16.msra.mxu0 %v2037
      %2115 = vmatprep.subr.bf16.mxu0 0
      %2116 = vmatpush1.bf16.msra.mxu0 %v2036
      %2117 = vmatprep.subr.bf16.mxu0 0
      %2118 = vmatpush2.bf16.msra.mxu0 0
      %2119 = vmatprep.subr.bf16.mxu0 0
      %2120 = vmatpush2.bf16.msra.mxu0 0
      %2121 = vmatprep.subr.bf16.mxu0 0
      %2122 = vmatpush2.bf16.msra.mxu0 0
      %2123 = vmatprep.subr.bf16.mxu0 0
      %2124 = vmatpush2.bf16.msra.mxu0 0
      %2125 = vmatprep.subr.bf16.mxu0 0
      %2126 = vmatpush2.bf16.msra.mxu0 0
      %2127 = vmatprep.subr.bf16.mxu0 0
      %2128 = vmatpush2.bf16.msra.mxu0 0
      %2129 = vmatprep.subr.bf16.mxu0 0
      %2130 = vmatpush2.bf16.msra.mxu0 0
      %2131 = vmatprep.subr.bf16.mxu0 0
      %2132 = vmatpush2.bf16.msra.mxu0 0
      %2133 = vmatprep.mubr.bf16.mxu0 0
      %2134 = vmatmul.mubr.bf16.gmra.mxu0 %v2058
      %v2135 = vpop.f32.mrf.mxu0
      %v2136 = vadd.f32 %v2095, %v2135
      %v2137 = vpop.f32.mrf.mxu0
      %v2138 = vpop.f32.mrf.mxu0
      %v2139 = vadd.f32 %v2098, %v2138
      %v2140 = vpop.f32.mrf.mxu0
      %2141 = vdwg.mxu0
      %v2142 = vsel %vm1791, %v2136, -inf
      %v2143 = vrot.slane %v2142, 4
      %v2144 = vmax.f32 %v2142, %v2143
      %v2145 = vrot.slane %v2144, 2
      %v2146 = vmax.f32 %v2144, %v2145
      %v2147 = vrot.slane %v2146, 1
      %v2148 = vmax.f32 %v2146, %v2147
      %v2149 = vsub.f32 %v2136, %v2148
      %v2150 = vmul.f32 %v2149, 1.442695
      %v2151 = vpow.pop %v2150
      %v2152 = vsel %vm1791, %v2151, 0.0
      %v2153 = vrot.slane %v2152, 4
      %v2154 = vadd.f32 %v2152, %v2153
      %v2155 = vrot.slane %v2154, 2
      %v2156 = vadd.f32 %v2154, %v2155
      %v2157 = vrot.slane %v2156, 1
      %v2158 = vadd.f32 %v2156, %v2157
      %v2159 = vrcp.pop %v2158
      %v2160 = vmul.f32 %v2151, %v2159
      %v2161 = vsel %vm1811, %v2136, -inf
      %v2162 = vrot.slane %v2161, 4
      %v2163 = vmax.f32 %v2161, %v2162
      %v2164 = vrot.slane %v2163, 2
      %v2165 = vmax.f32 %v2163, %v2164
      %v2166 = vrot.slane %v2165, 1
      %v2167 = vmax.f32 %v2165, %v2166
      %v2168 = vsub.f32 %v2136, %v2167
      %v2169 = vmul.f32 %v2168, 1.442695
      %v2170 = vpow.pop %v2169
      %v2172 = vrot.slane %v2170, 3
      %v2174 = vsel %vm1791, %v2172, 0.0
      %v2175 = vrot.slane %v2174, 4
      %v2176 = vadd.f32 %v2174, %v2175
      %v2177 = vrot.slane %v2176, 2
      %v2178 = vadd.f32 %v2176, %v2177
      %v2179 = vrot.slane %v2178, 1
      %v2180 = vadd.f32 %v2178, %v2179
      %v2181 = vrcp.pop %v2180
      %v2182 = vmul.f32 %v2170, %v2181
      %v2183 = vsel %vm1791, %v2160, %v2182
      %v2184 = vsel %vm1835, %v2183, 0.0
      %v2185 = vmul.f32 %v2136, 0.1
      %v2187 = vrot.slane %v555, 4
      %v2189 = vmul.f32 %v2185, %v2187
      %v2190 = vrot.slane %v555, 2
      %v2192 = vadd.f32 %v2189, %v2190
      %v2193 = vmul.f32 %v2139, 0.2
      %v2194 = vmul.f32 %v2193, 1.442695
      %v2195 = vpow.pop %v2194
      %v2196 = vmul.f32 %v2195, %v2190
      %v2197 = vmul.f32 %v2196, 0.5
      %v2199 = vrot.slane %v2197, 2
      %v2201 = vsub.f32 %v2192, %v2199
      %v2202 = vadd.f32 %v2192, %v2199
      %v2204 = vrot.slane %v2201, 6
      %v2207 = vrot.slane %v2202, 4
      %v2209 = vsel %vm1861, %v2204, %v2207
      %v2210 = vmul.f32 %v2139, 0.1
      %v2211 = vmul.f32 %v2210, %v2187
      %v2212 = vadd.f32 %v2211, %v2190
      %v2213 = vsub.f32 %v2212, %v2199
      %v2214 = vadd.f32 %v2212, %v2199
      %v2216 = vrot.slane %v2213, 2
      %v2218 = vsel %vm1861, %v2216, %v2214
      %v2220 = vrot.slane %v2218, 4
      %v2222 = vsel %vm722, %v2209, %v2220
      %v2223 = vsel %vm582, 1, 0
      %vm2224 = vcmp.eq.s32.totalorder %v2223, 1
      %v2225 = vsel %vm2224, %v2184, 0.0
      %v2226 = vsel %vm2224, %v2222, 0.0
      %s2227 = scalar_lea.vmem %s548, 16
      %2228 = vst [vmem:[%s2227] sm:$0xff] %v2225
      %2229 = vst [vmem:[%s2227 + $0x8] sm:$0xff] %v2226
      %v2230 = vld [vmem:[%s15] sm:$0xff]
      %v2231 = vld [vmem:[%s15 + $0x8] sm:$0x1]
      %2232 = vrot.lane.b32.xlu0 %v1721, 3
      %v2233 = vpop.permute.xlu0 %2232
      %2234 = vrot.lane.b32.xlu0 %v1724, 3
      %v2235 = vpop.permute.xlu0 %2234
      %2236 = vrot.lane.b32.xlu0 %v1729, 3
      %v2237 = vpop.permute.xlu0 %2236
      %2238 = vrot.lane.b32.xlu0 %v1732, 3
      %v2239 = vpop.permute.xlu0 %2238
      %v2240 = vlaneseq
      %v2241 = vshrl.u32 %v2240, 7
      %v2242 = vsub.s32 0, %v2241
      %v2243 = vrot.slane %v2230, %v2242
      %v2244 = vmul.f32 %v2233, %v2243
      %v2245 = vmul.f32 %v2235, %v2243
      %v2246 = vmul.f32 %v2237, %v2243
      %v2247 = vmul.f32 %v2239, %v2243
      %2248 = vrot.lane.b32.xlu0 %v1721, 2
      %v2249 = vpop.permute.xlu0 %2248
      %2250 = vrot.lane.b32.xlu0 %v1724, 2
      %v2251 = vpop.permute.xlu0 %2250
      %2252 = vrot.lane.b32.xlu0 %v1729, 2
      %v2253 = vpop.permute.xlu0 %2252
      %2254 = vrot.lane.b32.xlu0 %v1732, 2
      %v2255 = vpop.permute.xlu0 %2254
      %v2256 = vlaneseq
      %v2257 = vshrl.u32 %v2256, 7
      %v2258 = vsub.s32 1, %v2257
      %v2259 = vrot.slane %v2230, %v2258
      %v2260 = vmul.f32 %v2249, %v2259
      %v2261 = vmul.f32 %v2251, %v2259
      %v2262 = vmul.f32 %v2253, %v2259
      %v2263 = vmul.f32 %v2255, %v2259
      %2264 = vrot.lane.b32.xlu0 %v1721, 1
      %v2265 = vpop.permute.xlu0 %2264
      %2266 = vrot.lane.b32.xlu0 %v1724, 1
      %v2267 = vpop.permute.xlu0 %2266
      %2268 = vrot.lane.b32.xlu0 %v1729, 1
      %v2269 = vpop.permute.xlu0 %2268
      %2270 = vrot.lane.b32.xlu0 %v1732, 1
      %v2271 = vpop.permute.xlu0 %2270
      %v2272 = vlaneseq
      %v2273 = vshrl.u32 %v2272, 7
      %v2274 = vsub.s32 2, %v2273
      %v2275 = vrot.slane %v2230, %v2274
      %v2276 = vmul.f32 %v2265, %v2275
      %v2277 = vmul.f32 %v2267, %v2275
      %v2278 = vmul.f32 %v2269, %v2275
      %v2279 = vmul.f32 %v2271, %v2275
      %v2280 = vlaneseq
      %v2281 = vshrl.u32 %v2280, 7
      %v2282 = vsub.s32 3, %v2281
      %v2283 = vrot.slane %v2230, %v2282
      %v2284 = vmul.f32 %v2265, %v2283
      %v2285 = vmul.f32 %v2267, %v2283
      %v2286 = vmul.f32 %v2269, %v2283
      %v2287 = vmul.f32 %v2271, %v2283
      %v2288 = vlaneseq
      %v2289 = vshrl.u32 %v2288, 7
      %v2290 = vsub.s32 4, %v2289
      %v2291 = vrot.slane %v2230, %v2290
      %v2292 = vmul.f32 %v1721, %v2291
      %v2293 = vmul.f32 %v1724, %v2291
      %v2294 = vmul.f32 %v1729, %v2291
      %v2295 = vmul.f32 %v1732, %v2291
      %2296 = vrot.lane.b32.xlu0 %v1721, 127
      %v2297 = vpop.permute.xlu0 %2296
      %2298 = vrot.lane.b32.xlu0 %v1724, 127
      %v2299 = vpop.permute.xlu0 %2298
      %2300 = vrot.lane.b32.xlu0 %v1729, 127
      %v2301 = vpop.permute.xlu0 %2300
      %2302 = vrot.lane.b32.xlu0 %v1732, 127
      %v2303 = vpop.permute.xlu0 %2302
      %v2304 = vlaneseq
      %v2305 = vshrl.u32 %v2304, 7
      %v2306 = vsub.s32 5, %v2305
      %v2307 = vrot.slane %v2230, %v2306
      %v2308 = vmul.f32 %v2297, %v2307
      %v2309 = vmul.f32 %v2299, %v2307
      %v2310 = vmul.f32 %v2301, %v2307
      %v2311 = vmul.f32 %v2303, %v2307
      %v2312 = vlaneseq
      %v2313 = vshrl.u32 %v2312, 7
      %v2314 = vsub.s32 6, %v2313
      %v2315 = vrot.slane %v2230, %v2314
      %v2316 = vmul.f32 %v2297, %v2315
      %v2317 = vmul.f32 %v2299, %v2315
      %v2318 = vmul.f32 %v2301, %v2315
      %v2319 = vmul.f32 %v2303, %v2315
      %2320 = vrot.lane.b32.xlu0 %v1721, 126
      %v2321 = vpop.permute.xlu0 %2320
      %2322 = vrot.lane.b32.xlu0 %v1724, 126
      %v2323 = vpop.permute.xlu0 %2322
      %2324 = vrot.lane.b32.xlu0 %v1729, 126
      %v2325 = vpop.permute.xlu0 %2324
      %2326 = vrot.lane.b32.xlu0 %v1732, 126
      %v2327 = vpop.permute.xlu0 %2326
      %v2328 = vlaneseq
      %v2329 = vshrl.u32 %v2328, 7
      %v2330 = vsub.s32 7, %v2329
      %v2331 = vrot.slane %v2230, %v2330
      %v2332 = vmul.f32 %v2321, %v2331
      %v2333 = vmul.f32 %v2323, %v2331
      %v2334 = vmul.f32 %v2325, %v2331
      %v2335 = vmul.f32 %v2327, %v2331
      %2336 = vrot.lane.b32.xlu0 %v1721, 125
      %v2337 = vpop.permute.xlu0 %2336
      %2338 = vrot.lane.b32.xlu0 %v1724, 125
      %v2339 = vpop.permute.xlu0 %2338
      %2340 = vrot.lane.b32.xlu0 %v1729, 125
      %v2341 = vpop.permute.xlu0 %2340
      %2342 = vrot.lane.b32.xlu0 %v1732, 125
      %v2343 = vpop.permute.xlu0 %2342
      %v2344 = vlaneseq
      %v2345 = vshrl.u32 %v2344, 7
      %v2346 = vsub.s32 0, %v2345
      %v2347 = vrot.slane %v2231, %v2346
      %v2348 = vmul.f32 %v2337, %v2347
      %v2349 = vmul.f32 %v2339, %v2347
      %v2350 = vmul.f32 %v2341, %v2347
      %v2351 = vmul.f32 %v2343, %v2347
      %v2352 = vpack.c.bf16 %v2245, %v2244
      %v2353 = vpack.c.bf16 %v2247, %v2246
      %v2354 = vpack.c.bf16 %v2261, %v2260
      %v2355 = vpack.c.bf16 %v2263, %v2262
      %v2356 = vpack.c.bf16 %v2277, %v2276
      %v2357 = vpack.c.bf16 %v2279, %v2278
      %v2358 = vpack.c.bf16 %v2285, %v2284
      %v2359 = vpack.c.bf16 %v2287, %v2286
      %v2360 = vpack.c.bf16 %v2293, %v2292
      %v2361 = vpack.c.bf16 %v2295, %v2294
      %v2362 = vpack.c.bf16 %v2309, %v2308
      %v2363 = vpack.c.bf16 %v2311, %v2310
      %v2364 = vpack.c.bf16 %v2317, %v2316
      %v2365 = vpack.c.bf16 %v2319, %v2318
      %v2366 = vpack.c.bf16 %v2333, %v2332
      %v2367 = vpack.c.bf16 %v2335, %v2334
      %v2368 = vpack.c.bf16 %v2349, %v2348
      %v2369 = vpack.c.bf16 %v2351, %v2350
      %v2370 = vld [vmem:[%s8] sm:$0xff]
      %v2371 = vld [vmem:[%s8 + $0x8] sm:$0xf]
      %v2372 = vld [vmem:[%s8 + $0xc] sm:$0x77]
      %v2373 = vld [vmem:[%s8 + $0x14] sm:$0x7]
      %v2378 = vunpack.c.l.b16 %v2370
      %v2379 = vunpack.c.h.b16 %v2370
      %v2380 = vunpack.c.l.b16 %v2371
      %v2381 = vunpack.c.l.b16 %v2372
      %v2382 = vunpack.c.h.b16 %v2372
      %v2383 = vunpack.c.l.b16 %v2373
      %v2384 = vpack.c.b16 %v2381, %v2378
      %v2385 = vpack.c.b16 %v2382, %v2379
      %v2386 = vpack.c.b16 %v2383, %v2380
      %v2390 = vsel %vm1395, %v2386, 0
      %2392 = vmatprep.subr.bf16.mxu0 0
      %2393 = vmatpush1.bf16.msra.mxu0 %v2359
      %2394 = vmatprep.subr.bf16.mxu0 0
      %2395 = vmatpush1.bf16.msra.mxu0 %v2358
      %2396 = vmatprep.subr.bf16.mxu0 0
      %2397 = vmatpush1.bf16.msra.mxu0 %v2357
      %2398 = vmatprep.subr.bf16.mxu0 0
      %2399 = vmatpush1.bf16.msra.mxu0 %v2356
      %2400 = vmatprep.subr.bf16.mxu0 0
      %2401 = vmatpush1.bf16.msra.mxu0 %v2355
      %2402 = vmatprep.subr.bf16.mxu0 0
      %2403 = vmatpush1.bf16.msra.mxu0 %v2354
      %2404 = vmatprep.subr.bf16.mxu0 0
      %2405 = vmatpush1.bf16.msra.mxu0 %v2353
      %2406 = vmatprep.subr.bf16.mxu0 0
      %2407 = vmatpush1.bf16.msra.mxu0 %v2352
      %2408 = vmatprep.subr.bf16.mxu0 0
      %2409 = vmatpush2.bf16.msra.mxu0 %v2367
      %2410 = vmatprep.subr.bf16.mxu0 0
      %2411 = vmatpush2.bf16.msra.mxu0 %v2366
      %2412 = vmatprep.subr.bf16.mxu0 0
      %2413 = vmatpush2.bf16.msra.mxu0 %v2365
      %2414 = vmatprep.subr.bf16.mxu0 0
      %2415 = vmatpush2.bf16.msra.mxu0 %v2364
      %2416 = vmatprep.subr.bf16.mxu0 0
      %2417 = vmatpush2.bf16.msra.mxu0 %v2363
      %2418 = vmatprep.subr.bf16.mxu0 0
      %2419 = vmatpush2.bf16.msra.mxu0 %v2362
      %2420 = vmatprep.subr.bf16.mxu0 0
      %2421 = vmatpush2.bf16.msra.mxu0 %v2361
      %2422 = vmatprep.subr.bf16.mxu0 0
      %2423 = vmatpush2.bf16.msra.mxu0 %v2360
      %2424 = vmatprep.mubr.bf16.mxu0 %v2385
      %2425 = vmatmul.mubr.bf16.gmra.mxu0 %v2384
      %v2426 = vpop.f32.mrf.mxu0
      %v2427 = vadd.f32 0.0, %v2426
      %v2428 = vpop.f32.mrf.mxu0
      %v2429 = vpop.f32.mrf.mxu0
      %v2430 = vadd.f32 0.0, %v2429
      %v2431 = vpop.f32.mrf.mxu0
      %2432 = vdwg.mxu0
      %2433 = vmatprep.subr.bf16.mxu0 0
      %2434 = vmatpush1.bf16.msra.mxu0 0
      %2435 = vmatprep.subr.bf16.mxu0 0
      %2436 = vmatpush1.bf16.msra.mxu0 0
      %2437 = vmatprep.subr.bf16.mxu0 0
      %2438 = vmatpush1.bf16.msra.mxu0 0
      %2439 = vmatprep.subr.bf16.mxu0 0
      %2440 = vmatpush1.bf16.msra.mxu0 0
      %2441 = vmatprep.subr.bf16.mxu0 0
      %2442 = vmatpush1.bf16.msra.mxu0 0
      %2443 = vmatprep.subr.bf16.mxu0 0
      %2444 = vmatpush1.bf16.msra.mxu0 %v1216
      %2445 = vmatprep.subr.bf16.mxu0 0
      %2446 = vmatpush1.bf16.msra.mxu0 %v2369
      %2447 = vmatprep.subr.bf16.mxu0 0
      %2448 = vmatpush1.bf16.msra.mxu0 %v2368
      %2449 = vmatprep.subr.bf16.mxu0 0
      %2450 = vmatpush2.bf16.msra.mxu0 0
      %2451 = vmatprep.subr.bf16.mxu0 0
      %2452 = vmatpush2.bf16.msra.mxu0 0
      %2453 = vmatprep.subr.bf16.mxu0 0
      %2454 = vmatpush2.bf16.msra.mxu0 0
      %2455 = vmatprep.subr.bf16.mxu0 0
      %2456 = vmatpush2.bf16.msra.mxu0 0
      %2457 = vmatprep.subr.bf16.mxu0 0
      %2458 = vmatpush2.bf16.msra.mxu0 0
      %2459 = vmatprep.subr.bf16.mxu0 0
      %2460 = vmatpush2.bf16.msra.mxu0 0
      %2461 = vmatprep.subr.bf16.mxu0 0
      %2462 = vmatpush2.bf16.msra.mxu0 0
      %2463 = vmatprep.subr.bf16.mxu0 0
      %2464 = vmatpush2.bf16.msra.mxu0 0
      %2465 = vmatprep.mubr.bf16.mxu0 0
      %2466 = vmatmul.mubr.bf16.gmra.mxu0 %v2390
      %v2467 = vpop.f32.mrf.mxu0
      %v2468 = vadd.f32 %v2427, %v2467
      %v2469 = vpop.f32.mrf.mxu0
      %v2470 = vpop.f32.mrf.mxu0
      %v2471 = vadd.f32 %v2430, %v2470
      %v2472 = vpop.f32.mrf.mxu0
      %2473 = vdwg.mxu0
      %vm2474 = vcmp.lt.s32.totalorder %v551, 4
      %v2475 = vsel %vm1791, %v2468, -inf
      %v2476 = vrot.slane %v2475, 4
      %v2477 = vmax.f32 %v2475, %v2476
      %v2478 = vrot.slane %v2477, 2
      %v2479 = vmax.f32 %v2477, %v2478
      %v2480 = vrot.slane %v2479, 1
      %v2481 = vmax.f32 %v2479, %v2480
      %v2482 = vsub.f32 %v2468, %v2481
      %v2483 = vmul.f32 %v2482, 1.442695
      %v2484 = vpow.pop %v2483
      %v2485 = vsel %vm1791, %v2484, 0.0
      %v2486 = vrot.slane %v2485, 4
      %v2487 = vadd.f32 %v2485, %v2486
      %v2488 = vrot.slane %v2487, 2
      %v2489 = vadd.f32 %v2487, %v2488
      %v2490 = vrot.slane %v2489, 1
      %v2491 = vadd.f32 %v2489, %v2490
      %v2492 = vrcp.pop %v2491
      %v2493 = vmul.f32 %v2484, %v2492
      %v2494 = vsel %vm1811, %v2468, -inf
      %v2495 = vrot.slane %v2494, 4
      %v2496 = vmax.f32 %v2494, %v2495
      %v2497 = vrot.slane %v2496, 2
      %v2498 = vmax.f32 %v2496, %v2497
      %v2499 = vrot.slane %v2498, 1
      %v2500 = vmax.f32 %v2498, %v2499
      %v2501 = vsub.f32 %v2468, %v2500
      %v2502 = vmul.f32 %v2501, 1.442695
      %v2503 = vpow.pop %v2502
      %v2505 = vrot.slane %v2503, 3
      %v2507 = vsel %vm1791, %v2505, 0.0
      %v2508 = vrot.slane %v2507, 4
      %v2509 = vadd.f32 %v2507, %v2508
      %v2510 = vrot.slane %v2509, 2
      %v2511 = vadd.f32 %v2509, %v2510
      %v2512 = vrot.slane %v2511, 1
      %v2513 = vadd.f32 %v2511, %v2512
      %v2514 = vrcp.pop %v2513
      %v2515 = vmul.f32 %v2503, %v2514
      %v2516 = vsel %vm1791, %v2493, %v2515
      %v2517 = vsel %vm1835, %v2516, 0.0
      %v2518 = vmul.f32 %v2468, 0.1
      %v2520 = vrot.slane %v556, 4
      %v2522 = vmul.f32 %v2518, %v2520
      %v2523 = vrot.slane %v556, 2
      %v2525 = vadd.f32 %v2522, %v2523
      %v2526 = vmul.f32 %v2471, 0.2
      %v2527 = vmul.f32 %v2526, 1.442695
      %v2528 = vpow.pop %v2527
      %v2529 = vmul.f32 %v2528, %v2523
      %v2530 = vmul.f32 %v2529, 0.5
      %v2532 = vrot.slane %v2530, 2
      %v2534 = vsub.f32 %v2525, %v2532
      %v2535 = vadd.f32 %v2525, %v2532
      %v2537 = vrot.slane %v2534, 6
      %v2540 = vrot.slane %v2535, 4
      %v2542 = vsel %vm1861, %v2537, %v2540
      %v2543 = vmul.f32 %v2471, 0.1
      %v2544 = vmul.f32 %v2543, %v2520
      %v2545 = vadd.f32 %v2544, %v2523
      %v2546 = vsub.f32 %v2545, %v2532
      %v2547 = vadd.f32 %v2545, %v2532
      %v2549 = vrot.slane %v2546, 2
      %v2551 = vsel %vm1861, %v2549, %v2547
      %v2553 = vrot.slane %v2551, 4
      %v2555 = vsel %vm722, %v2542, %v2553
      %v2556 = vsel %vm2474, 1, 0
      %vm2557 = vcmp.eq.s32.totalorder %v2556, 1
      %v2558 = vsel %vm2557, %v2517, 0.0
      %v2559 = vsel %vm2557, %v2555, 0.0
      %s2560 = scalar_lea.vmem %s548, 32
      %2561 = vst [vmem:[%s2560] sm:$0xff] %v2558
      %2562 = vst [vmem:[%s2560 + $0x8] sm:$0xff] %v2559
      %p2563 = scmp.lt.s32.totalorder %s28, 1
      %s2564 = scalar_select %p2563, %s28, 1
      %s2565 = smul.addr %s2564, 6
      %s2566 = smul.addr %s2565, 8
      %s2567 = scalar_lea.vmem %s17, %s2566
      // Predicated region
      $region89: #{ssd_forward.1} parent=87 // pred_check
        %p2568 = pneg %p408
      $region90: #{ssd_forward.1} parent=87 // pred_check_branch
        %2570 = sbr.rel (%p2568) target = $region92
      $region91: #{ssd_forward.1} parent=87 // pred_region
        _
      $region92: #{ssd_forward.1} parent=87 // pred_fallthru
        _
    $region88: #{ssd_forward.1} parent=5 // pred_fallthru
      _
    %p2571 = scmp.le.s32.totalorder 2, %s23
    // Predicated region
    $region93: #{ssd_forward.1} parent=5 // pred_check
      %p2572 = pneg %p2571
    $region94: #{ssd_forward.1} parent=5 // pred_check_branch
      %2574 = sbr.rel (%p2572) target = $region96
    $region95: #{ssd_forward.1} parent=5 // pred_region
      %s2575 = ssub.s32 %s23, 2
      // Predicated region
      $region97: #{ssd_forward.1} parent=95 // pred_check
        %p2576 = pneg %p414
      $region98: #{ssd_forward.1} parent=95 // pred_check_branch
        %2578 = sbr.rel (%p2576) target = $region100
      $region99: #{ssd_forward.1} parent=95 // pred_region
        %p2579 = scmp.lt.s32.totalorder %s29, 1
        %s2580 = scalar_select %p2579, %s29, 1
        %s2581 = smul.addr %s2580, 6
        %s2582 = smul.addr %s2581, 8
        %s2583 = scalar_lea.vmem %s17, %s2582
      $region100: #{ssd_forward.1} parent=95 // pred_fallthru
        _
    $region96: #{ssd_forward.1} parent=5 // pred_fallthru
      _
  $region6: #{ssd_forward.1} parent=0 // loop_footer
    %s27 = sadd.s32 1, %s23
  $region7: #{ssd_forward.1} parent=0 // loop_footer_branch
    %22 = sbr.rel target = $region3
  $region8: #{ssd_forward.1} parent=0 // loop_exit
    _

</llo_original>
